<compile_context>
chip_gen: v7x
topology: tpu7x:2x2x1
jax: 0.10.0
libtpu: 0.0.40
codegen_flags: <defaults>
</compile_context>

<pallas_src>
import functools
import math

import jax
import jax.numpy as jnp
from jax import lax
from jax.experimental import pallas as pl
from jax.experimental.pallas import tpu as pltpu

# ---- small synthetic "BERT" config ----------------------------------------
BATCH = 2
SEQ = 8
HIDDEN = 32
N_HEADS = 4
HEAD_DIM = HIDDEN // N_HEADS
N_LAYERS = 2
INTERMEDIATE = 64
VOCAB = 50
NUM_CLASSES = 3
LN_EPS = 1e-12
FC_PAD = 128            # classifier output padded to a full 128-lane vreg


# ---------------------------- fused Pallas kernel ---------------------------

def _mm(a, w):
    """MXU matmul: bf16 operands, f32 accumulate (elementwise math stays f32)."""
    return jnp.dot(a.astype(jnp.bfloat16), w.astype(jnp.bfloat16),
                   preferred_element_type=jnp.float32)


def _layernorm(y, g, b):
    mu = jnp.mean(y, axis=-1, keepdims=True)
    var = jnp.mean(jnp.square(y - mu), axis=-1, keepdims=True)
    return (y - mu) * lax.rsqrt(var + LN_EPS) * g + b


def _fused_bert_kernel(emb_ref, mask_ref,
                       emb_g_ref, emb_b_ref,
                       qkv_w_ref, qkv_b_ref,
                       ao_w_ref, ao_b_ref,
                       ln1_g_ref, ln1_b_ref,
                       i_w_ref, i_b_ref,
                       o_w_ref, o_b_ref,
                       ln2_g_ref, ln2_b_ref,
                       pool_w_ref, pool_b_ref,
                       fc_w_ref, fc_b_ref,
                       out_ref):
    scale = 1.0 / math.sqrt(HEAD_DIM)
    mask_bias = mask_ref[...]                                   # (1, S) additive

    # --- embedding layernorm ---
    x = _layernorm(emb_ref[...], emb_g_ref[...], emb_b_ref[...])  # (S, H) f32

    for l in range(N_LAYERS):
        # --- fused QKV projection: one (S,H)@(H,3H) MXU pass ---
        qkv = _mm(x, qkv_w_ref[l]) + qkv_b_ref[l]                 # (S, 3H) f32

        # --- per-head attention; output projection accumulated per head so
        #     no concat / transpose is ever needed (data stays in vregs) ---
        attn_out = ao_b_ref[l]                                    # (1, H) bias
        for h in range(N_HEADS):
            c0 = h * HEAD_DIM
            q = qkv[:, c0:c0 + HEAD_DIM]                          # (S, Dh)
            k = qkv[:, HIDDEN + c0:HIDDEN + c0 + HEAD_DIM]
            v = qkv[:, 2 * HIDDEN + c0:2 * HIDDEN + c0 + HEAD_DIM]
            s = lax.dot_general(q, k, (((1,), (1,)), ((), ())),
                                preferred_element_type=jnp.float32) * scale
            s = s + mask_bias                                     # (S,S)+(1,S)
            m = jnp.max(s, axis=-1, keepdims=True)
            p = jnp.exp(s - m)
            p = p * pl.reciprocal(jnp.sum(p, axis=-1, keepdims=True), approx=True)
            ctx_h = jnp.dot(p, v, preferred_element_type=jnp.float32)   # (S, Dh)
            attn_out = attn_out + _mm(ctx_h, ao_w_ref[l, h])            # (S, H)

        # residual folded into the layernorm input
        x = _layernorm(attn_out + x, ln1_g_ref[l], ln1_b_ref[l])

        # --- FFN ---
        inter = _mm(x, i_w_ref[l]) + i_b_ref[l]
        # TODO(synk): HF BERT uses exact erf-GELU; tanh approximation used here.
        inter = jax.nn.gelu(inter, approximate=True)
        ffn = _mm(inter, o_w_ref[l]) + o_b_ref[l]
        x = _layernorm(ffn + x, ln2_g_ref[l], ln2_b_ref[l])

    # --- pooler + classifier on all S rows (row 0 is [CLS]); extra rows keep
    #     the store sublane/lane-dense and are sliced off on the host ---
    pooled = jnp.tanh(_mm(x, pool_w_ref[...]) + pool_b_ref[...])        # (S, H)
    out_ref[...] = _mm(pooled, fc_w_ref[...]) + fc_b_ref[...]           # (S, 128)


def fused_bert_forward(emb, mask_bias, fp):
    """emb: (B,S,H) f32, mask_bias: (B,1,S) f32, fp: packed params."""
    B = emb.shape[0]
    L = N_LAYERS

    def full(shp):
        return pl.BlockSpec(shp, lambda b, _n=len(shp): (0,) * _n)

    def per_b(shp):
        return pl.BlockSpec((None,) + shp,
                            lambda b, _n=len(shp): (b,) + (0,) * _n)

    in_specs = [
        per_b((SEQ, HIDDEN)),                                            # emb
        per_b((1, SEQ)),                                                 # mask
        full((1, HIDDEN)), full((1, HIDDEN)),                            # emb LN
        full((L, HIDDEN, 3 * HIDDEN)), full((L, 1, 3 * HIDDEN)),         # QKV
        full((L, N_HEADS, HEAD_DIM, HIDDEN)), full((L, 1, HIDDEN)),      # attn out
        full((L, 1, HIDDEN)), full((L, 1, HIDDEN)),                      # LN1
        full((L, HIDDEN, INTERMEDIATE)), full((L, 1, INTERMEDIATE)),     # FFN in
        full((L, INTERMEDIATE, HIDDEN)), full((L, 1, HIDDEN)),           # FFN out
        full((L, 1, HIDDEN)), full((L, 1, HIDDEN)),                      # LN2
        full((HIDDEN, HIDDEN)), full((1, HIDDEN)),                       # pooler
        full((HIDDEN, FC_PAD)), full((1, FC_PAD)),                       # fc (pad)
    ]
    return pl.pallas_call(
        _fused_bert_kernel,
        out_shape=jax.ShapeDtypeStruct((B, SEQ, FC_PAD), jnp.float32),
        grid=(B,),
        in_specs=in_specs,
        out_specs=pl.BlockSpec((None, SEQ, FC_PAD), lambda b: (b, 0, 0)),
        compiler_params=pltpu.CompilerParams(
            dimension_semantics=("parallel",)),   # batch split over v7x's 2 TCs
    )(emb, mask_bias,
      fp["emb_ln_g"], fp["emb_ln_b"],
      fp["qkv_w"], fp["qkv_b"],
      fp["ao_w"], fp["ao_b"],
      fp["ln1_g"], fp["ln1_b"],
      fp["i_w"], fp["i_b"],
      fp["o_w"], fp["o_b"],
      fp["ln2_g"], fp["ln2_b"],
      fp["pool_w"], fp["pool_b"],
      fp["fc_w"], fp["fc_b"])


# ---------------------------- param packing / forward -----------------------

def pack_params(params):
    """Stack per-layer weights, fuse QKV, pad classifier, bf16-cast MXU weights."""
    bf = lambda a: a.astype(jnp.bfloat16)
    st = lambda key: jnp.stack([lp[key] for lp in params["layers"]], axis=0)

    qkv_w = jnp.concatenate([st("q_w"), st("k_w"), st("v_w")], axis=-1)  # (L,H,3H)
    qkv_b = jnp.concatenate([st("q_b"), st("k_b"), st("v_b")], axis=-1)  # (L,1,3H)
    fc_w = jnp.zeros((HIDDEN, FC_PAD), jnp.float32).at[:, :NUM_CLASSES].set(
        params["fc_w"])
    fc_b = jnp.zeros((1, FC_PAD), jnp.float32).at[:, :NUM_CLASSES].set(
        params["fc_b"])
    return {
        "emb_ln_g": params["emb_ln_g"], "emb_ln_b": params["emb_ln_b"],
        "qkv_w": bf(qkv_w), "qkv_b": qkv_b,
        "ao_w": bf(st("ao_w").reshape(N_LAYERS, N_HEADS, HEAD_DIM, HIDDEN)),
        "ao_b": st("ao_b"),
        "ln1_g": st("ln1_g"), "ln1_b": st("ln1_b"),
        "i_w": bf(st("i_w")), "i_b": st("i_b"),
        "o_w": bf(st("o_w")), "o_b": st("o_b"),
        "ln2_g": st("ln2_g"), "ln2_b": st("ln2_b"),
        "pool_w": bf(params["pool_w"]), "pool_b": params["pool_b"],
        "fc_w": bf(fc_w), "fc_b": fc_b,
    }


@jax.jit
def model_forward(x, params):
    ids = x[0]                           # (B, S) token ids        (context)
    mask = x[2]                          # (B, S) attention mask
    B, S = ids.shape

    # Embedding-table gathers are plain-JAX glue feeding the fused kernel.
    emb = (params["word_emb"][ids]
           + params["pos_emb"][None, :, :]
           + params["type_emb"][0][None, None, :])                  # (B,S,H) f32
    mask_bias = ((1.0 - mask.astype(jnp.float32)) * -10000.0).reshape(B, 1, S)

    fp = pack_params(params)
    out = fused_bert_forward(emb, mask_bias, fp)                    # (B,S,128)
    return out[:, 0, :NUM_CLASSES]                                  # (B, classes)


# ---------------------------- deterministic params --------------------------

def init_params(key):
    keys = iter(jax.random.split(key, 64))

    def w(shape, scale=0.02):
        return (scale * jax.random.normal(next(keys), shape)).astype(jnp.float32)

    zeros = lambda s: jnp.zeros(s, jnp.float32)
    ones = lambda s: jnp.ones(s, jnp.float32)

    params = {
        "word_emb": w((VOCAB, HIDDEN)),
        "pos_emb": w((SEQ, HIDDEN)),
        "type_emb": w((2, HIDDEN)),
        "emb_ln_g": ones((1, HIDDEN)), "emb_ln_b": zeros((1, HIDDEN)),
        "pool_w": w((HIDDEN, HIDDEN)), "pool_b": zeros((1, HIDDEN)),
        "fc_w": w((HIDDEN, NUM_CLASSES)), "fc_b": zeros((1, NUM_CLASSES)),
        "layers": [],
    }
    for _ in range(N_LAYERS):
        params["layers"].append({
            "q_w": w((HIDDEN, HIDDEN)), "q_b": zeros((1, HIDDEN)),
            "k_w": w((HIDDEN, HIDDEN)), "k_b": zeros((1, HIDDEN)),
            "v_w": w((HIDDEN, HIDDEN)), "v_b": zeros((1, HIDDEN)),
            "ao_w": w((HIDDEN, HIDDEN)), "ao_b": zeros((1, HIDDEN)),
            "ln1_g": ones((1, HIDDEN)), "ln1_b": zeros((1, HIDDEN)),
            "i_w": w((HIDDEN, INTERMEDIATE)), "i_b": zeros((1, INTERMEDIATE)),
            "o_w": w((INTERMEDIATE, HIDDEN)), "o_b": zeros((1, HIDDEN)),
            "ln2_g": ones((1, HIDDEN)), "ln2_b": zeros((1, HIDDEN)),
        })
    return params


if __name__ == "__main__":
    key = jax.random.PRNGKey(0)
    pkey, dkey = jax.random.split(key)
    params = init_params(pkey)

    ids = jax.random.randint(dkey, (BATCH, SEQ), 0, VOCAB, dtype=jnp.int32)
    seq_len = jnp.full((BATCH, SEQ), SEQ, dtype=jnp.int32)   # x[1], unused
    mask = jnp.ones((BATCH, SEQ), jnp.int32).at[1, SEQ - 2:].set(0)
    x = jnp.stack([ids, seq_len, mask], axis=0)              # (3, B, S)

    out = model_forward(x, params)
    jax.block_until_ready(out)
    assert out.shape == (BATCH, NUM_CLASSES)
    assert out.dtype == jnp.float32
    assert bool(jnp.all(jnp.isfinite(out)))
    print("KERNEL_OK")
</pallas_src>

<mosaic_0001>
module attributes {stable_mosaic.version = 11 : i64} {
  func.func @_fused_bert_kernel(%arg0: i32, %arg1: memref<1x8x32xf32, #tpu.memory_space<vmem>>, %arg2: memref<1x1x8xf32, #tpu.memory_space<vmem>>, %arg3: memref<1x32xf32, #tpu.memory_space<vmem>>, %arg4: memref<1x32xf32, #tpu.memory_space<vmem>>, %arg5: memref<2x32x96xbf16, #tpu.memory_space<vmem>>, %arg6: memref<2x1x96xf32, #tpu.memory_space<vmem>>, %arg7: memref<2x4x8x32xbf16, #tpu.memory_space<vmem>>, %arg8: memref<2x1x32xf32, #tpu.memory_space<vmem>>, %arg9: memref<2x1x32xf32, #tpu.memory_space<vmem>>, %arg10: memref<2x1x32xf32, #tpu.memory_space<vmem>>, %arg11: memref<2x32x64xbf16, #tpu.memory_space<vmem>>, %arg12: memref<2x1x64xf32, #tpu.memory_space<vmem>>, %arg13: memref<2x64x32xbf16, #tpu.memory_space<vmem>>, %arg14: memref<2x1x32xf32, #tpu.memory_space<vmem>>, %arg15: memref<2x1x32xf32, #tpu.memory_space<vmem>>, %arg16: memref<2x1x32xf32, #tpu.memory_space<vmem>>, %arg17: memref<32x32xbf16, #tpu.memory_space<vmem>>, %arg18: memref<1x32xf32, #tpu.memory_space<vmem>>, %arg19: memref<32x128xbf16, #tpu.memory_space<vmem>>, %arg20: memref<1x128xf32, #tpu.memory_space<vmem>>, %arg21: memref<1x8x128xf32, #tpu.memory_space<vmem>>) attributes {dimension_semantics = [#tpu.dimension_semantics<parallel>], iteration_bounds = array<i64: 2>, scalar_prefetch = 0 : i64, scratch_operands = 0 : i64, tpu.core_type = #tpu.core_type<tc>, window_params = [{transform_indices = @transform_0, window_bounds = array<i64: 1, 8, 32>}, {transform_indices = @transform_1, window_bounds = array<i64: 1, 1, 8>}, {pipeline_mode = #tpu.pipeline_mode<synchronous>, transform_indices = @transform_2, window_bounds = array<i64: 1, 32>}, {pipeline_mode = #tpu.pipeline_mode<synchronous>, transform_indices = @transform_3, window_bounds = array<i64: 1, 32>}, {pipeline_mode = #tpu.pipeline_mode<synchronous>, transform_indices = @transform_4, window_bounds = array<i64: 2, 32, 96>}, {pipeline_mode = #tpu.pipeline_mode<synchronous>, transform_indices = @transform_5, window_bounds = array<i64: 2, 1, 96>}, {pipeline_mode = #tpu.pipeline_mode<synchronous>, transform_indices = @transform_6, window_bounds = array<i64: 2, 4, 8, 32>}, {pipeline_mode = #tpu.pipeline_mode<synchronous>, transform_indices = @transform_7, window_bounds = array<i64: 2, 1, 32>}, {pipeline_mode = #tpu.pipeline_mode<synchronous>, transform_indices = @transform_8, window_bounds = array<i64: 2, 1, 32>}, {pipeline_mode = #tpu.pipeline_mode<synchronous>, transform_indices = @transform_9, window_bounds = array<i64: 2, 1, 32>}, {pipeline_mode = #tpu.pipeline_mode<synchronous>, transform_indices = @transform_10, window_bounds = array<i64: 2, 32, 64>}, {pipeline_mode = #tpu.pipeline_mode<synchronous>, transform_indices = @transform_11, window_bounds = array<i64: 2, 1, 64>}, {pipeline_mode = #tpu.pipeline_mode<synchronous>, transform_indices = @transform_12, window_bounds = array<i64: 2, 64, 32>}, {pipeline_mode = #tpu.pipeline_mode<synchronous>, transform_indices = @transform_13, window_bounds = array<i64: 2, 1, 32>}, {pipeline_mode = #tpu.pipeline_mode<synchronous>, transform_indices = @transform_14, window_bounds = array<i64: 2, 1, 32>}, {pipeline_mode = #tpu.pipeline_mode<synchronous>, transform_indices = @transform_15, window_bounds = array<i64: 2, 1, 32>}, {pipeline_mode = #tpu.pipeline_mode<synchronous>, transform_indices = @transform_16, window_bounds = array<i64: 32, 32>}, {pipeline_mode = #tpu.pipeline_mode<synchronous>, transform_indices = @transform_17, window_bounds = array<i64: 1, 32>}, {pipeline_mode = #tpu.pipeline_mode<synchronous>, transform_indices = @transform_18, window_bounds = array<i64: 32, 128>}, {pipeline_mode = #tpu.pipeline_mode<synchronous>, transform_indices = @transform_19, window_bounds = array<i64: 1, 128>}, {transform_indices = @transform_20, window_bounds = array<i64: 1, 8, 128>}]} {
    %c0 = arith.constant 0 : index
    %c0_0 = arith.constant 0 : index
    %c0_1 = arith.constant 0 : index
    %0 = vector.load %arg2[%c0, %c0_0, %c0_1] : memref<1x1x8xf32, #tpu.memory_space<vmem>>, vector<1x1x8xf32>
    %1 = vector.shape_cast %0 : vector<1x1x8xf32> to vector<1x8xf32>
    %c0_2 = arith.constant 0 : index
    %c0_3 = arith.constant 0 : index
    %c0_4 = arith.constant 0 : index
    %2 = vector.load %arg1[%c0_2, %c0_3, %c0_4] : memref<1x8x32xf32, #tpu.memory_space<vmem>>, vector<1x8x32xf32>
    %3 = vector.shape_cast %2 : vector<1x8x32xf32> to vector<8x32xf32>
    %c0_5 = arith.constant 0 : index
    %c0_6 = arith.constant 0 : index
    %4 = vector.load %arg3[%c0_5, %c0_6] : memref<1x32xf32, #tpu.memory_space<vmem>>, vector<1x32xf32>
    %c0_7 = arith.constant 0 : index
    %c0_8 = arith.constant 0 : index
    %5 = vector.load %arg4[%c0_7, %c0_8] : memref<1x32xf32, #tpu.memory_space<vmem>>, vector<1x32xf32>
    %cst = arith.constant dense<0.000000e+00> : vector<8xf32>
    %6 = vector.multi_reduction <add>, %3, %cst [1] : vector<8x32xf32> to vector<8xf32>
    %7 = vector.shape_cast %6 : vector<8xf32> to vector<8x1xf32>
    %cst_9 = arith.constant 3.200000e+01 : f32
    %8 = vector.broadcast %cst_9 : f32 to vector<8x1xf32>
    %9 = arith.divf %7, %8 : vector<8x1xf32>
    %10 = vector.broadcast %9 : vector<8x1xf32> to vector<8x32xf32>
    %11 = arith.subf %3, %10 : vector<8x32xf32>
    %12 = arith.mulf %11, %11 : vector<8x32xf32>
    %cst_10 = arith.constant dense<0.000000e+00> : vector<8xf32>
    %13 = vector.multi_reduction <add>, %12, %cst_10 [1] : vector<8x32xf32> to vector<8xf32>
    %14 = vector.shape_cast %13 : vector<8xf32> to vector<8x1xf32>
    %cst_11 = arith.constant 3.200000e+01 : f32
    %15 = vector.broadcast %cst_11 : f32 to vector<8x1xf32>
    %16 = arith.divf %14, %15 : vector<8x1xf32>
    %17 = vector.broadcast %9 : vector<8x1xf32> to vector<8x32xf32>
    %18 = arith.subf %3, %17 : vector<8x32xf32>
    %cst_12 = arith.constant 9.99999996E-13 : f32
    %19 = vector.broadcast %cst_12 : f32 to vector<8x1xf32>
    %20 = arith.addf %16, %19 : vector<8x1xf32>
    %21 = math.rsqrt %20 : vector<8x1xf32>
    %22 = vector.broadcast %21 : vector<8x1xf32> to vector<8x32xf32>
    %23 = arith.mulf %18, %22 : vector<8x32xf32>
    %24 = vector.broadcast %4 : vector<1x32xf32> to vector<8x32xf32>
    %25 = arith.mulf %23, %24 : vector<8x32xf32>
    %26 = vector.broadcast %5 : vector<1x32xf32> to vector<8x32xf32>
    %27 = arith.addf %25, %26 : vector<8x32xf32>
    %c0_13 = arith.constant 0 : index
    %c0_14 = arith.constant 0 : index
    %c0_15 = arith.constant 0 : index
    %28 = vector.load %arg5[%c0_13, %c0_14, %c0_15] : memref<2x32x96xbf16, #tpu.memory_space<vmem>>, vector<1x32x96xbf16>
    %29 = vector.shape_cast %28 : vector<1x32x96xbf16> to vector<32x96xbf16>
    %30 = arith.truncf %27 : vector<8x32xf32> to vector<8x32xbf16>
    %cst_16 = arith.constant dense<0.000000e+00> : vector<8x96xf32>
    %31 = tpu.matmul %30, %29, %cst_16 {dimension_numbers = #tpu.dot_dimension_numbers<[1], [0], [0], [1], [0, 0, 1, 1], [], []>} : vector<8x32xbf16>, vector<32x96xbf16>, vector<8x96xf32> -> vector<8x96xf32>
    %c0_17 = arith.constant 0 : index
    %c0_18 = arith.constant 0 : index
    %c0_19 = arith.constant 0 : index
    %32 = vector.load %arg6[%c0_17, %c0_18, %c0_19] : memref<2x1x96xf32, #tpu.memory_space<vmem>>, vector<1x1x96xf32>
    %33 = vector.shape_cast %32 : vector<1x1x96xf32> to vector<1x96xf32>
    %34 = vector.broadcast %33 : vector<1x96xf32> to vector<8x96xf32>
    %35 = arith.addf %31, %34 : vector<8x96xf32>
    %c0_20 = arith.constant 0 : index
    %c0_21 = arith.constant 0 : index
    %c0_22 = arith.constant 0 : index
    %36 = vector.load %arg8[%c0_20, %c0_21, %c0_22] : memref<2x1x32xf32, #tpu.memory_space<vmem>>, vector<1x1x32xf32>
    %37 = vector.shape_cast %36 : vector<1x1x32xf32> to vector<1x32xf32>
    %38 = vector.extract_strided_slice %35 {offsets = [0, 0], sizes = [8, 8], strides = [1, 1]} : vector<8x96xf32> to vector<8x8xf32>
    %39 = vector.extract_strided_slice %35 {offsets = [0, 32], sizes = [8, 8], strides = [1, 1]} : vector<8x96xf32> to vector<8x8xf32>
    %40 = vector.extract_strided_slice %35 {offsets = [0, 64], sizes = [8, 8], strides = [1, 1]} : vector<8x96xf32> to vector<8x8xf32>
    %cst_23 = arith.constant dense<0.000000e+00> : vector<8x8xf32>
    %41 = tpu.matmul %38, %39, %cst_23 {dimension_numbers = #tpu.dot_dimension_numbers<[1], [1], [0], [0], [0, 0, 1, 0], [], []>} : vector<8x8xf32>, vector<8x8xf32>, vector<8x8xf32> -> vector<8x8xf32>
    %cst_24 = arith.constant 0.353553385 : f32
    %42 = vector.broadcast %cst_24 : f32 to vector<8x8xf32>
    %43 = arith.mulf %41, %42 : vector<8x8xf32>
    %44 = vector.broadcast %1 : vector<1x8xf32> to vector<8x8xf32>
    %45 = arith.addf %43, %44 : vector<8x8xf32>
    %cst_25 = arith.constant dense<0xFF800000> : vector<8xf32>
    %46 = vector.multi_reduction <maximumf>, %45, %cst_25 [1] : vector<8x8xf32> to vector<8xf32>
    %47 = vector.shape_cast %46 : vector<8xf32> to vector<8x1xf32>
    %48 = vector.broadcast %47 : vector<8x1xf32> to vector<8x8xf32>
    %49 = arith.subf %45, %48 : vector<8x8xf32>
    %50 = math.exp %49 : vector<8x8xf32>
    %cst_26 = arith.constant dense<0.000000e+00> : vector<8xf32>
    %51 = vector.multi_reduction <add>, %50, %cst_26 [1] : vector<8x8xf32> to vector<8xf32>
    %52 = vector.shape_cast %51 : vector<8xf32> to vector<8x1xf32>
    %53 = tpu.reciprocal %52 {approx = true} : vector<8x1xf32> -> vector<8x1xf32>
    %54 = vector.broadcast %53 : vector<8x1xf32> to vector<8x8xf32>
    %55 = arith.mulf %50, %54 : vector<8x8xf32>
    %cst_27 = arith.constant dense<0.000000e+00> : vector<8x8xf32>
    %56 = tpu.matmul %55, %40, %cst_27 {dimension_numbers = #tpu.dot_dimension_numbers<[1], [0], [0], [1], [0, 0, 1, 1], [], []>} : vector<8x8xf32>, vector<8x8xf32>, vector<8x8xf32> -> vector<8x8xf32>
    %c0_28 = arith.constant 0 : index
    %c0_29 = arith.constant 0 : index
    %c0_30 = arith.constant 0 : index
    %c0_31 = arith.constant 0 : index
    %57 = vector.load %arg7[%c0_28, %c0_29, %c0_30, %c0_31] : memref<2x4x8x32xbf16, #tpu.memory_space<vmem>>, vector<1x1x8x32xbf16>
    %58 = vector.shape_cast %57 : vector<1x1x8x32xbf16> to vector<8x32xbf16>
    %59 = arith.truncf %56 : vector<8x8xf32> to vector<8x8xbf16>
    %cst_32 = arith.constant dense<0.000000e+00> : vector<8x32xf32>
    %60 = tpu.matmul %59, %58, %cst_32 {dimension_numbers = #tpu.dot_dimension_numbers<[1], [0], [0], [1], [0, 0, 1, 1], [], []>} : vector<8x8xbf16>, vector<8x32xbf16>, vector<8x32xf32> -> vector<8x32xf32>
    %61 = vector.broadcast %37 : vector<1x32xf32> to vector<8x32xf32>
    %62 = arith.addf %61, %60 : vector<8x32xf32>
    %63 = vector.extract_strided_slice %35 {offsets = [0, 8], sizes = [8, 8], strides = [1, 1]} : vector<8x96xf32> to vector<8x8xf32>
    %64 = vector.extract_strided_slice %35 {offsets = [0, 40], sizes = [8, 8], strides = [1, 1]} : vector<8x96xf32> to vector<8x8xf32>
    %65 = vector.extract_strided_slice %35 {offsets = [0, 72], sizes = [8, 8], strides = [1, 1]} : vector<8x96xf32> to vector<8x8xf32>
    %cst_33 = arith.constant dense<0.000000e+00> : vector<8x8xf32>
    %66 = tpu.matmul %63, %64, %cst_33 {dimension_numbers = #tpu.dot_dimension_numbers<[1], [1], [0], [0], [0, 0, 1, 0], [], []>} : vector<8x8xf32>, vector<8x8xf32>, vector<8x8xf32> -> vector<8x8xf32>
    %cst_34 = arith.constant 0.353553385 : f32
    %67 = vector.broadcast %cst_34 : f32 to vector<8x8xf32>
    %68 = arith.mulf %66, %67 : vector<8x8xf32>
    %69 = vector.broadcast %1 : vector<1x8xf32> to vector<8x8xf32>
    %70 = arith.addf %68, %69 : vector<8x8xf32>
    %cst_35 = arith.constant dense<0xFF800000> : vector<8xf32>
    %71 = vector.multi_reduction <maximumf>, %70, %cst_35 [1] : vector<8x8xf32> to vector<8xf32>
    %72 = vector.shape_cast %71 : vector<8xf32> to vector<8x1xf32>
    %73 = vector.broadcast %72 : vector<8x1xf32> to vector<8x8xf32>
    %74 = arith.subf %70, %73 : vector<8x8xf32>
    %75 = math.exp %74 : vector<8x8xf32>
    %cst_36 = arith.constant dense<0.000000e+00> : vector<8xf32>
    %76 = vector.multi_reduction <add>, %75, %cst_36 [1] : vector<8x8xf32> to vector<8xf32>
    %77 = vector.shape_cast %76 : vector<8xf32> to vector<8x1xf32>
    %78 = tpu.reciprocal %77 {approx = true} : vector<8x1xf32> -> vector<8x1xf32>
    %79 = vector.broadcast %78 : vector<8x1xf32> to vector<8x8xf32>
    %80 = arith.mulf %75, %79 : vector<8x8xf32>
    %cst_37 = arith.constant dense<0.000000e+00> : vector<8x8xf32>
    %81 = tpu.matmul %80, %65, %cst_37 {dimension_numbers = #tpu.dot_dimension_numbers<[1], [0], [0], [1], [0, 0, 1, 1], [], []>} : vector<8x8xf32>, vector<8x8xf32>, vector<8x8xf32> -> vector<8x8xf32>
    %c0_38 = arith.constant 0 : index
    %c1 = arith.constant 1 : index
    %c0_39 = arith.constant 0 : index
    %c0_40 = arith.constant 0 : index
    %82 = vector.load %arg7[%c0_38, %c1, %c0_39, %c0_40] : memref<2x4x8x32xbf16, #tpu.memory_space<vmem>>, vector<1x1x8x32xbf16>
    %83 = vector.shape_cast %82 : vector<1x1x8x32xbf16> to vector<8x32xbf16>
    %84 = arith.truncf %81 : vector<8x8xf32> to vector<8x8xbf16>
    %cst_41 = arith.constant dense<0.000000e+00> : vector<8x32xf32>
    %85 = tpu.matmul %84, %83, %cst_41 {dimension_numbers = #tpu.dot_dimension_numbers<[1], [0], [0], [1], [0, 0, 1, 1], [], []>} : vector<8x8xbf16>, vector<8x32xbf16>, vector<8x32xf32> -> vector<8x32xf32>
    %86 = arith.addf %62, %85 : vector<8x32xf32>
    %87 = vector.extract_strided_slice %35 {offsets = [0, 16], sizes = [8, 8], strides = [1, 1]} : vector<8x96xf32> to vector<8x8xf32>
    %88 = vector.extract_strided_slice %35 {offsets = [0, 48], sizes = [8, 8], strides = [1, 1]} : vector<8x96xf32> to vector<8x8xf32>
    %89 = vector.extract_strided_slice %35 {offsets = [0, 80], sizes = [8, 8], strides = [1, 1]} : vector<8x96xf32> to vector<8x8xf32>
    %cst_42 = arith.constant dense<0.000000e+00> : vector<8x8xf32>
    %90 = tpu.matmul %87, %88, %cst_42 {dimension_numbers = #tpu.dot_dimension_numbers<[1], [1], [0], [0], [0, 0, 1, 0], [], []>} : vector<8x8xf32>, vector<8x8xf32>, vector<8x8xf32> -> vector<8x8xf32>
    %cst_43 = arith.constant 0.353553385 : f32
    %91 = vector.broadcast %cst_43 : f32 to vector<8x8xf32>
    %92 = arith.mulf %90, %91 : vector<8x8xf32>
    %93 = vector.broadcast %1 : vector<1x8xf32> to vector<8x8xf32>
    %94 = arith.addf %92, %93 : vector<8x8xf32>
    %cst_44 = arith.constant dense<0xFF800000> : vector<8xf32>
    %95 = vector.multi_reduction <maximumf>, %94, %cst_44 [1] : vector<8x8xf32> to vector<8xf32>
    %96 = vector.shape_cast %95 : vector<8xf32> to vector<8x1xf32>
    %97 = vector.broadcast %96 : vector<8x1xf32> to vector<8x8xf32>
    %98 = arith.subf %94, %97 : vector<8x8xf32>
    %99 = math.exp %98 : vector<8x8xf32>
    %cst_45 = arith.constant dense<0.000000e+00> : vector<8xf32>
    %100 = vector.multi_reduction <add>, %99, %cst_45 [1] : vector<8x8xf32> to vector<8xf32>
    %101 = vector.shape_cast %100 : vector<8xf32> to vector<8x1xf32>
    %102 = tpu.reciprocal %101 {approx = true} : vector<8x1xf32> -> vector<8x1xf32>
    %103 = vector.broadcast %102 : vector<8x1xf32> to vector<8x8xf32>
    %104 = arith.mulf %99, %103 : vector<8x8xf32>
    %cst_46 = arith.constant dense<0.000000e+00> : vector<8x8xf32>
    %105 = tpu.matmul %104, %89, %cst_46 {dimension_numbers = #tpu.dot_dimension_numbers<[1], [0], [0], [1], [0, 0, 1, 1], [], []>} : vector<8x8xf32>, vector<8x8xf32>, vector<8x8xf32> -> vector<8x8xf32>
    %c0_47 = arith.constant 0 : index
    %c2 = arith.constant 2 : index
    %c0_48 = arith.constant 0 : index
    %c0_49 = arith.constant 0 : index
    %106 = vector.load %arg7[%c0_47, %c2, %c0_48, %c0_49] : memref<2x4x8x32xbf16, #tpu.memory_space<vmem>>, vector<1x1x8x32xbf16>
    %107 = vector.shape_cast %106 : vector<1x1x8x32xbf16> to vector<8x32xbf16>
    %108 = arith.truncf %105 : vector<8x8xf32> to vector<8x8xbf16>
    %cst_50 = arith.constant dense<0.000000e+00> : vector<8x32xf32>
    %109 = tpu.matmul %108, %107, %cst_50 {dimension_numbers = #tpu.dot_dimension_numbers<[1], [0], [0], [1], [0, 0, 1, 1], [], []>} : vector<8x8xbf16>, vector<8x32xbf16>, vector<8x32xf32> -> vector<8x32xf32>
    %110 = arith.addf %86, %109 : vector<8x32xf32>
    %111 = vector.extract_strided_slice %35 {offsets = [0, 24], sizes = [8, 8], strides = [1, 1]} : vector<8x96xf32> to vector<8x8xf32>
    %112 = vector.extract_strided_slice %35 {offsets = [0, 56], sizes = [8, 8], strides = [1, 1]} : vector<8x96xf32> to vector<8x8xf32>
    %113 = vector.extract_strided_slice %35 {offsets = [0, 88], sizes = [8, 8], strides = [1, 1]} : vector<8x96xf32> to vector<8x8xf32>
    %cst_51 = arith.constant dense<0.000000e+00> : vector<8x8xf32>
    %114 = tpu.matmul %111, %112, %cst_51 {dimension_numbers = #tpu.dot_dimension_numbers<[1], [1], [0], [0], [0, 0, 1, 0], [], []>} : vector<8x8xf32>, vector<8x8xf32>, vector<8x8xf32> -> vector<8x8xf32>
    %cst_52 = arith.constant 0.353553385 : f32
    %115 = vector.broadcast %cst_52 : f32 to vector<8x8xf32>
    %116 = arith.mulf %114, %115 : vector<8x8xf32>
    %117 = vector.broadcast %1 : vector<1x8xf32> to vector<8x8xf32>
    %118 = arith.addf %116, %117 : vector<8x8xf32>
    %cst_53 = arith.constant dense<0xFF800000> : vector<8xf32>
    %119 = vector.multi_reduction <maximumf>, %118, %cst_53 [1] : vector<8x8xf32> to vector<8xf32>
    %120 = vector.shape_cast %119 : vector<8xf32> to vector<8x1xf32>
    %121 = vector.broadcast %120 : vector<8x1xf32> to vector<8x8xf32>
    %122 = arith.subf %118, %121 : vector<8x8xf32>
    %123 = math.exp %122 : vector<8x8xf32>
    %cst_54 = arith.constant dense<0.000000e+00> : vector<8xf32>
    %124 = vector.multi_reduction <add>, %123, %cst_54 [1] : vector<8x8xf32> to vector<8xf32>
    %125 = vector.shape_cast %124 : vector<8xf32> to vector<8x1xf32>
    %126 = tpu.reciprocal %125 {approx = true} : vector<8x1xf32> -> vector<8x1xf32>
    %127 = vector.broadcast %126 : vector<8x1xf32> to vector<8x8xf32>
    %128 = arith.mulf %123, %127 : vector<8x8xf32>
    %cst_55 = arith.constant dense<0.000000e+00> : vector<8x8xf32>
    %129 = tpu.matmul %128, %113, %cst_55 {dimension_numbers = #tpu.dot_dimension_numbers<[1], [0], [0], [1], [0, 0, 1, 1], [], []>} : vector<8x8xf32>, vector<8x8xf32>, vector<8x8xf32> -> vector<8x8xf32>
    %c0_56 = arith.constant 0 : index
    %c3 = arith.constant 3 : index
    %c0_57 = arith.constant 0 : index
    %c0_58 = arith.constant 0 : index
    %130 = vector.load %arg7[%c0_56, %c3, %c0_57, %c0_58] : memref<2x4x8x32xbf16, #tpu.memory_space<vmem>>, vector<1x1x8x32xbf16>
    %131 = vector.shape_cast %130 : vector<1x1x8x32xbf16> to vector<8x32xbf16>
    %132 = arith.truncf %129 : vector<8x8xf32> to vector<8x8xbf16>
    %cst_59 = arith.constant dense<0.000000e+00> : vector<8x32xf32>
    %133 = tpu.matmul %132, %131, %cst_59 {dimension_numbers = #tpu.dot_dimension_numbers<[1], [0], [0], [1], [0, 0, 1, 1], [], []>} : vector<8x8xbf16>, vector<8x32xbf16>, vector<8x32xf32> -> vector<8x32xf32>
    %134 = arith.addf %110, %133 : vector<8x32xf32>
    %135 = arith.addf %134, %27 : vector<8x32xf32>
    %c0_60 = arith.constant 0 : index
    %c0_61 = arith.constant 0 : index
    %c0_62 = arith.constant 0 : index
    %136 = vector.load %arg9[%c0_60, %c0_61, %c0_62] : memref<2x1x32xf32, #tpu.memory_space<vmem>>, vector<1x1x32xf32>
    %137 = vector.shape_cast %136 : vector<1x1x32xf32> to vector<1x32xf32>
    %c0_63 = arith.constant 0 : index
    %c0_64 = arith.constant 0 : index
    %c0_65 = arith.constant 0 : index
    %138 = vector.load %arg10[%c0_63, %c0_64, %c0_65] : memref<2x1x32xf32, #tpu.memory_space<vmem>>, vector<1x1x32xf32>
    %139 = vector.shape_cast %138 : vector<1x1x32xf32> to vector<1x32xf32>
    %cst_66 = arith.constant dense<0.000000e+00> : vector<8xf32>
    %140 = vector.multi_reduction <add>, %135, %cst_66 [1] : vector<8x32xf32> to vector<8xf32>
    %141 = vector.shape_cast %140 : vector<8xf32> to vector<8x1xf32>
    %cst_67 = arith.constant 3.200000e+01 : f32
    %142 = vector.broadcast %cst_67 : f32 to vector<8x1xf32>
    %143 = arith.divf %141, %142 : vector<8x1xf32>
    %144 = vector.broadcast %143 : vector<8x1xf32> to vector<8x32xf32>
    %145 = arith.subf %135, %144 : vector<8x32xf32>
    %146 = arith.mulf %145, %145 : vector<8x32xf32>
    %cst_68 = arith.constant dense<0.000000e+00> : vector<8xf32>
    %147 = vector.multi_reduction <add>, %146, %cst_68 [1] : vector<8x32xf32> to vector<8xf32>
    %148 = vector.shape_cast %147 : vector<8xf32> to vector<8x1xf32>
    %cst_69 = arith.constant 3.200000e+01 : f32
    %149 = vector.broadcast %cst_69 : f32 to vector<8x1xf32>
    %150 = arith.divf %148, %149 : vector<8x1xf32>
    %151 = vector.broadcast %143 : vector<8x1xf32> to vector<8x32xf32>
    %152 = arith.subf %135, %151 : vector<8x32xf32>
    %cst_70 = arith.constant 9.99999996E-13 : f32
    %153 = vector.broadcast %cst_70 : f32 to vector<8x1xf32>
    %154 = arith.addf %150, %153 : vector<8x1xf32>
    %155 = math.rsqrt %154 : vector<8x1xf32>
    %156 = vector.broadcast %155 : vector<8x1xf32> to vector<8x32xf32>
    %157 = arith.mulf %152, %156 : vector<8x32xf32>
    %158 = vector.broadcast %137 : vector<1x32xf32> to vector<8x32xf32>
    %159 = arith.mulf %157, %158 : vector<8x32xf32>
    %160 = vector.broadcast %139 : vector<1x32xf32> to vector<8x32xf32>
    %161 = arith.addf %159, %160 : vector<8x32xf32>
    %c0_71 = arith.constant 0 : index
    %c0_72 = arith.constant 0 : index
    %c0_73 = arith.constant 0 : index
    %162 = vector.load %arg11[%c0_71, %c0_72, %c0_73] : memref<2x32x64xbf16, #tpu.memory_space<vmem>>, vector<1x32x64xbf16>
    %163 = vector.shape_cast %162 : vector<1x32x64xbf16> to vector<32x64xbf16>
    %164 = arith.truncf %161 : vector<8x32xf32> to vector<8x32xbf16>
    %cst_74 = arith.constant dense<0.000000e+00> : vector<8x64xf32>
    %165 = tpu.matmul %164, %163, %cst_74 {dimension_numbers = #tpu.dot_dimension_numbers<[1], [0], [0], [1], [0, 0, 1, 1], [], []>} : vector<8x32xbf16>, vector<32x64xbf16>, vector<8x64xf32> -> vector<8x64xf32>
    %c0_75 = arith.constant 0 : index
    %c0_76 = arith.constant 0 : index
    %c0_77 = arith.constant 0 : index
    %166 = vector.load %arg12[%c0_75, %c0_76, %c0_77] : memref<2x1x64xf32, #tpu.memory_space<vmem>>, vector<1x1x64xf32>
    %167 = vector.shape_cast %166 : vector<1x1x64xf32> to vector<1x64xf32>
    %168 = vector.broadcast %167 : vector<1x64xf32> to vector<8x64xf32>
    %169 = arith.addf %165, %168 : vector<8x64xf32>
    %170 = arith.mulf %169, %169 : vector<8x64xf32>
    %171 = arith.mulf %169, %170 : vector<8x64xf32>
    %cst_78 = arith.constant 4.471500e-02 : f32
    %172 = vector.broadcast %cst_78 : f32 to vector<8x64xf32>
    %173 = arith.mulf %172, %171 : vector<8x64xf32>
    %174 = arith.addf %169, %173 : vector<8x64xf32>
    %cst_79 = arith.constant 0.797884583 : f32
    %175 = vector.broadcast %cst_79 : f32 to vector<8x64xf32>
    %176 = arith.mulf %175, %174 : vector<8x64xf32>
    %177 = math.tanh %176 : vector<8x64xf32>
    %cst_80 = arith.constant 1.000000e+00 : f32
    %178 = vector.broadcast %cst_80 : f32 to vector<8x64xf32>
    %179 = arith.addf %178, %177 : vector<8x64xf32>
    %cst_81 = arith.constant 5.000000e-01 : f32
    %180 = vector.broadcast %cst_81 : f32 to vector<8x64xf32>
    %181 = arith.mulf %180, %179 : vector<8x64xf32>
    %182 = arith.mulf %169, %181 : vector<8x64xf32>
    %c0_82 = arith.constant 0 : index
    %c0_83 = arith.constant 0 : index
    %c0_84 = arith.constant 0 : index
    %183 = vector.load %arg13[%c0_82, %c0_83, %c0_84] : memref<2x64x32xbf16, #tpu.memory_space<vmem>>, vector<1x64x32xbf16>
    %184 = vector.shape_cast %183 : vector<1x64x32xbf16> to vector<64x32xbf16>
    %185 = arith.truncf %182 : vector<8x64xf32> to vector<8x64xbf16>
    %cst_85 = arith.constant dense<0.000000e+00> : vector<8x32xf32>
    %186 = tpu.matmul %185, %184, %cst_85 {dimension_numbers = #tpu.dot_dimension_numbers<[1], [0], [0], [1], [0, 0, 1, 1], [], []>} : vector<8x64xbf16>, vector<64x32xbf16>, vector<8x32xf32> -> vector<8x32xf32>
    %c0_86 = arith.constant 0 : index
    %c0_87 = arith.constant 0 : index
    %c0_88 = arith.constant 0 : index
    %187 = vector.load %arg14[%c0_86, %c0_87, %c0_88] : memref<2x1x32xf32, #tpu.memory_space<vmem>>, vector<1x1x32xf32>
    %188 = vector.shape_cast %187 : vector<1x1x32xf32> to vector<1x32xf32>
    %189 = vector.broadcast %188 : vector<1x32xf32> to vector<8x32xf32>
    %190 = arith.addf %186, %189 : vector<8x32xf32>
    %191 = arith.addf %190, %161 : vector<8x32xf32>
    %c0_89 = arith.constant 0 : index
    %c0_90 = arith.constant 0 : index
    %c0_91 = arith.constant 0 : index
    %192 = vector.load %arg15[%c0_89, %c0_90, %c0_91] : memref<2x1x32xf32, #tpu.memory_space<vmem>>, vector<1x1x32xf32>
    %193 = vector.shape_cast %192 : vector<1x1x32xf32> to vector<1x32xf32>
    %c0_92 = arith.constant 0 : index
    %c0_93 = arith.constant 0 : index
    %c0_94 = arith.constant 0 : index
    %194 = vector.load %arg16[%c0_92, %c0_93, %c0_94] : memref<2x1x32xf32, #tpu.memory_space<vmem>>, vector<1x1x32xf32>
    %195 = vector.shape_cast %194 : vector<1x1x32xf32> to vector<1x32xf32>
    %cst_95 = arith.constant dense<0.000000e+00> : vector<8xf32>
    %196 = vector.multi_reduction <add>, %191, %cst_95 [1] : vector<8x32xf32> to vector<8xf32>
    %197 = vector.shape_cast %196 : vector<8xf32> to vector<8x1xf32>
    %cst_96 = arith.constant 3.200000e+01 : f32
    %198 = vector.broadcast %cst_96 : f32 to vector<8x1xf32>
    %199 = arith.divf %197, %198 : vector<8x1xf32>
    %200 = vector.broadcast %199 : vector<8x1xf32> to vector<8x32xf32>
    %201 = arith.subf %191, %200 : vector<8x32xf32>
    %202 = arith.mulf %201, %201 : vector<8x32xf32>
    %cst_97 = arith.constant dense<0.000000e+00> : vector<8xf32>
    %203 = vector.multi_reduction <add>, %202, %cst_97 [1] : vector<8x32xf32> to vector<8xf32>
    %204 = vector.shape_cast %203 : vector<8xf32> to vector<8x1xf32>
    %cst_98 = arith.constant 3.200000e+01 : f32
    %205 = vector.broadcast %cst_98 : f32 to vector<8x1xf32>
    %206 = arith.divf %204, %205 : vector<8x1xf32>
    %207 = vector.broadcast %199 : vector<8x1xf32> to vector<8x32xf32>
    %208 = arith.subf %191, %207 : vector<8x32xf32>
    %cst_99 = arith.constant 9.99999996E-13 : f32
    %209 = vector.broadcast %cst_99 : f32 to vector<8x1xf32>
    %210 = arith.addf %206, %209 : vector<8x1xf32>
    %211 = math.rsqrt %210 : vector<8x1xf32>
    %212 = vector.broadcast %211 : vector<8x1xf32> to vector<8x32xf32>
    %213 = arith.mulf %208, %212 : vector<8x32xf32>
    %214 = vector.broadcast %193 : vector<1x32xf32> to vector<8x32xf32>
    %215 = arith.mulf %213, %214 : vector<8x32xf32>
    %216 = vector.broadcast %195 : vector<1x32xf32> to vector<8x32xf32>
    %217 = arith.addf %215, %216 : vector<8x32xf32>
    %c1_100 = arith.constant 1 : index
    %c0_101 = arith.constant 0 : index
    %c0_102 = arith.constant 0 : index
    %218 = vector.load %arg5[%c1_100, %c0_101, %c0_102] : memref<2x32x96xbf16, #tpu.memory_space<vmem>>, vector<1x32x96xbf16>
    %219 = vector.shape_cast %218 : vector<1x32x96xbf16> to vector<32x96xbf16>
    %220 = arith.truncf %217 : vector<8x32xf32> to vector<8x32xbf16>
    %cst_103 = arith.constant dense<0.000000e+00> : vector<8x96xf32>
    %221 = tpu.matmul %220, %219, %cst_103 {dimension_numbers = #tpu.dot_dimension_numbers<[1], [0], [0], [1], [0, 0, 1, 1], [], []>} : vector<8x32xbf16>, vector<32x96xbf16>, vector<8x96xf32> -> vector<8x96xf32>
    %c1_104 = arith.constant 1 : index
    %c0_105 = arith.constant 0 : index
    %c0_106 = arith.constant 0 : index
    %222 = vector.load %arg6[%c1_104, %c0_105, %c0_106] : memref<2x1x96xf32, #tpu.memory_space<vmem>>, vector<1x1x96xf32>
    %223 = vector.shape_cast %222 : vector<1x1x96xf32> to vector<1x96xf32>
    %224 = vector.broadcast %223 : vector<1x96xf32> to vector<8x96xf32>
    %225 = arith.addf %221, %224 : vector<8x96xf32>
    %c1_107 = arith.constant 1 : index
    %c0_108 = arith.constant 0 : index
    %c0_109 = arith.constant 0 : index
    %226 = vector.load %arg8[%c1_107, %c0_108, %c0_109] : memref<2x1x32xf32, #tpu.memory_space<vmem>>, vector<1x1x32xf32>
    %227 = vector.shape_cast %226 : vector<1x1x32xf32> to vector<1x32xf32>
    %228 = vector.extract_strided_slice %225 {offsets = [0, 0], sizes = [8, 8], strides = [1, 1]} : vector<8x96xf32> to vector<8x8xf32>
    %229 = vector.extract_strided_slice %225 {offsets = [0, 32], sizes = [8, 8], strides = [1, 1]} : vector<8x96xf32> to vector<8x8xf32>
    %230 = vector.extract_strided_slice %225 {offsets = [0, 64], sizes = [8, 8], strides = [1, 1]} : vector<8x96xf32> to vector<8x8xf32>
    %cst_110 = arith.constant dense<0.000000e+00> : vector<8x8xf32>
    %231 = tpu.matmul %228, %229, %cst_110 {dimension_numbers = #tpu.dot_dimension_numbers<[1], [1], [0], [0], [0, 0, 1, 0], [], []>} : vector<8x8xf32>, vector<8x8xf32>, vector<8x8xf32> -> vector<8x8xf32>
    %cst_111 = arith.constant 0.353553385 : f32
    %232 = vector.broadcast %cst_111 : f32 to vector<8x8xf32>
    %233 = arith.mulf %231, %232 : vector<8x8xf32>
    %234 = vector.broadcast %1 : vector<1x8xf32> to vector<8x8xf32>
    %235 = arith.addf %233, %234 : vector<8x8xf32>
    %cst_112 = arith.constant dense<0xFF800000> : vector<8xf32>
    %236 = vector.multi_reduction <maximumf>, %235, %cst_112 [1] : vector<8x8xf32> to vector<8xf32>
    %237 = vector.shape_cast %236 : vector<8xf32> to vector<8x1xf32>
    %238 = vector.broadcast %237 : vector<8x1xf32> to vector<8x8xf32>
    %239 = arith.subf %235, %238 : vector<8x8xf32>
    %240 = math.exp %239 : vector<8x8xf32>
    %cst_113 = arith.constant dense<0.000000e+00> : vector<8xf32>
    %241 = vector.multi_reduction <add>, %240, %cst_113 [1] : vector<8x8xf32> to vector<8xf32>
    %242 = vector.shape_cast %241 : vector<8xf32> to vector<8x1xf32>
    %243 = tpu.reciprocal %242 {approx = true} : vector<8x1xf32> -> vector<8x1xf32>
    %244 = vector.broadcast %243 : vector<8x1xf32> to vector<8x8xf32>
    %245 = arith.mulf %240, %244 : vector<8x8xf32>
    %cst_114 = arith.constant dense<0.000000e+00> : vector<8x8xf32>
    %246 = tpu.matmul %245, %230, %cst_114 {dimension_numbers = #tpu.dot_dimension_numbers<[1], [0], [0], [1], [0, 0, 1, 1], [], []>} : vector<8x8xf32>, vector<8x8xf32>, vector<8x8xf32> -> vector<8x8xf32>
    %c1_115 = arith.constant 1 : index
    %c0_116 = arith.constant 0 : index
    %c0_117 = arith.constant 0 : index
    %c0_118 = arith.constant 0 : index
    %247 = vector.load %arg7[%c1_115, %c0_116, %c0_117, %c0_118] : memref<2x4x8x32xbf16, #tpu.memory_space<vmem>>, vector<1x1x8x32xbf16>
    %248 = vector.shape_cast %247 : vector<1x1x8x32xbf16> to vector<8x32xbf16>
    %249 = arith.truncf %246 : vector<8x8xf32> to vector<8x8xbf16>
    %cst_119 = arith.constant dense<0.000000e+00> : vector<8x32xf32>
    %250 = tpu.matmul %249, %248, %cst_119 {dimension_numbers = #tpu.dot_dimension_numbers<[1], [0], [0], [1], [0, 0, 1, 1], [], []>} : vector<8x8xbf16>, vector<8x32xbf16>, vector<8x32xf32> -> vector<8x32xf32>
    %251 = vector.broadcast %227 : vector<1x32xf32> to vector<8x32xf32>
    %252 = arith.addf %251, %250 : vector<8x32xf32>
    %253 = vector.extract_strided_slice %225 {offsets = [0, 8], sizes = [8, 8], strides = [1, 1]} : vector<8x96xf32> to vector<8x8xf32>
    %254 = vector.extract_strided_slice %225 {offsets = [0, 40], sizes = [8, 8], strides = [1, 1]} : vector<8x96xf32> to vector<8x8xf32>
    %255 = vector.extract_strided_slice %225 {offsets = [0, 72], sizes = [8, 8], strides = [1, 1]} : vector<8x96xf32> to vector<8x8xf32>
    %cst_120 = arith.constant dense<0.000000e+00> : vector<8x8xf32>
    %256 = tpu.matmul %253, %254, %cst_120 {dimension_numbers = #tpu.dot_dimension_numbers<[1], [1], [0], [0], [0, 0, 1, 0], [], []>} : vector<8x8xf32>, vector<8x8xf32>, vector<8x8xf32> -> vector<8x8xf32>
    %cst_121 = arith.constant 0.353553385 : f32
    %257 = vector.broadcast %cst_121 : f32 to vector<8x8xf32>
    %258 = arith.mulf %256, %257 : vector<8x8xf32>
    %259 = vector.broadcast %1 : vector<1x8xf32> to vector<8x8xf32>
    %260 = arith.addf %258, %259 : vector<8x8xf32>
    %cst_122 = arith.constant dense<0xFF800000> : vector<8xf32>
    %261 = vector.multi_reduction <maximumf>, %260, %cst_122 [1] : vector<8x8xf32> to vector<8xf32>
    %262 = vector.shape_cast %261 : vector<8xf32> to vector<8x1xf32>
    %263 = vector.broadcast %262 : vector<8x1xf32> to vector<8x8xf32>
    %264 = arith.subf %260, %263 : vector<8x8xf32>
    %265 = math.exp %264 : vector<8x8xf32>
    %cst_123 = arith.constant dense<0.000000e+00> : vector<8xf32>
    %266 = vector.multi_reduction <add>, %265, %cst_123 [1] : vector<8x8xf32> to vector<8xf32>
    %267 = vector.shape_cast %266 : vector<8xf32> to vector<8x1xf32>
    %268 = tpu.reciprocal %267 {approx = true} : vector<8x1xf32> -> vector<8x1xf32>
    %269 = vector.broadcast %268 : vector<8x1xf32> to vector<8x8xf32>
    %270 = arith.mulf %265, %269 : vector<8x8xf32>
    %cst_124 = arith.constant dense<0.000000e+00> : vector<8x8xf32>
    %271 = tpu.matmul %270, %255, %cst_124 {dimension_numbers = #tpu.dot_dimension_numbers<[1], [0], [0], [1], [0, 0, 1, 1], [], []>} : vector<8x8xf32>, vector<8x8xf32>, vector<8x8xf32> -> vector<8x8xf32>
    %c1_125 = arith.constant 1 : index
    %c1_126 = arith.constant 1 : index
    %c0_127 = arith.constant 0 : index
    %c0_128 = arith.constant 0 : index
    %272 = vector.load %arg7[%c1_125, %c1_126, %c0_127, %c0_128] : memref<2x4x8x32xbf16, #tpu.memory_space<vmem>>, vector<1x1x8x32xbf16>
    %273 = vector.shape_cast %272 : vector<1x1x8x32xbf16> to vector<8x32xbf16>
    %274 = arith.truncf %271 : vector<8x8xf32> to vector<8x8xbf16>
    %cst_129 = arith.constant dense<0.000000e+00> : vector<8x32xf32>
    %275 = tpu.matmul %274, %273, %cst_129 {dimension_numbers = #tpu.dot_dimension_numbers<[1], [0], [0], [1], [0, 0, 1, 1], [], []>} : vector<8x8xbf16>, vector<8x32xbf16>, vector<8x32xf32> -> vector<8x32xf32>
    %276 = arith.addf %252, %275 : vector<8x32xf32>
    %277 = vector.extract_strided_slice %225 {offsets = [0, 16], sizes = [8, 8], strides = [1, 1]} : vector<8x96xf32> to vector<8x8xf32>
    %278 = vector.extract_strided_slice %225 {offsets = [0, 48], sizes = [8, 8], strides = [1, 1]} : vector<8x96xf32> to vector<8x8xf32>
    %279 = vector.extract_strided_slice %225 {offsets = [0, 80], sizes = [8, 8], strides = [1, 1]} : vector<8x96xf32> to vector<8x8xf32>
    %cst_130 = arith.constant dense<0.000000e+00> : vector<8x8xf32>
    %280 = tpu.matmul %277, %278, %cst_130 {dimension_numbers = #tpu.dot_dimension_numbers<[1], [1], [0], [0], [0, 0, 1, 0], [], []>} : vector<8x8xf32>, vector<8x8xf32>, vector<8x8xf32> -> vector<8x8xf32>
    %cst_131 = arith.constant 0.353553385 : f32
    %281 = vector.broadcast %cst_131 : f32 to vector<8x8xf32>
    %282 = arith.mulf %280, %281 : vector<8x8xf32>
    %283 = vector.broadcast %1 : vector<1x8xf32> to vector<8x8xf32>
    %284 = arith.addf %282, %283 : vector<8x8xf32>
    %cst_132 = arith.constant dense<0xFF800000> : vector<8xf32>
    %285 = vector.multi_reduction <maximumf>, %284, %cst_132 [1] : vector<8x8xf32> to vector<8xf32>
    %286 = vector.shape_cast %285 : vector<8xf32> to vector<8x1xf32>
    %287 = vector.broadcast %286 : vector<8x1xf32> to vector<8x8xf32>
    %288 = arith.subf %284, %287 : vector<8x8xf32>
    %289 = math.exp %288 : vector<8x8xf32>
    %cst_133 = arith.constant dense<0.000000e+00> : vector<8xf32>
    %290 = vector.multi_reduction <add>, %289, %cst_133 [1] : vector<8x8xf32> to vector<8xf32>
    %291 = vector.shape_cast %290 : vector<8xf32> to vector<8x1xf32>
    %292 = tpu.reciprocal %291 {approx = true} : vector<8x1xf32> -> vector<8x1xf32>
    %293 = vector.broadcast %292 : vector<8x1xf32> to vector<8x8xf32>
    %294 = arith.mulf %289, %293 : vector<8x8xf32>
    %cst_134 = arith.constant dense<0.000000e+00> : vector<8x8xf32>
    %295 = tpu.matmul %294, %279, %cst_134 {dimension_numbers = #tpu.dot_dimension_numbers<[1], [0], [0], [1], [0, 0, 1, 1], [], []>} : vector<8x8xf32>, vector<8x8xf32>, vector<8x8xf32> -> vector<8x8xf32>
    %c1_135 = arith.constant 1 : index
    %c2_136 = arith.constant 2 : index
    %c0_137 = arith.constant 0 : index
    %c0_138 = arith.constant 0 : index
    %296 = vector.load %arg7[%c1_135, %c2_136, %c0_137, %c0_138] : memref<2x4x8x32xbf16, #tpu.memory_space<vmem>>, vector<1x1x8x32xbf16>
    %297 = vector.shape_cast %296 : vector<1x1x8x32xbf16> to vector<8x32xbf16>
    %298 = arith.truncf %295 : vector<8x8xf32> to vector<8x8xbf16>
    %cst_139 = arith.constant dense<0.000000e+00> : vector<8x32xf32>
    %299 = tpu.matmul %298, %297, %cst_139 {dimension_numbers = #tpu.dot_dimension_numbers<[1], [0], [0], [1], [0, 0, 1, 1], [], []>} : vector<8x8xbf16>, vector<8x32xbf16>, vector<8x32xf32> -> vector<8x32xf32>
    %300 = arith.addf %276, %299 : vector<8x32xf32>
    %301 = vector.extract_strided_slice %225 {offsets = [0, 24], sizes = [8, 8], strides = [1, 1]} : vector<8x96xf32> to vector<8x8xf32>
    %302 = vector.extract_strided_slice %225 {offsets = [0, 56], sizes = [8, 8], strides = [1, 1]} : vector<8x96xf32> to vector<8x8xf32>
    %303 = vector.extract_strided_slice %225 {offsets = [0, 88], sizes = [8, 8], strides = [1, 1]} : vector<8x96xf32> to vector<8x8xf32>
    %cst_140 = arith.constant dense<0.000000e+00> : vector<8x8xf32>
    %304 = tpu.matmul %301, %302, %cst_140 {dimension_numbers = #tpu.dot_dimension_numbers<[1], [1], [0], [0], [0, 0, 1, 0], [], []>} : vector<8x8xf32>, vector<8x8xf32>, vector<8x8xf32> -> vector<8x8xf32>
    %cst_141 = arith.constant 0.353553385 : f32
    %305 = vector.broadcast %cst_141 : f32 to vector<8x8xf32>
    %306 = arith.mulf %304, %305 : vector<8x8xf32>
    %307 = vector.broadcast %1 : vector<1x8xf32> to vector<8x8xf32>
    %308 = arith.addf %306, %307 : vector<8x8xf32>
    %cst_142 = arith.constant dense<0xFF800000> : vector<8xf32>
    %309 = vector.multi_reduction <maximumf>, %308, %cst_142 [1] : vector<8x8xf32> to vector<8xf32>
    %310 = vector.shape_cast %309 : vector<8xf32> to vector<8x1xf32>
    %311 = vector.broadcast %310 : vector<8x1xf32> to vector<8x8xf32>
    %312 = arith.subf %308, %311 : vector<8x8xf32>
    %313 = math.exp %312 : vector<8x8xf32>
    %cst_143 = arith.constant dense<0.000000e+00> : vector<8xf32>
    %314 = vector.multi_reduction <add>, %313, %cst_143 [1] : vector<8x8xf32> to vector<8xf32>
    %315 = vector.shape_cast %314 : vector<8xf32> to vector<8x1xf32>
    %316 = tpu.reciprocal %315 {approx = true} : vector<8x1xf32> -> vector<8x1xf32>
    %317 = vector.broadcast %316 : vector<8x1xf32> to vector<8x8xf32>
    %318 = arith.mulf %313, %317 : vector<8x8xf32>
    %cst_144 = arith.constant dense<0.000000e+00> : vector<8x8xf32>
    %319 = tpu.matmul %318, %303, %cst_144 {dimension_numbers = #tpu.dot_dimension_numbers<[1], [0], [0], [1], [0, 0, 1, 1], [], []>} : vector<8x8xf32>, vector<8x8xf32>, vector<8x8xf32> -> vector<8x8xf32>
    %c1_145 = arith.constant 1 : index
    %c3_146 = arith.constant 3 : index
    %c0_147 = arith.constant 0 : index
    %c0_148 = arith.constant 0 : index
    %320 = vector.load %arg7[%c1_145, %c3_146, %c0_147, %c0_148] : memref<2x4x8x32xbf16, #tpu.memory_space<vmem>>, vector<1x1x8x32xbf16>
    %321 = vector.shape_cast %320 : vector<1x1x8x32xbf16> to vector<8x32xbf16>
    %322 = arith.truncf %319 : vector<8x8xf32> to vector<8x8xbf16>
    %cst_149 = arith.constant dense<0.000000e+00> : vector<8x32xf32>
    %323 = tpu.matmul %322, %321, %cst_149 {dimension_numbers = #tpu.dot_dimension_numbers<[1], [0], [0], [1], [0, 0, 1, 1], [], []>} : vector<8x8xbf16>, vector<8x32xbf16>, vector<8x32xf32> -> vector<8x32xf32>
    %324 = arith.addf %300, %323 : vector<8x32xf32>
    %325 = arith.addf %324, %217 : vector<8x32xf32>
    %c1_150 = arith.constant 1 : index
    %c0_151 = arith.constant 0 : index
    %c0_152 = arith.constant 0 : index
    %326 = vector.load %arg9[%c1_150, %c0_151, %c0_152] : memref<2x1x32xf32, #tpu.memory_space<vmem>>, vector<1x1x32xf32>
    %327 = vector.shape_cast %326 : vector<1x1x32xf32> to vector<1x32xf32>
    %c1_153 = arith.constant 1 : index
    %c0_154 = arith.constant 0 : index
    %c0_155 = arith.constant 0 : index
    %328 = vector.load %arg10[%c1_153, %c0_154, %c0_155] : memref<2x1x32xf32, #tpu.memory_space<vmem>>, vector<1x1x32xf32>
    %329 = vector.shape_cast %328 : vector<1x1x32xf32> to vector<1x32xf32>
    %cst_156 = arith.constant dense<0.000000e+00> : vector<8xf32>
    %330 = vector.multi_reduction <add>, %325, %cst_156 [1] : vector<8x32xf32> to vector<8xf32>
    %331 = vector.shape_cast %330 : vector<8xf32> to vector<8x1xf32>
    %cst_157 = arith.constant 3.200000e+01 : f32
    %332 = vector.broadcast %cst_157 : f32 to vector<8x1xf32>
    %333 = arith.divf %331, %332 : vector<8x1xf32>
    %334 = vector.broadcast %333 : vector<8x1xf32> to vector<8x32xf32>
    %335 = arith.subf %325, %334 : vector<8x32xf32>
    %336 = arith.mulf %335, %335 : vector<8x32xf32>
    %cst_158 = arith.constant dense<0.000000e+00> : vector<8xf32>
    %337 = vector.multi_reduction <add>, %336, %cst_158 [1] : vector<8x32xf32> to vector<8xf32>
    %338 = vector.shape_cast %337 : vector<8xf32> to vector<8x1xf32>
    %cst_159 = arith.constant 3.200000e+01 : f32
    %339 = vector.broadcast %cst_159 : f32 to vector<8x1xf32>
    %340 = arith.divf %338, %339 : vector<8x1xf32>
    %341 = vector.broadcast %333 : vector<8x1xf32> to vector<8x32xf32>
    %342 = arith.subf %325, %341 : vector<8x32xf32>
    %cst_160 = arith.constant 9.99999996E-13 : f32
    %343 = vector.broadcast %cst_160 : f32 to vector<8x1xf32>
    %344 = arith.addf %340, %343 : vector<8x1xf32>
    %345 = math.rsqrt %344 : vector<8x1xf32>
    %346 = vector.broadcast %345 : vector<8x1xf32> to vector<8x32xf32>
    %347 = arith.mulf %342, %346 : vector<8x32xf32>
    %348 = vector.broadcast %327 : vector<1x32xf32> to vector<8x32xf32>
    %349 = arith.mulf %347, %348 : vector<8x32xf32>
    %350 = vector.broadcast %329 : vector<1x32xf32> to vector<8x32xf32>
    %351 = arith.addf %349, %350 : vector<8x32xf32>
    %c1_161 = arith.constant 1 : index
    %c0_162 = arith.constant 0 : index
    %c0_163 = arith.constant 0 : index
    %352 = vector.load %arg11[%c1_161, %c0_162, %c0_163] : memref<2x32x64xbf16, #tpu.memory_space<vmem>>, vector<1x32x64xbf16>
    %353 = vector.shape_cast %352 : vector<1x32x64xbf16> to vector<32x64xbf16>
    %354 = arith.truncf %351 : vector<8x32xf32> to vector<8x32xbf16>
    %cst_164 = arith.constant dense<0.000000e+00> : vector<8x64xf32>
    %355 = tpu.matmul %354, %353, %cst_164 {dimension_numbers = #tpu.dot_dimension_numbers<[1], [0], [0], [1], [0, 0, 1, 1], [], []>} : vector<8x32xbf16>, vector<32x64xbf16>, vector<8x64xf32> -> vector<8x64xf32>
    %c1_165 = arith.constant 1 : index
    %c0_166 = arith.constant 0 : index
    %c0_167 = arith.constant 0 : index
    %356 = vector.load %arg12[%c1_165, %c0_166, %c0_167] : memref<2x1x64xf32, #tpu.memory_space<vmem>>, vector<1x1x64xf32>
    %357 = vector.shape_cast %356 : vector<1x1x64xf32> to vector<1x64xf32>
    %358 = vector.broadcast %357 : vector<1x64xf32> to vector<8x64xf32>
    %359 = arith.addf %355, %358 : vector<8x64xf32>
    %360 = arith.mulf %359, %359 : vector<8x64xf32>
    %361 = arith.mulf %359, %360 : vector<8x64xf32>
    %cst_168 = arith.constant 4.471500e-02 : f32
    %362 = vector.broadcast %cst_168 : f32 to vector<8x64xf32>
    %363 = arith.mulf %362, %361 : vector<8x64xf32>
    %364 = arith.addf %359, %363 : vector<8x64xf32>
    %cst_169 = arith.constant 0.797884583 : f32
    %365 = vector.broadcast %cst_169 : f32 to vector<8x64xf32>
    %366 = arith.mulf %365, %364 : vector<8x64xf32>
    %367 = math.tanh %366 : vector<8x64xf32>
    %cst_170 = arith.constant 1.000000e+00 : f32
    %368 = vector.broadcast %cst_170 : f32 to vector<8x64xf32>
    %369 = arith.addf %368, %367 : vector<8x64xf32>
    %cst_171 = arith.constant 5.000000e-01 : f32
    %370 = vector.broadcast %cst_171 : f32 to vector<8x64xf32>
    %371 = arith.mulf %370, %369 : vector<8x64xf32>
    %372 = arith.mulf %359, %371 : vector<8x64xf32>
    %c1_172 = arith.constant 1 : index
    %c0_173 = arith.constant 0 : index
    %c0_174 = arith.constant 0 : index
    %373 = vector.load %arg13[%c1_172, %c0_173, %c0_174] : memref<2x64x32xbf16, #tpu.memory_space<vmem>>, vector<1x64x32xbf16>
    %374 = vector.shape_cast %373 : vector<1x64x32xbf16> to vector<64x32xbf16>
    %375 = arith.truncf %372 : vector<8x64xf32> to vector<8x64xbf16>
    %cst_175 = arith.constant dense<0.000000e+00> : vector<8x32xf32>
    %376 = tpu.matmul %375, %374, %cst_175 {dimension_numbers = #tpu.dot_dimension_numbers<[1], [0], [0], [1], [0, 0, 1, 1], [], []>} : vector<8x64xbf16>, vector<64x32xbf16>, vector<8x32xf32> -> vector<8x32xf32>
    %c1_176 = arith.constant 1 : index
    %c0_177 = arith.constant 0 : index
    %c0_178 = arith.constant 0 : index
    %377 = vector.load %arg14[%c1_176, %c0_177, %c0_178] : memref<2x1x32xf32, #tpu.memory_space<vmem>>, vector<1x1x32xf32>
    %378 = vector.shape_cast %377 : vector<1x1x32xf32> to vector<1x32xf32>
    %379 = vector.broadcast %378 : vector<1x32xf32> to vector<8x32xf32>
    %380 = arith.addf %376, %379 : vector<8x32xf32>
    %381 = arith.addf %380, %351 : vector<8x32xf32>
    %c1_179 = arith.constant 1 : index
    %c0_180 = arith.constant 0 : index
    %c0_181 = arith.constant 0 : index
    %382 = vector.load %arg15[%c1_179, %c0_180, %c0_181] : memref<2x1x32xf32, #tpu.memory_space<vmem>>, vector<1x1x32xf32>
    %383 = vector.shape_cast %382 : vector<1x1x32xf32> to vector<1x32xf32>
    %c1_182 = arith.constant 1 : index
    %c0_183 = arith.constant 0 : index
    %c0_184 = arith.constant 0 : index
    %384 = vector.load %arg16[%c1_182, %c0_183, %c0_184] : memref<2x1x32xf32, #tpu.memory_space<vmem>>, vector<1x1x32xf32>
    %385 = vector.shape_cast %384 : vector<1x1x32xf32> to vector<1x32xf32>
    %cst_185 = arith.constant dense<0.000000e+00> : vector<8xf32>
    %386 = vector.multi_reduction <add>, %381, %cst_185 [1] : vector<8x32xf32> to vector<8xf32>
    %387 = vector.shape_cast %386 : vector<8xf32> to vector<8x1xf32>
    %cst_186 = arith.constant 3.200000e+01 : f32
    %388 = vector.broadcast %cst_186 : f32 to vector<8x1xf32>
    %389 = arith.divf %387, %388 : vector<8x1xf32>
    %390 = vector.broadcast %389 : vector<8x1xf32> to vector<8x32xf32>
    %391 = arith.subf %381, %390 : vector<8x32xf32>
    %392 = arith.mulf %391, %391 : vector<8x32xf32>
    %cst_187 = arith.constant dense<0.000000e+00> : vector<8xf32>
    %393 = vector.multi_reduction <add>, %392, %cst_187 [1] : vector<8x32xf32> to vector<8xf32>
    %394 = vector.shape_cast %393 : vector<8xf32> to vector<8x1xf32>
    %cst_188 = arith.constant 3.200000e+01 : f32
    %395 = vector.broadcast %cst_188 : f32 to vector<8x1xf32>
    %396 = arith.divf %394, %395 : vector<8x1xf32>
    %397 = vector.broadcast %389 : vector<8x1xf32> to vector<8x32xf32>
    %398 = arith.subf %381, %397 : vector<8x32xf32>
    %cst_189 = arith.constant 9.99999996E-13 : f32
    %399 = vector.broadcast %cst_189 : f32 to vector<8x1xf32>
    %400 = arith.addf %396, %399 : vector<8x1xf32>
    %401 = math.rsqrt %400 : vector<8x1xf32>
    %402 = vector.broadcast %401 : vector<8x1xf32> to vector<8x32xf32>
    %403 = arith.mulf %398, %402 : vector<8x32xf32>
    %404 = vector.broadcast %383 : vector<1x32xf32> to vector<8x32xf32>
    %405 = arith.mulf %403, %404 : vector<8x32xf32>
    %406 = vector.broadcast %385 : vector<1x32xf32> to vector<8x32xf32>
    %407 = arith.addf %405, %406 : vector<8x32xf32>
    %c0_190 = arith.constant 0 : index
    %c0_191 = arith.constant 0 : index
    %408 = vector.load %arg17[%c0_190, %c0_191] : memref<32x32xbf16, #tpu.memory_space<vmem>>, vector<32x32xbf16>
    %409 = arith.truncf %407 : vector<8x32xf32> to vector<8x32xbf16>
    %cst_192 = arith.constant dense<0.000000e+00> : vector<8x32xf32>
    %410 = tpu.matmul %409, %408, %cst_192 {dimension_numbers = #tpu.dot_dimension_numbers<[1], [0], [0], [1], [0, 0, 1, 1], [], []>} : vector<8x32xbf16>, vector<32x32xbf16>, vector<8x32xf32> -> vector<8x32xf32>
    %c0_193 = arith.constant 0 : index
    %c0_194 = arith.constant 0 : index
    %411 = vector.load %arg18[%c0_193, %c0_194] : memref<1x32xf32, #tpu.memory_space<vmem>>, vector<1x32xf32>
    %412 = vector.broadcast %411 : vector<1x32xf32> to vector<8x32xf32>
    %413 = arith.addf %410, %412 : vector<8x32xf32>
    %414 = math.tanh %413 : vector<8x32xf32>
    %c0_195 = arith.constant 0 : index
    %c0_196 = arith.constant 0 : index
    %415 = vector.load %arg19[%c0_195, %c0_196] : memref<32x128xbf16, #tpu.memory_space<vmem>>, vector<32x128xbf16>
    %416 = arith.truncf %414 : vector<8x32xf32> to vector<8x32xbf16>
    %cst_197 = arith.constant dense<0.000000e+00> : vector<8x128xf32>
    %417 = tpu.matmul %416, %415, %cst_197 {dimension_numbers = #tpu.dot_dimension_numbers<[1], [0], [0], [1], [0, 0, 1, 1], [], []>} : vector<8x32xbf16>, vector<32x128xbf16>, vector<8x128xf32> -> vector<8x128xf32>
    %c0_198 = arith.constant 0 : index
    %c0_199 = arith.constant 0 : index
    %418 = vector.load %arg20[%c0_198, %c0_199] : memref<1x128xf32, #tpu.memory_space<vmem>>, vector<1x128xf32>
    %419 = vector.broadcast %418 : vector<1x128xf32> to vector<8x128xf32>
    %420 = arith.addf %417, %419 : vector<8x128xf32>
    %c0_200 = arith.constant 0 : index
    %c0_201 = arith.constant 0 : index
    %c0_202 = arith.constant 0 : index
    %421 = vector.load %arg21[%c0_200, %c0_201, %c0_202] : memref<1x8x128xf32, #tpu.memory_space<vmem>>, vector<1x8x128xf32>
    %422 = vector.shape_cast %421 : vector<1x8x128xf32> to vector<8x128xf32>
    %423 = vector.shape_cast %420 : vector<8x128xf32> to vector<1x8x128xf32>
    tpu.vector_store %arg21[%c0_200, %c0_201, %c0_202], %423 {strides = array<i32>} : memref<1x8x128xf32, #tpu.memory_space<vmem>>, vector<1x8x128xf32>,
    return
  }
  func.func @transform_0(%arg0: i32) -> (i32, i32, i32) {
    %c0_i32 = arith.constant 0 : i32
    %c0_i32_0 = arith.constant 0 : i32
    %c0_i32_1 = arith.constant 0 : i32
    return %arg0, %c0_i32, %c0_i32_0 : i32, i32, i32
  }
  func.func @transform_1(%arg0: i32) -> (i32, i32, i32) {
    %c0_i32 = arith.constant 0 : i32
    %c0_i32_0 = arith.constant 0 : i32
    %c0_i32_1 = arith.constant 0 : i32
    return %arg0, %c0_i32, %c0_i32_0 : i32, i32, i32
  }
  func.func @transform_2(%arg0: i32) -> (i32, i32) {
    %c0_i32 = arith.constant 0 : i32
    %c0_i32_0 = arith.constant 0 : i32
    %c0_i32_1 = arith.constant 0 : i32
    return %c0_i32, %c0_i32_0 : i32, i32
  }
  func.func @transform_3(%arg0: i32) -> (i32, i32) {
    %c0_i32 = arith.constant 0 : i32
    %c0_i32_0 = arith.constant 0 : i32
    %c0_i32_1 = arith.constant 0 : i32
    return %c0_i32, %c0_i32_0 : i32, i32
  }
  func.func @transform_4(%arg0: i32) -> (i32, i32, i32) {
    %c0_i32 = arith.constant 0 : i32
    %c0_i32_0 = arith.constant 0 : i32
    %c0_i32_1 = arith.constant 0 : i32
    %c0_i32_2 = arith.constant 0 : i32
    return %c0_i32, %c0_i32_0, %c0_i32_1 : i32, i32, i32
  }
  func.func @transform_5(%arg0: i32) -> (i32, i32, i32) {
    %c0_i32 = arith.constant 0 : i32
    %c0_i32_0 = arith.constant 0 : i32
    %c0_i32_1 = arith.constant 0 : i32
    %c0_i32_2 = arith.constant 0 : i32
    return %c0_i32, %c0_i32_0, %c0_i32_1 : i32, i32, i32
  }
  func.func @transform_6(%arg0: i32) -> (i32, i32, i32, i32) {
    %c0_i32 = arith.constant 0 : i32
    %c0_i32_0 = arith.constant 0 : i32
    %c0_i32_1 = arith.constant 0 : i32
    %c0_i32_2 = arith.constant 0 : i32
    %c0_i32_3 = arith.constant 0 : i32
    return %c0_i32, %c0_i32_0, %c0_i32_1, %c0_i32_2 : i32, i32, i32, i32
  }
  func.func @transform_7(%arg0: i32) -> (i32, i32, i32) {
    %c0_i32 = arith.constant 0 : i32
    %c0_i32_0 = arith.constant 0 : i32
    %c0_i32_1 = arith.constant 0 : i32
    %c0_i32_2 = arith.constant 0 : i32
    return %c0_i32, %c0_i32_0, %c0_i32_1 : i32, i32, i32
  }
  func.func @transform_8(%arg0: i32) -> (i32, i32, i32) {
    %c0_i32 = arith.constant 0 : i32
    %c0_i32_0 = arith.constant 0 : i32
    %c0_i32_1 = arith.constant 0 : i32
    %c0_i32_2 = arith.constant 0 : i32
    return %c0_i32, %c0_i32_0, %c0_i32_1 : i32, i32, i32
  }
  func.func @transform_9(%arg0: i32) -> (i32, i32, i32) {
    %c0_i32 = arith.constant 0 : i32
    %c0_i32_0 = arith.constant 0 : i32
    %c0_i32_1 = arith.constant 0 : i32
    %c0_i32_2 = arith.constant 0 : i32
    return %c0_i32, %c0_i32_0, %c0_i32_1 : i32, i32, i32
  }
  func.func @transform_10(%arg0: i32) -> (i32, i32, i32) {
    %c0_i32 = arith.constant 0 : i32
    %c0_i32_0 = arith.constant 0 : i32
    %c0_i32_1 = arith.constant 0 : i32
    %c0_i32_2 = arith.constant 0 : i32
    return %c0_i32, %c0_i32_0, %c0_i32_1 : i32, i32, i32
  }
  func.func @transform_11(%arg0: i32) -> (i32, i32, i32) {
    %c0_i32 = arith.constant 0 : i32
    %c0_i32_0 = arith.constant 0 : i32
    %c0_i32_1 = arith.constant 0 : i32
    %c0_i32_2 = arith.constant 0 : i32
    return %c0_i32, %c0_i32_0, %c0_i32_1 : i32, i32, i32
  }
  func.func @transform_12(%arg0: i32) -> (i32, i32, i32) {
    %c0_i32 = arith.constant 0 : i32
    %c0_i32_0 = arith.constant 0 : i32
    %c0_i32_1 = arith.constant 0 : i32
    %c0_i32_2 = arith.constant 0 : i32
    return %c0_i32, %c0_i32_0, %c0_i32_1 : i32, i32, i32
  }
  func.func @transform_13(%arg0: i32) -> (i32, i32, i32) {
    %c0_i32 = arith.constant 0 : i32
    %c0_i32_0 = arith.constant 0 : i32
    %c0_i32_1 = arith.constant 0 : i32
    %c0_i32_2 = arith.constant 0 : i32
    return %c0_i32, %c0_i32_0, %c0_i32_1 : i32, i32, i32
  }
  func.func @transform_14(%arg0: i32) -> (i32, i32, i32) {
    %c0_i32 = arith.constant 0 : i32
    %c0_i32_0 = arith.constant 0 : i32
    %c0_i32_1 = arith.constant 0 : i32
    %c0_i32_2 = arith.constant 0 : i32
    return %c0_i32, %c0_i32_0, %c0_i32_1 : i32, i32, i32
  }
  func.func @transform_15(%arg0: i32) -> (i32, i32, i32) {
    %c0_i32 = arith.constant 0 : i32
    %c0_i32_0 = arith.constant 0 : i32
    %c0_i32_1 = arith.constant 0 : i32
    %c0_i32_2 = arith.constant 0 : i32
    return %c0_i32, %c0_i32_0, %c0_i32_1 : i32, i32, i32
  }
  func.func @transform_16(%arg0: i32) -> (i32, i32) {
    %c0_i32 = arith.constant 0 : i32
    %c0_i32_0 = arith.constant 0 : i32
    %c0_i32_1 = arith.constant 0 : i32
    return %c0_i32, %c0_i32_0 : i32, i32
  }
  func.func @transform_17(%arg0: i32) -> (i32, i32) {
    %c0_i32 = arith.constant 0 : i32
    %c0_i32_0 = arith.constant 0 : i32
    %c0_i32_1 = arith.constant 0 : i32
    return %c0_i32, %c0_i32_0 : i32, i32
  }
  func.func @transform_18(%arg0: i32) -> (i32, i32) {
    %c0_i32 = arith.constant 0 : i32
    %c0_i32_0 = arith.constant 0 : i32
    %c0_i32_1 = arith.constant 0 : i32
    return %c0_i32, %c0_i32_0 : i32, i32
  }
  func.func @transform_19(%arg0: i32) -> (i32, i32) {
    %c0_i32 = arith.constant 0 : i32
    %c0_i32_0 = arith.constant 0 : i32
    %c0_i32_1 = arith.constant 0 : i32
    return %c0_i32, %c0_i32_0 : i32, i32
  }
  func.func @transform_20(%arg0: i32) -> (i32, i32, i32) {
    %c0_i32 = arith.constant 0 : i32
    %c0_i32_0 = arith.constant 0 : i32
    %c0_i32_1 = arith.constant 0 : i32
    return %arg0, %c0_i32, %c0_i32_0 : i32, i32, i32
  }
}

</mosaic_0001>

<llo_original>
// kernel: model_forward.1
$region0: #{model_forward.1}
  #allocation0 [shape = 'u32[]', space=smem, size = 0x4, offset = 0x4, fixed_abs, tag = 'smem constant byte address 0x4 - core index']
  #allocation1 [shape = 'u32[144,128]{1,0:T(1,128)}', space=vmem, size = 0x12000, scoped, tag = 'internal scratch']
  %s0 = inlined_call_operand.vmem [shape: f32[2,8,32], index: 0, kind: input, shape index: {}]
  %s1 = inlined_call_operand.vmem [shape: f32[2,1,8], index: 1, kind: input, shape index: {}]
  %s2 = inlined_call_operand.vmem [shape: f32[1,32], index: 2, kind: input, shape index: {}]
  %s3 = inlined_call_operand.vmem [shape: f32[1,32], index: 3, kind: input, shape index: {}]
  %s4 = inlined_call_operand.vmem [shape: bf16[2,32,96], index: 4, kind: input, shape index: {}]
  %s5 = inlined_call_operand.vmem [shape: f32[2,1,96], index: 5, kind: input, shape index: {}]
  %s6 = inlined_call_operand.vmem [shape: bf16[2,4,8,32], index: 6, kind: input, shape index: {}]
  %s7 = inlined_call_operand.vmem [shape: f32[2,1,32], index: 7, kind: input, shape index: {}]
  %s8 = inlined_call_operand.vmem [shape: f32[2,1,32], index: 8, kind: input, shape index: {}]
  %s9 = inlined_call_operand.vmem [shape: f32[2,1,32], index: 9, kind: input, shape index: {}]
  %s10 = inlined_call_operand.vmem [shape: bf16[2,32,64], index: 10, kind: input, shape index: {}]
  %s11 = inlined_call_operand.vmem [shape: f32[2,1,64], index: 11, kind: input, shape index: {}]
  %s12 = inlined_call_operand.vmem [shape: bf16[2,64,32], index: 12, kind: input, shape index: {}]
  %s13 = inlined_call_operand.vmem [shape: f32[2,1,32], index: 13, kind: input, shape index: {}]
  %s14 = inlined_call_operand.vmem [shape: f32[2,1,32], index: 14, kind: input, shape index: {}]
  %s15 = inlined_call_operand.vmem [shape: f32[2,1,32], index: 15, kind: input, shape index: {}]
  %s16 = inlined_call_operand.vmem [shape: bf16[32,32], index: 16, kind: input, shape index: {}]
  %s17 = inlined_call_operand.vmem [shape: f32[1,32], index: 17, kind: input, shape index: {}]
  %s18 = inlined_call_operand.vmem [shape: bf16[32,128], index: 18, kind: input, shape index: {}]
  %s19 = inlined_call_operand.vmem [shape: f32[1,128], index: 19, kind: input, shape index: {}]
  %s20 = inlined_call_operand.vmem [shape: f32[2,8,128], index: 20, kind: output, shape index: {}]
  %s21 = sld [smem:[#allocation0]]
  $region113: #{model_forward.1} parent=0
    _
  %s23 = ssub.s32 1, %s21
  %s24 = scalar_select 0, %s23, %s21
  loop: start=0, step=1, limit=4
  $region2: #{model_forward.1} parent=0 // loop_pre_header
    _
  $region3: #{model_forward.1} parent=0 // loop_header
    %s26 = sphi 0, %s30
    %p27 = scmp.ge.s32.totalorder %s26, 4
    %s36 = sphi 0, %s38
    %s39 = sphi 0, %s36
    %s40 = sphi 0, %s39
    %s56 = sphi 0, %s40
    %s62 = sphi 0, %s64
    %s65 = sphi 0, %s62
    %s66 = sphi 0, %s65
    %s82 = sphi 0, %s66
    %s86 = sphi 0, %s86
    %s88 = sphi 0, %s86
    %s89 = sphi 0, %s88
    %s103 = sphi 0, %s89
    %s107 = sphi 0, %s107
    %s109 = sphi 0, %s107
    %s110 = sphi 0, %s109
    %s124 = sphi 0, %s110
    %s128 = sphi 0, %s128
    %s130 = sphi 0, %s128
    %s131 = sphi 0, %s130
    %s145 = sphi 0, %s131
    %s149 = sphi 0, %s149
    %s151 = sphi 0, %s149
    %s152 = sphi 0, %s151
    %s166 = sphi 0, %s152
    %s170 = sphi 0, %s170
    %s172 = sphi 0, %s170
    %s173 = sphi 0, %s172
    %s187 = sphi 0, %s173
    %s191 = sphi 0, %s191
    %s193 = sphi 0, %s191
    %s194 = sphi 0, %s193
    %s208 = sphi 0, %s194
    %s212 = sphi 0, %s212
    %s214 = sphi 0, %s212
    %s215 = sphi 0, %s214
    %s229 = sphi 0, %s215
    %s233 = sphi 0, %s233
    %s235 = sphi 0, %s233
    %s236 = sphi 0, %s235
    %s250 = sphi 0, %s236
    %s254 = sphi 0, %s254
    %s256 = sphi 0, %s254
    %s257 = sphi 0, %s256
    %s271 = sphi 0, %s257
    %s275 = sphi 0, %s275
    %s277 = sphi 0, %s275
    %s278 = sphi 0, %s277
    %s292 = sphi 0, %s278
    %s296 = sphi 0, %s296
    %s298 = sphi 0, %s296
    %s299 = sphi 0, %s298
    %s313 = sphi 0, %s299
    %s317 = sphi 0, %s317
    %s319 = sphi 0, %s317
    %s320 = sphi 0, %s319
    %s334 = sphi 0, %s320
    %s338 = sphi 0, %s338
    %s340 = sphi 0, %s338
    %s341 = sphi 0, %s340
    %s355 = sphi 0, %s341
    %s359 = sphi 0, %s359
    %s361 = sphi 0, %s359
    %s362 = sphi 0, %s361
    %s376 = sphi 0, %s362
    %s380 = sphi 0, %s380
    %s382 = sphi 0, %s380
    %s383 = sphi 0, %s382
    %s397 = sphi 0, %s383
    %s401 = sphi 0, %s401
    %s403 = sphi 0, %s401
    %s404 = sphi 0, %s403
    %s418 = sphi 0, %s404
    %s422 = sphi 0, %s422
    %s424 = sphi 0, %s422
    %s425 = sphi 0, %s424
    %s439 = sphi 0, %s425
    %s443 = sphi 0, %s443
    %s445 = sphi 0, %s443
    %s446 = sphi 0, %s445
    %s460 = sphi 0, %s446
    %s466 = sphi 0, %s468
    %s469 = sphi 0, %s466
    %s470 = sphi 0, %s469
    %s486 = sphi 0, %s470
  $region4: #{model_forward.1} parent=0 // loop_header_branch
    %29 = sbr.rel (%p27) target = $region8
  $region5: #{model_forward.1} parent=0 // loop_body
    %s31 = ssub.s32 %s26, 1
    %s32 = ssub.s32 %s26, 2
    %s33 = sadd.s32 %s26, 1
    %s34 = ssub.s32 %s26, %s33
    %p35 = scmp.eq.s32.totalorder %s34, 0
    %s37 = sadd.s32 %s36, 1
    %s38 = scalar_select %p35, %s36, %s37
    %p41 = pneg %p35
    %p42 = scmp.eq.s32.totalorder %s26, 1
    %p43 = por %p41, %p42
    %p44 = scmp.ne.s32.totalorder %s36, %s39
    %p45 = scmp.eq.s32.totalorder %s26, 0
    %p46 = por %p44, %p45
    %p47 = scmp.ne.s32.totalorder %s36, %s39
    %p48 = scmp.eq.s32.totalorder %s31, 1
    %p49 = por %p47, %p48
    %p50 = scmp.ne.s32.totalorder %s39, %s40
    %p51 = scmp.eq.s32.totalorder %s31, 0
    %p52 = por %p50, %p51
    %p53 = scmp.ne.s32.totalorder %s39, %s40
    %p54 = scmp.eq.s32.totalorder %s32, 1
    %p55 = por %p53, %p54
    %p57 = scmp.ne.s32.totalorder %s40, %s56
    %p58 = scmp.eq.s32.totalorder %s32, 0
    %p59 = por %p57, %p58
    %s60 = ssub.s32 %s26, %s33
    %p61 = scmp.eq.s32.totalorder %s60, 0
    %s63 = sadd.s32 %s62, 1
    %s64 = scalar_select %p61, %s62, %s63
    %p67 = pneg %p61
    %p68 = scmp.eq.s32.totalorder %s26, 1
    %p69 = por %p67, %p68
    %p70 = scmp.ne.s32.totalorder %s62, %s65
    %p71 = scmp.eq.s32.totalorder %s26, 0
    %p72 = por %p70, %p71
    %p73 = scmp.ne.s32.totalorder %s62, %s65
    %p74 = scmp.eq.s32.totalorder %s31, 1
    %p75 = por %p73, %p74
    %p76 = scmp.ne.s32.totalorder %s65, %s66
    %p77 = scmp.eq.s32.totalorder %s31, 0
    %p78 = por %p76, %p77
    %p79 = scmp.ne.s32.totalorder %s65, %s66
    %p80 = scmp.eq.s32.totalorder %s32, 1
    %p81 = por %p79, %p80
    %p83 = scmp.ne.s32.totalorder %s66, %s82
    %p84 = scmp.eq.s32.totalorder %s32, 0
    %p85 = por %p83, %p84
    %s87 = sadd.s32 %s86, 1
    %p90 = scmp.eq.s32.totalorder %s26, 1
    %p91 = scmp.ne.s32.totalorder %s86, %s88
    %p92 = scmp.eq.s32.totalorder %s26, 0
    %p93 = por %p91, %p92
    %p94 = scmp.ne.s32.totalorder %s86, %s88
    %p95 = scmp.eq.s32.totalorder %s31, 1
    %p96 = por %p94, %p95
    %p97 = scmp.ne.s32.totalorder %s88, %s89
    %p98 = scmp.eq.s32.totalorder %s31, 0
    %p99 = por %p97, %p98
    %p100 = scmp.ne.s32.totalorder %s88, %s89
    %p101 = scmp.eq.s32.totalorder %s32, 1
    %p102 = por %p100, %p101
    %p104 = scmp.ne.s32.totalorder %s89, %s103
    %p105 = scmp.eq.s32.totalorder %s32, 0
    %p106 = por %p104, %p105
    %s108 = sadd.s32 %s107, 1
    %p111 = scmp.eq.s32.totalorder %s26, 1
    %p112 = scmp.ne.s32.totalorder %s107, %s109
    %p113 = scmp.eq.s32.totalorder %s26, 0
    %p114 = por %p112, %p113
    %p115 = scmp.ne.s32.totalorder %s107, %s109
    %p116 = scmp.eq.s32.totalorder %s31, 1
    %p117 = por %p115, %p116
    %p118 = scmp.ne.s32.totalorder %s109, %s110
    %p119 = scmp.eq.s32.totalorder %s31, 0
    %p120 = por %p118, %p119
    %p121 = scmp.ne.s32.totalorder %s109, %s110
    %p122 = scmp.eq.s32.totalorder %s32, 1
    %p123 = por %p121, %p122
    %p125 = scmp.ne.s32.totalorder %s110, %s124
    %p126 = scmp.eq.s32.totalorder %s32, 0
    %p127 = por %p125, %p126
    %s129 = sadd.s32 %s128, 1
    %p132 = scmp.eq.s32.totalorder %s26, 1
    %p133 = scmp.ne.s32.totalorder %s128, %s130
    %p134 = scmp.eq.s32.totalorder %s26, 0
    %p135 = por %p133, %p134
    %p136 = scmp.ne.s32.totalorder %s128, %s130
    %p137 = scmp.eq.s32.totalorder %s31, 1
    %p138 = por %p136, %p137
    %p139 = scmp.ne.s32.totalorder %s130, %s131
    %p140 = scmp.eq.s32.totalorder %s31, 0
    %p141 = por %p139, %p140
    %p142 = scmp.ne.s32.totalorder %s130, %s131
    %p143 = scmp.eq.s32.totalorder %s32, 1
    %p144 = por %p142, %p143
    %p146 = scmp.ne.s32.totalorder %s131, %s145
    %p147 = scmp.eq.s32.totalorder %s32, 0
    %p148 = por %p146, %p147
    %s150 = sadd.s32 %s149, 1
    %p153 = scmp.eq.s32.totalorder %s26, 1
    %p154 = scmp.ne.s32.totalorder %s149, %s151
    %p155 = scmp.eq.s32.totalorder %s26, 0
    %p156 = por %p154, %p155
    %p157 = scmp.ne.s32.totalorder %s149, %s151
    %p158 = scmp.eq.s32.totalorder %s31, 1
    %p159 = por %p157, %p158
    %p160 = scmp.ne.s32.totalorder %s151, %s152
    %p161 = scmp.eq.s32.totalorder %s31, 0
    %p162 = por %p160, %p161
    %p163 = scmp.ne.s32.totalorder %s151, %s152
    %p164 = scmp.eq.s32.totalorder %s32, 1
    %p165 = por %p163, %p164
    %p167 = scmp.ne.s32.totalorder %s152, %s166
    %p168 = scmp.eq.s32.totalorder %s32, 0
    %p169 = por %p167, %p168
    %s171 = sadd.s32 %s170, 1
    %p174 = scmp.eq.s32.totalorder %s26, 1
    %p175 = scmp.ne.s32.totalorder %s170, %s172
    %p176 = scmp.eq.s32.totalorder %s26, 0
    %p177 = por %p175, %p176
    %p178 = scmp.ne.s32.totalorder %s170, %s172
    %p179 = scmp.eq.s32.totalorder %s31, 1
    %p180 = por %p178, %p179
    %p181 = scmp.ne.s32.totalorder %s172, %s173
    %p182 = scmp.eq.s32.totalorder %s31, 0
    %p183 = por %p181, %p182
    %p184 = scmp.ne.s32.totalorder %s172, %s173
    %p185 = scmp.eq.s32.totalorder %s32, 1
    %p186 = por %p184, %p185
    %p188 = scmp.ne.s32.totalorder %s173, %s187
    %p189 = scmp.eq.s32.totalorder %s32, 0
    %p190 = por %p188, %p189
    %s192 = sadd.s32 %s191, 1
    %p195 = scmp.eq.s32.totalorder %s26, 1
    %p196 = scmp.ne.s32.totalorder %s191, %s193
    %p197 = scmp.eq.s32.totalorder %s26, 0
    %p198 = por %p196, %p197
    %p199 = scmp.ne.s32.totalorder %s191, %s193
    %p200 = scmp.eq.s32.totalorder %s31, 1
    %p201 = por %p199, %p200
    %p202 = scmp.ne.s32.totalorder %s193, %s194
    %p203 = scmp.eq.s32.totalorder %s31, 0
    %p204 = por %p202, %p203
    %p205 = scmp.ne.s32.totalorder %s193, %s194
    %p206 = scmp.eq.s32.totalorder %s32, 1
    %p207 = por %p205, %p206
    %p209 = scmp.ne.s32.totalorder %s194, %s208
    %p210 = scmp.eq.s32.totalorder %s32, 0
    %p211 = por %p209, %p210
    %s213 = sadd.s32 %s212, 1
    %p216 = scmp.eq.s32.totalorder %s26, 1
    %p217 = scmp.ne.s32.totalorder %s212, %s214
    %p218 = scmp.eq.s32.totalorder %s26, 0
    %p219 = por %p217, %p218
    %p220 = scmp.ne.s32.totalorder %s212, %s214
    %p221 = scmp.eq.s32.totalorder %s31, 1
    %p222 = por %p220, %p221
    %p223 = scmp.ne.s32.totalorder %s214, %s215
    %p224 = scmp.eq.s32.totalorder %s31, 0
    %p225 = por %p223, %p224
    %p226 = scmp.ne.s32.totalorder %s214, %s215
    %p227 = scmp.eq.s32.totalorder %s32, 1
    %p228 = por %p226, %p227
    %p230 = scmp.ne.s32.totalorder %s215, %s229
    %p231 = scmp.eq.s32.totalorder %s32, 0
    %p232 = por %p230, %p231
    %s234 = sadd.s32 %s233, 1
    %p237 = scmp.eq.s32.totalorder %s26, 1
    %p238 = scmp.ne.s32.totalorder %s233, %s235
    %p239 = scmp.eq.s32.totalorder %s26, 0
    %p240 = por %p238, %p239
    %p241 = scmp.ne.s32.totalorder %s233, %s235
    %p242 = scmp.eq.s32.totalorder %s31, 1
    %p243 = por %p241, %p242
    %p244 = scmp.ne.s32.totalorder %s235, %s236
    %p245 = scmp.eq.s32.totalorder %s31, 0
    %p246 = por %p244, %p245
    %p247 = scmp.ne.s32.totalorder %s235, %s236
    %p248 = scmp.eq.s32.totalorder %s32, 1
    %p249 = por %p247, %p248
    %p251 = scmp.ne.s32.totalorder %s236, %s250
    %p252 = scmp.eq.s32.totalorder %s32, 0
    %p253 = por %p251, %p252
    %s255 = sadd.s32 %s254, 1
    %p258 = scmp.eq.s32.totalorder %s26, 1
    %p259 = scmp.ne.s32.totalorder %s254, %s256
    %p260 = scmp.eq.s32.totalorder %s26, 0
    %p261 = por %p259, %p260
    %p262 = scmp.ne.s32.totalorder %s254, %s256
    %p263 = scmp.eq.s32.totalorder %s31, 1
    %p264 = por %p262, %p263
    %p265 = scmp.ne.s32.totalorder %s256, %s257
    %p266 = scmp.eq.s32.totalorder %s31, 0
    %p267 = por %p265, %p266
    %p268 = scmp.ne.s32.totalorder %s256, %s257
    %p269 = scmp.eq.s32.totalorder %s32, 1
    %p270 = por %p268, %p269
    %p272 = scmp.ne.s32.totalorder %s257, %s271
    %p273 = scmp.eq.s32.totalorder %s32, 0
    %p274 = por %p272, %p273
    %s276 = sadd.s32 %s275, 1
    %p279 = scmp.eq.s32.totalorder %s26, 1
    %p280 = scmp.ne.s32.totalorder %s275, %s277
    %p281 = scmp.eq.s32.totalorder %s26, 0
    %p282 = por %p280, %p281
    %p283 = scmp.ne.s32.totalorder %s275, %s277
    %p284 = scmp.eq.s32.totalorder %s31, 1
    %p285 = por %p283, %p284
    %p286 = scmp.ne.s32.totalorder %s277, %s278
    %p287 = scmp.eq.s32.totalorder %s31, 0
    %p288 = por %p286, %p287
    %p289 = scmp.ne.s32.totalorder %s277, %s278
    %p290 = scmp.eq.s32.totalorder %s32, 1
    %p291 = por %p289, %p290
    %p293 = scmp.ne.s32.totalorder %s278, %s292
    %p294 = scmp.eq.s32.totalorder %s32, 0
    %p295 = por %p293, %p294
    %s297 = sadd.s32 %s296, 1
    %p300 = scmp.eq.s32.totalorder %s26, 1
    %p301 = scmp.ne.s32.totalorder %s296, %s298
    %p302 = scmp.eq.s32.totalorder %s26, 0
    %p303 = por %p301, %p302
    %p304 = scmp.ne.s32.totalorder %s296, %s298
    %p305 = scmp.eq.s32.totalorder %s31, 1
    %p306 = por %p304, %p305
    %p307 = scmp.ne.s32.totalorder %s298, %s299
    %p308 = scmp.eq.s32.totalorder %s31, 0
    %p309 = por %p307, %p308
    %p310 = scmp.ne.s32.totalorder %s298, %s299
    %p311 = scmp.eq.s32.totalorder %s32, 1
    %p312 = por %p310, %p311
    %p314 = scmp.ne.s32.totalorder %s299, %s313
    %p315 = scmp.eq.s32.totalorder %s32, 0
    %p316 = por %p314, %p315
    %s318 = sadd.s32 %s317, 1
    %p321 = scmp.eq.s32.totalorder %s26, 1
    %p322 = scmp.ne.s32.totalorder %s317, %s319
    %p323 = scmp.eq.s32.totalorder %s26, 0
    %p324 = por %p322, %p323
    %p325 = scmp.ne.s32.totalorder %s317, %s319
    %p326 = scmp.eq.s32.totalorder %s31, 1
    %p327 = por %p325, %p326
    %p328 = scmp.ne.s32.totalorder %s319, %s320
    %p329 = scmp.eq.s32.totalorder %s31, 0
    %p330 = por %p328, %p329
    %p331 = scmp.ne.s32.totalorder %s319, %s320
    %p332 = scmp.eq.s32.totalorder %s32, 1
    %p333 = por %p331, %p332
    %p335 = scmp.ne.s32.totalorder %s320, %s334
    %p336 = scmp.eq.s32.totalorder %s32, 0
    %p337 = por %p335, %p336
    %s339 = sadd.s32 %s338, 1
    %p342 = scmp.eq.s32.totalorder %s26, 1
    %p343 = scmp.ne.s32.totalorder %s338, %s340
    %p344 = scmp.eq.s32.totalorder %s26, 0
    %p345 = por %p343, %p344
    %p346 = scmp.ne.s32.totalorder %s338, %s340
    %p347 = scmp.eq.s32.totalorder %s31, 1
    %p348 = por %p346, %p347
    %p349 = scmp.ne.s32.totalorder %s340, %s341
    %p350 = scmp.eq.s32.totalorder %s31, 0
    %p351 = por %p349, %p350
    %p352 = scmp.ne.s32.totalorder %s340, %s341
    %p353 = scmp.eq.s32.totalorder %s32, 1
    %p354 = por %p352, %p353
    %p356 = scmp.ne.s32.totalorder %s341, %s355
    %p357 = scmp.eq.s32.totalorder %s32, 0
    %p358 = por %p356, %p357
    %s360 = sadd.s32 %s359, 1
    %p363 = scmp.eq.s32.totalorder %s26, 1
    %p364 = scmp.ne.s32.totalorder %s359, %s361
    %p365 = scmp.eq.s32.totalorder %s26, 0
    %p366 = por %p364, %p365
    %p367 = scmp.ne.s32.totalorder %s359, %s361
    %p368 = scmp.eq.s32.totalorder %s31, 1
    %p369 = por %p367, %p368
    %p370 = scmp.ne.s32.totalorder %s361, %s362
    %p371 = scmp.eq.s32.totalorder %s31, 0
    %p372 = por %p370, %p371
    %p373 = scmp.ne.s32.totalorder %s361, %s362
    %p374 = scmp.eq.s32.totalorder %s32, 1
    %p375 = por %p373, %p374
    %p377 = scmp.ne.s32.totalorder %s362, %s376
    %p378 = scmp.eq.s32.totalorder %s32, 0
    %p379 = por %p377, %p378
    %s381 = sadd.s32 %s380, 1
    %p384 = scmp.eq.s32.totalorder %s26, 1
    %p385 = scmp.ne.s32.totalorder %s380, %s382
    %p386 = scmp.eq.s32.totalorder %s26, 0
    %p387 = por %p385, %p386
    %p388 = scmp.ne.s32.totalorder %s380, %s382
    %p389 = scmp.eq.s32.totalorder %s31, 1
    %p390 = por %p388, %p389
    %p391 = scmp.ne.s32.totalorder %s382, %s383
    %p392 = scmp.eq.s32.totalorder %s31, 0
    %p393 = por %p391, %p392
    %p394 = scmp.ne.s32.totalorder %s382, %s383
    %p395 = scmp.eq.s32.totalorder %s32, 1
    %p396 = por %p394, %p395
    %p398 = scmp.ne.s32.totalorder %s383, %s397
    %p399 = scmp.eq.s32.totalorder %s32, 0
    %p400 = por %p398, %p399
    %s402 = sadd.s32 %s401, 1
    %p405 = scmp.eq.s32.totalorder %s26, 1
    %p406 = scmp.ne.s32.totalorder %s401, %s403
    %p407 = scmp.eq.s32.totalorder %s26, 0
    %p408 = por %p406, %p407
    %p409 = scmp.ne.s32.totalorder %s401, %s403
    %p410 = scmp.eq.s32.totalorder %s31, 1
    %p411 = por %p409, %p410
    %p412 = scmp.ne.s32.totalorder %s403, %s404
    %p413 = scmp.eq.s32.totalorder %s31, 0
    %p414 = por %p412, %p413
    %p415 = scmp.ne.s32.totalorder %s403, %s404
    %p416 = scmp.eq.s32.totalorder %s32, 1
    %p417 = por %p415, %p416
    %p419 = scmp.ne.s32.totalorder %s404, %s418
    %p420 = scmp.eq.s32.totalorder %s32, 0
    %p421 = por %p419, %p420
    %s423 = sadd.s32 %s422, 1
    %p426 = scmp.eq.s32.totalorder %s26, 1
    %p427 = scmp.ne.s32.totalorder %s422, %s424
    %p428 = scmp.eq.s32.totalorder %s26, 0
    %p429 = por %p427, %p428
    %p430 = scmp.ne.s32.totalorder %s422, %s424
    %p431 = scmp.eq.s32.totalorder %s31, 1
    %p432 = por %p430, %p431
    %p433 = scmp.ne.s32.totalorder %s424, %s425
    %p434 = scmp.eq.s32.totalorder %s31, 0
    %p435 = por %p433, %p434
    %p436 = scmp.ne.s32.totalorder %s424, %s425
    %p437 = scmp.eq.s32.totalorder %s32, 1
    %p438 = por %p436, %p437
    %p440 = scmp.ne.s32.totalorder %s425, %s439
    %p441 = scmp.eq.s32.totalorder %s32, 0
    %p442 = por %p440, %p441
    %s444 = sadd.s32 %s443, 1
    %p447 = scmp.eq.s32.totalorder %s26, 1
    %p448 = scmp.ne.s32.totalorder %s443, %s445
    %p449 = scmp.eq.s32.totalorder %s26, 0
    %p450 = por %p448, %p449
    %p451 = scmp.ne.s32.totalorder %s443, %s445
    %p452 = scmp.eq.s32.totalorder %s31, 1
    %p453 = por %p451, %p452
    %p454 = scmp.ne.s32.totalorder %s445, %s446
    %p455 = scmp.eq.s32.totalorder %s31, 0
    %p456 = por %p454, %p455
    %p457 = scmp.ne.s32.totalorder %s445, %s446
    %p458 = scmp.eq.s32.totalorder %s32, 1
    %p459 = por %p457, %p458
    %p461 = scmp.ne.s32.totalorder %s446, %s460
    %p462 = scmp.eq.s32.totalorder %s32, 0
    %p463 = por %p461, %p462
    %s464 = ssub.s32 %s26, %s33
    %p465 = scmp.eq.s32.totalorder %s464, 0
    %s467 = sadd.s32 %s466, 1
    %s468 = scalar_select %p465, %s466, %s467
    %p471 = pneg %p465
    %p472 = scmp.eq.s32.totalorder %s26, 1
    %p473 = por %p471, %p472
    %p474 = scmp.ne.s32.totalorder %s466, %s469
    %p475 = scmp.eq.s32.totalorder %s26, 0
    %p476 = por %p474, %p475
    %p477 = scmp.ne.s32.totalorder %s466, %s469
    %p478 = scmp.eq.s32.totalorder %s31, 1
    %p479 = por %p477, %p478
    %p480 = scmp.ne.s32.totalorder %s469, %s470
    %p481 = scmp.eq.s32.totalorder %s31, 0
    %p482 = por %p480, %p481
    %p483 = scmp.ne.s32.totalorder %s469, %s470
    %p484 = scmp.eq.s32.totalorder %s32, 1
    %p485 = por %p483, %p484
    %p487 = scmp.ne.s32.totalorder %s470, %s486
    %p488 = scmp.eq.s32.totalorder %s32, 0
    %p489 = por %p487, %p488
    %p490 = scmp.le.s32.totalorder 1, %s26
    %p491 = scmp.lt.s32.totalorder %s26, 3
    %p492 = pnand %p490, %p491
    %p493 = pneg %p492
    // Predicated region
    $region9: #{model_forward.1} parent=5 // pred_check
      _
    $region10: #{model_forward.1} parent=5 // pred_check_branch
      %495 = sbr.rel (%p492) target = $region12
    $region11: #{model_forward.1} parent=5 // pred_region
      %s496 = ssub.s32 %s26, 1
      // Predicated region
      $region13: #{model_forward.1} parent=11 // pred_check
        %p497 = pneg %p99
      $region14: #{model_forward.1} parent=11 // pred_check_branch
        %499 = sbr.rel (%p497) target = $region16
      $region15: #{model_forward.1} parent=11 // pred_region
        _
      $region16: #{model_forward.1} parent=11 // pred_fallthru
        _
      // Predicated region
      $region17: #{model_forward.1} parent=11 // pred_check
        %p500 = pneg %p120
      $region18: #{model_forward.1} parent=11 // pred_check_branch
        %502 = sbr.rel (%p500) target = $region20
      $region19: #{model_forward.1} parent=11 // pred_region
        _
      $region20: #{model_forward.1} parent=11 // pred_fallthru
        _
      // Predicated region
      $region21: #{model_forward.1} parent=11 // pred_check
        %p503 = pneg %p141
      $region22: #{model_forward.1} parent=11 // pred_check_branch
        %505 = sbr.rel (%p503) target = $region24
      $region23: #{model_forward.1} parent=11 // pred_region
        _
      $region24: #{model_forward.1} parent=11 // pred_fallthru
        _
      // Predicated region
      $region25: #{model_forward.1} parent=11 // pred_check
        %p506 = pneg %p162
      $region26: #{model_forward.1} parent=11 // pred_check_branch
        %508 = sbr.rel (%p506) target = $region28
      $region27: #{model_forward.1} parent=11 // pred_region
        _
      $region28: #{model_forward.1} parent=11 // pred_fallthru
        _
      // Predicated region
      $region29: #{model_forward.1} parent=11 // pred_check
        %p509 = pneg %p183
      $region30: #{model_forward.1} parent=11 // pred_check_branch
        %511 = sbr.rel (%p509) target = $region32
      $region31: #{model_forward.1} parent=11 // pred_region
        _
      $region32: #{model_forward.1} parent=11 // pred_fallthru
        _
      // Predicated region
      $region33: #{model_forward.1} parent=11 // pred_check
        %p512 = pneg %p204
      $region34: #{model_forward.1} parent=11 // pred_check_branch
        %514 = sbr.rel (%p512) target = $region36
      $region35: #{model_forward.1} parent=11 // pred_region
        _
      $region36: #{model_forward.1} parent=11 // pred_fallthru
        _
      // Predicated region
      $region37: #{model_forward.1} parent=11 // pred_check
        %p515 = pneg %p225
      $region38: #{model_forward.1} parent=11 // pred_check_branch
        %517 = sbr.rel (%p515) target = $region40
      $region39: #{model_forward.1} parent=11 // pred_region
        _
      $region40: #{model_forward.1} parent=11 // pred_fallthru
        _
      // Predicated region
      $region41: #{model_forward.1} parent=11 // pred_check
        %p518 = pneg %p246
      $region42: #{model_forward.1} parent=11 // pred_check_branch
        %520 = sbr.rel (%p518) target = $region44
      $region43: #{model_forward.1} parent=11 // pred_region
        _
      $region44: #{model_forward.1} parent=11 // pred_fallthru
        _
      // Predicated region
      $region45: #{model_forward.1} parent=11 // pred_check
        %p521 = pneg %p267
      $region46: #{model_forward.1} parent=11 // pred_check_branch
        %523 = sbr.rel (%p521) target = $region48
      $region47: #{model_forward.1} parent=11 // pred_region
        _
      $region48: #{model_forward.1} parent=11 // pred_fallthru
        _
      // Predicated region
      $region49: #{model_forward.1} parent=11 // pred_check
        %p524 = pneg %p288
      $region50: #{model_forward.1} parent=11 // pred_check_branch
        %526 = sbr.rel (%p524) target = $region52
      $region51: #{model_forward.1} parent=11 // pred_region
        _
      $region52: #{model_forward.1} parent=11 // pred_fallthru
        _
      // Predicated region
      $region53: #{model_forward.1} parent=11 // pred_check
        %p527 = pneg %p309
      $region54: #{model_forward.1} parent=11 // pred_check_branch
        %529 = sbr.rel (%p527) target = $region56
      $region55: #{model_forward.1} parent=11 // pred_region
        _
      $region56: #{model_forward.1} parent=11 // pred_fallthru
        _
      // Predicated region
      $region57: #{model_forward.1} parent=11 // pred_check
        %p530 = pneg %p330
      $region58: #{model_forward.1} parent=11 // pred_check_branch
        %532 = sbr.rel (%p530) target = $region60
      $region59: #{model_forward.1} parent=11 // pred_region
        _
      $region60: #{model_forward.1} parent=11 // pred_fallthru
        _
      // Predicated region
      $region61: #{model_forward.1} parent=11 // pred_check
        %p533 = pneg %p351
      $region62: #{model_forward.1} parent=11 // pred_check_branch
        %535 = sbr.rel (%p533) target = $region64
      $region63: #{model_forward.1} parent=11 // pred_region
        _
      $region64: #{model_forward.1} parent=11 // pred_fallthru
        _
      // Predicated region
      $region65: #{model_forward.1} parent=11 // pred_check
        %p536 = pneg %p372
      $region66: #{model_forward.1} parent=11 // pred_check_branch
        %538 = sbr.rel (%p536) target = $region68
      $region67: #{model_forward.1} parent=11 // pred_region
        _
      $region68: #{model_forward.1} parent=11 // pred_fallthru
        _
      // Predicated region
      $region69: #{model_forward.1} parent=11 // pred_check
        %p539 = pneg %p393
      $region70: #{model_forward.1} parent=11 // pred_check_branch
        %541 = sbr.rel (%p539) target = $region72
      $region71: #{model_forward.1} parent=11 // pred_region
        _
      $region72: #{model_forward.1} parent=11 // pred_fallthru
        _
      // Predicated region
      $region73: #{model_forward.1} parent=11 // pred_check
        %p542 = pneg %p414
      $region74: #{model_forward.1} parent=11 // pred_check_branch
        %544 = sbr.rel (%p542) target = $region76
      $region75: #{model_forward.1} parent=11 // pred_region
        _
      $region76: #{model_forward.1} parent=11 // pred_fallthru
        _
      // Predicated region
      $region77: #{model_forward.1} parent=11 // pred_check
        %p545 = pneg %p435
      $region78: #{model_forward.1} parent=11 // pred_check_branch
        %547 = sbr.rel (%p545) target = $region80
      $region79: #{model_forward.1} parent=11 // pred_region
        _
      $region80: #{model_forward.1} parent=11 // pred_fallthru
        _
      // Predicated region
      $region81: #{model_forward.1} parent=11 // pred_check
        %p548 = pneg %p456
      $region82: #{model_forward.1} parent=11 // pred_check_branch
        %550 = sbr.rel (%p548) target = $region84
      $region83: #{model_forward.1} parent=11 // pred_region
        _
      $region84: #{model_forward.1} parent=11 // pred_fallthru
        _
    $region12: #{model_forward.1} parent=5 // pred_fallthru
      _
    %p551 = scmp.lt.s32.totalorder %s26, 2
    // Predicated region
    $region85: #{model_forward.1} parent=5 // pred_check
      %p552 = pneg %p551
    $region86: #{model_forward.1} parent=5 // pred_check_branch
      %554 = sbr.rel (%p552) target = $region88
    $region87: #{model_forward.1} parent=5 // pred_region
      // Predicated region
      $region89: #{model_forward.1} parent=87 // pred_check
        %p555 = pneg %p46
      $region90: #{model_forward.1} parent=87 // pred_check_branch
        %557 = sbr.rel (%p555) target = $region92
      $region91: #{model_forward.1} parent=87 // pred_region
        %p558 = scmp.lt.s32.totalorder %s26, 1
        %s559 = scalar_select %p558, %s26, 1
        %s560 = smul.addr %s559, 8
        %s561 = scalar_lea.vmem %s0, %s560
      $region92: #{model_forward.1} parent=87 // pred_fallthru
        _
      // Predicated region
      $region93: #{model_forward.1} parent=87 // pred_check
        %p562 = pneg %p72
      $region94: #{model_forward.1} parent=87 // pred_check_branch
        %564 = sbr.rel (%p562) target = $region96
      $region95: #{model_forward.1} parent=87 // pred_region
        %p565 = scmp.lt.s32.totalorder %s26, 1
        %s566 = scalar_select %p565, %s26, 1
        %s567 = scalar_lea.vmem %s1, %s566
      $region96: #{model_forward.1} parent=87 // pred_fallthru
        _
    $region88: #{model_forward.1} parent=5 // pred_fallthru
      _
    %p568 = scmp.le.s32.totalorder 1, %s26
    %p569 = scmp.lt.s32.totalorder %s26, 3
    %p570 = pnand %p568, %p569
    %p571 = pneg %p570
    // Predicated region
    $region97: #{model_forward.1} parent=5 // pred_check
      _
    $region98: #{model_forward.1} parent=5 // pred_check_branch
      %573 = sbr.rel (%p570) target = $region100
    $region99: #{model_forward.1} parent=5 // pred_region
      %s574 = ssub.s32 %s26, 1
      %p575 = scmp.lt.s32.totalorder %s31, 1
      %s576 = scalar_select %p575, %s31, 1
      %s577 = smul.addr %s576, 8
      %s578 = scalar_lea.vmem %s0, %s577
      %p579 = pneg %p52
      %p580 = pneg %p49
      %p581 = scmp.lt.s32.totalorder %s31, 1
      %s582 = scalar_select %p581, %s31, 1
      %s583 = scalar_lea.vmem %s1, %s582
      %p584 = pneg %p78
      %p585 = pneg %p75
      %p586 = pneg %p99
      %p587 = pneg %p96
      %p588 = pneg %p120
      %p589 = pneg %p117
      %p590 = pneg %p141
      %p591 = pneg %p138
      %p592 = pneg %p162
      %p593 = pneg %p159
      %p594 = pneg %p183
      %p595 = pneg %p180
      %p596 = pneg %p204
      %p597 = pneg %p201
      %p598 = pneg %p225
      %p599 = pneg %p222
      %p600 = pneg %p246
      %p601 = pneg %p243
      %p602 = pneg %p267
      %p603 = pneg %p264
      %p604 = pneg %p288
      %p605 = pneg %p285
      %p606 = pneg %p309
      %p607 = pneg %p306
      %p608 = pneg %p330
      %p609 = pneg %p327
      %p610 = pneg %p351
      %p611 = pneg %p348
      %p612 = pneg %p372
      %p613 = pneg %p369
      %p614 = pneg %p393
      %p615 = pneg %p390
      %p616 = pneg %p414
      %p617 = pneg %p411
      %p618 = pneg %p435
      %p619 = pneg %p432
      %p620 = pneg %p456
      %p621 = pneg %p453
      %p622 = pneg %p482
      %p623 = pneg %p479
      %p624 = scmp.lt.s32.totalorder %s31, 1
      %s625 = scalar_select %p624, %s31, 1
      %s626 = smul.addr %s625, 8
      %s627 = scalar_lea.vmem %s20, %s626
      %p628 = scmp.lt.s32.totalorder %s31, 1
      %s629 = scalar_select %p628, %s31, 1
      %s630 = smul.addr %s629, 8
      %s631 = scalar_lea.vmem %s0, %s630
      %p632 = scmp.lt.s32.totalorder %s31, 1
      %s633 = scalar_select %p632, %s31, 1
      %s634 = scalar_lea.vmem %s1, %s633
      %p635 = scmp.lt.s32.totalorder %s31, 1
      %s636 = scalar_select %p635, %s31, 1
      %s637 = smul.addr %s636, 8
      %s638 = scalar_lea.vmem %s20, %s637
      %v640 = vld [vmem:[%s634] sm:$0x1]
      %v641 = vld [vmem:[%s631] sm:$0xff]
      %v642 = vld [vmem:[%s2] sm:$0x1]
      %v643 = vld [vmem:[%s3] sm:$0x1]
      %vm644 = vcmask 261120
      %v645 = vsel %vm644, %v641, 0.0
      %646 = vadd.xlane.f32.xlu0 %v645
      %v647 = vpop.xlane.xlu0 %646
      %v648 = vrcp.pop 32.0
      %v649 = vmul.f32 %v647, %v648
      %v650 = vsub.f32 %v641, %v649
      %v651 = vmul.f32 %v650, %v650
      %v652 = vsel %vm644, %v651, 0.0
      %653 = vadd.xlane.f32.xlu0 %v652
      %v654 = vpop.xlane.xlu0 %653
      %v655 = vmul.f32 %v654, %v648
      %v656 = vadd.f32 %v655, 1e-12
      %v657 = vrsqrt.pop %v656
      %v658 = vmul.f32 %v650, %v657
      %v660 = vlaneseq
      %v661 = vshrl.u32 %v660, 7
      %v662 = vsub.s32 0, %v661
      %v663 = vrot.slane %v642, %v662
      %v665 = vmul.f32 %v658, %v663
      %v667 = vlaneseq
      %v668 = vshrl.u32 %v667, 7
      %v669 = vsub.s32 0, %v668
      %v670 = vrot.slane %v643, %v669
      %v672 = vadd.f32 %v665, %v670
      %v673 = vld [vmem:[%s4] sm:$0xf]
      %v674 = vld [vmem:[%s4 + $0x4] sm:$0xf]
      %v675 = vld [vmem:[%s4 + $0x8] sm:$0xf]
      %v676 = vld [vmem:[%s4 + $0xc] sm:$0xf]
      %v677 = vpack.c.bf16 %v672, %v672
      %v678 = vld [vmem:[%s5] sm:$0x1]
      %v680 = vlaneseq
      %v681 = vshrl.u32 %v680, 7
      %v682 = vsub.s32 0, %v681
      %v683 = vrot.slane %v678, %v682
      %v689 = vunpack.c.l.b16 %v673
      %v690 = vunpack.c.l.b16 %v674
      %v691 = vunpack.c.l.b16 %v675
      %v692 = vunpack.c.l.b16 %v676
      %v693 = vpack.c.b16 %v690, %v689
      %v694 = vpack.c.b16 %v692, %v691
      %v698 = vsel %vm644, %v677, 0
      %700 = vmatprep.subr.bf16.mxu0 0
      %701 = vmatpush1.bf16.msra.mxu0 %v693
      %702 = vmatprep.subr.bf16.mxu0 0
      %703 = vmatpush1.bf16.msra.mxu0 %v694
      %704 = vmatprep.subr.bf16.mxu0 0
      %705 = vmatpush1.bf16.msra.mxu0 0
      %706 = vmatprep.subr.bf16.mxu0 0
      %707 = vmatpush1.bf16.msra.mxu0 0
      %708 = vmatprep.subr.bf16.mxu0 0
      %709 = vmatpush1.bf16.msra.mxu0 0
      %710 = vmatprep.subr.bf16.mxu0 0
      %711 = vmatpush1.bf16.msra.mxu0 0
      %712 = vmatprep.subr.bf16.mxu0 0
      %713 = vmatpush1.bf16.msra.mxu0 0
      %714 = vmatprep.subr.bf16.mxu0 0
      %715 = vmatpush1.bf16.msra.mxu0 0
      %716 = vmatprep.subr.bf16.mxu0 0
      %717 = vmatpush1.bf16.msra.mxu0 0
      %718 = vmatprep.subr.bf16.mxu0 0
      %719 = vmatpush1.bf16.msra.mxu0 0
      %720 = vmatprep.subr.bf16.mxu0 0
      %721 = vmatpush1.bf16.msra.mxu0 0
      %722 = vmatprep.subr.bf16.mxu0 0
      %723 = vmatpush1.bf16.msra.mxu0 0
      %724 = vmatprep.subr.bf16.mxu0 0
      %725 = vmatpush1.bf16.msra.mxu0 0
      %726 = vmatprep.subr.bf16.mxu0 0
      %727 = vmatpush1.bf16.msra.mxu0 0
      %728 = vmatprep.subr.bf16.mxu0 0
      %729 = vmatpush1.bf16.msra.mxu0 0
      %730 = vmatprep.subr.bf16.mxu0 0
      %731 = vmatpush1.bf16.msra.mxu0 0
      %732 = vmatprep.mubr.bf16.mxu0 0
      %733 = vmatmul.mubr.bf16.gmra.mrb[0].mxu0 %v698
      %v734 = vpop.f32.mrb[0].mxu0
      %v735 = vadd.f32 %v683, %v734
      %v736 = vpop.f32.mrb[0].mxu0
      %v737 = vpop.f32.mrb[0].mxu0
      %v738 = vpop.f32.mrb[0].mxu0
      %739 = vdwg.mxu0
      %v740 = vld [vmem:[%s7] sm:$0x1]
      %742 = vrot.lane.b32.xlu0 %v735, 96
      %v743 = vpop.permute.xlu0 %742
      %vm744 = vcmask 64512
      %v745 = vsel %vm744, %v735, 0
      %v747 = vsel %vm744, %v743, 0
      %749 = vmatprep.subr.mxu0 0.0
      %750 = vmatpush1.xpose.msra.mxu0 %v747
      %751 = vmatprep.subr.mxu0 0.0
      %752 = vmatpush1.xpose.msra.mxu0 0.0
      %753 = vmatprep.subr.mxu0 0.0
      %754 = vmatpush1.xpose.msra.mxu0 0.0
      %755 = vmatprep.subr.mxu0 0.0
      %756 = vmatpush1.xpose.msra.mxu0 0.0
      %757 = vmatprep.subr.mxu0 0.0
      %758 = vmatpush1.xpose.msra.mxu0 0.0
      %759 = vmatprep.subr.mxu0 0.0
      %760 = vmatpush1.xpose.msra.mxu0 0.0
      %761 = vmatprep.subr.mxu0 0.0
      %762 = vmatpush1.xpose.msra.mxu0 0.0
      %763 = vmatprep.subr.mxu0 0.0
      %764 = vmatpush1.xpose.msra.mxu0 0.0
      %765 = vmatprep.subr.mxu0 0.0
      %766 = vmatpush1.xpose.msra.mxu0 0.0
      %767 = vmatprep.subr.mxu0 0.0
      %768 = vmatpush1.xpose.msra.mxu0 0.0
      %769 = vmatprep.subr.mxu0 0.0
      %770 = vmatpush1.xpose.msra.mxu0 0.0
      %771 = vmatprep.subr.mxu0 0.0
      %772 = vmatpush1.xpose.msra.mxu0 0.0
      %773 = vmatprep.subr.mxu0 0.0
      %774 = vmatpush1.xpose.msra.mxu0 0.0
      %775 = vmatprep.subr.mxu0 0.0
      %776 = vmatpush1.xpose.msra.mxu0 0.0
      %777 = vmatprep.subr.mxu0 0.0
      %778 = vmatpush1.xpose.msra.mxu0 0.0
      %779 = vmatprep.subr.mxu0 0.0
      %780 = vmatpush1.xpose.msra.mxu0 0.0
      %781 = vmatprep.subr.mxu0 0.0
      %782 = vmatpush1.xpose.msra.mxu0 0.0
      %783 = vmatprep.subr.mxu0 0.0
      %784 = vmatpush1.xpose.msra.mxu0 0.0
      %785 = vmatprep.subr.mxu0 0.0
      %786 = vmatpush1.xpose.msra.mxu0 0.0
      %787 = vmatprep.subr.mxu0 0.0
      %788 = vmatpush1.xpose.msra.mxu0 0.0
      %789 = vmatprep.subr.mxu0 0.0
      %790 = vmatpush1.xpose.msra.mxu0 0.0
      %791 = vmatprep.subr.mxu0 0.0
      %792 = vmatpush1.xpose.msra.mxu0 0.0
      %793 = vmatprep.subr.mxu0 0.0
      %794 = vmatpush1.xpose.msra.mxu0 0.0
      %795 = vmatprep.subr.mxu0 0.0
      %796 = vmatpush1.xpose.msra.mxu0 0.0
      %797 = vmatprep.subr.mxu0 0.0
      %798 = vmatpush1.xpose.msra.mxu0 0.0
      %799 = vmatprep.subr.mxu0 0.0
      %800 = vmatpush1.xpose.msra.mxu0 0.0
      %801 = vmatprep.subr.mxu0 0.0
      %802 = vmatpush1.xpose.msra.mxu0 0.0
      %803 = vmatprep.subr.mxu0 0.0
      %804 = vmatpush1.xpose.msra.mxu0 0.0
      %805 = vmatprep.subr.mxu0 0.0
      %806 = vmatpush1.xpose.msra.mxu0 0.0
      %807 = vmatprep.subr.mxu0 0.0
      %808 = vmatpush1.xpose.msra.mxu0 0.0
      %809 = vmatprep.subr.mxu0 0.0
      %810 = vmatpush1.xpose.msra.mxu0 0.0
      %811 = vmatprep.subr.mxu0 0.0
      %812 = vmatpush1.xpose.msra.mxu0 0.0
      %813 = vmatprep.mubr.f32.mxu0 0.0
      %814 = vmatmul.mubr.f32.gmra.mrb[0].mxu0 %v745
      %v815 = vpop.f32.mrb[0].mxu0
      %v816 = vadd.f32 0.0, %v815
      %v817 = vpop.f32.mrb[0].mxu0
      %818 = vdwg.mxu0
      %v819 = vmul.f32 %v816, 0.35355338
      %v821 = vlaneseq
      %v822 = vshrl.u32 %v821, 7
      %v823 = vsub.s32 0, %v822
      %v824 = vrot.slane %v640, %v823
      %v826 = vadd.f32 %v819, %v824
      %v827 = vsel %vm744, %v826, -inf
      %828 = vmax.xlane.f32.xlu0 %v827
      %v829 = vpop.xlane.xlu0 %828
      %v830 = vsub.f32 %v826, %v829
      %v831 = vmul.f32 %v830, 1.442695
      %v832 = vpow.pop %v831
      %v833 = vsel %vm744, %v832, 0.0
      %834 = vadd.xlane.f32.xlu0 %v833
      %v835 = vpop.xlane.xlu0 %834
      %v836 = vrcp.pop %v835
      %v837 = vmul.f32 %v832, %v836
      %838 = vrot.lane.b32.xlu0 %v735, 64
      %v839 = vpop.permute.xlu0 %838
      %v842 = vsel %vm744, %v837, 0
      %844 = vmatprep.subr.mxu0 0.0
      %845 = vmatpush1.msra.mxu0 %v839
      %846 = vmatprep.subr.mxu0 0.0
      %847 = vmatpush1.msra.mxu0 0.0
      %848 = vmatprep.subr.mxu0 0.0
      %849 = vmatpush1.msra.mxu0 0.0
      %850 = vmatprep.subr.mxu0 0.0
      %851 = vmatpush1.msra.mxu0 0.0
      %852 = vmatprep.subr.mxu0 0.0
      %853 = vmatpush1.msra.mxu0 0.0
      %854 = vmatprep.subr.mxu0 0.0
      %855 = vmatpush1.msra.mxu0 0.0
      %856 = vmatprep.subr.mxu0 0.0
      %857 = vmatpush1.msra.mxu0 0.0
      %858 = vmatprep.subr.mxu0 0.0
      %859 = vmatpush1.msra.mxu0 0.0
      %860 = vmatprep.subr.mxu0 0.0
      %861 = vmatpush1.msra.mxu0 0.0
      %862 = vmatprep.subr.mxu0 0.0
      %863 = vmatpush1.msra.mxu0 0.0
      %864 = vmatprep.subr.mxu0 0.0
      %865 = vmatpush1.msra.mxu0 0.0
      %866 = vmatprep.subr.mxu0 0.0
      %867 = vmatpush1.msra.mxu0 0.0
      %868 = vmatprep.subr.mxu0 0.0
      %869 = vmatpush1.msra.mxu0 0.0
      %870 = vmatprep.subr.mxu0 0.0
      %871 = vmatpush1.msra.mxu0 0.0
      %872 = vmatprep.subr.mxu0 0.0
      %873 = vmatpush1.msra.mxu0 0.0
      %874 = vmatprep.subr.mxu0 0.0
      %875 = vmatpush1.msra.mxu0 0.0
      %876 = vmatprep.subr.mxu0 0.0
      %877 = vmatpush1.msra.mxu0 0.0
      %878 = vmatprep.subr.mxu0 0.0
      %879 = vmatpush1.msra.mxu0 0.0
      %880 = vmatprep.subr.mxu0 0.0
      %881 = vmatpush1.msra.mxu0 0.0
      %882 = vmatprep.subr.mxu0 0.0
      %883 = vmatpush1.msra.mxu0 0.0
      %884 = vmatprep.subr.mxu0 0.0
      %885 = vmatpush1.msra.mxu0 0.0
      %886 = vmatprep.subr.mxu0 0.0
      %887 = vmatpush1.msra.mxu0 0.0
      %888 = vmatprep.subr.mxu0 0.0
      %889 = vmatpush1.msra.mxu0 0.0
      %890 = vmatprep.subr.mxu0 0.0
      %891 = vmatpush1.msra.mxu0 0.0
      %892 = vmatprep.subr.mxu0 0.0
      %893 = vmatpush1.msra.mxu0 0.0
      %894 = vmatprep.subr.mxu0 0.0
      %895 = vmatpush1.msra.mxu0 0.0
      %896 = vmatprep.subr.mxu0 0.0
      %897 = vmatpush1.msra.mxu0 0.0
      %898 = vmatprep.subr.mxu0 0.0
      %899 = vmatpush1.msra.mxu0 0.0
      %900 = vmatprep.subr.mxu0 0.0
      %901 = vmatpush1.msra.mxu0 0.0
      %902 = vmatprep.subr.mxu0 0.0
      %903 = vmatpush1.msra.mxu0 0.0
      %904 = vmatprep.subr.mxu0 0.0
      %905 = vmatpush1.msra.mxu0 0.0
      %906 = vmatprep.subr.mxu0 0.0
      %907 = vmatpush1.msra.mxu0 0.0
      %908 = vmatprep.mubr.f32.mxu0 0.0
      %909 = vmatmul.mubr.f32.gmra.mrb[0].mxu0 %v842
      %v910 = vpop.f32.mrb[0].mxu0
      %v911 = vadd.f32 0.0, %v910
      %v912 = vpop.f32.mrb[0].mxu0
      %913 = vdwg.mxu0
      %v914 = vld [vmem:[%s6] sm:$0xf]
      %v915 = vpack.c.bf16 %v911, %v911
      %v917 = vsel %vm744, %v915, 0
      %vm919 = vcmask 1043456
      %v921 = vsel %vm919, %v914, 0
      %923 = vmatprep.subr.bf16.mxu0 0
      %924 = vmatpush1.bf16.msra.mxu0 %v921
      %925 = vmatprep.subr.bf16.mxu0 0
      %926 = vmatpush1.bf16.msra.mxu0 0
      %927 = vmatprep.subr.bf16.mxu0 0
      %928 = vmatpush1.bf16.msra.mxu0 0
      %929 = vmatprep.subr.bf16.mxu0 0
      %930 = vmatpush1.bf16.msra.mxu0 0
      %931 = vmatprep.subr.bf16.mxu0 0
      %932 = vmatpush1.bf16.msra.mxu0 0
      %933 = vmatprep.subr.bf16.mxu0 0
      %934 = vmatpush1.bf16.msra.mxu0 0
      %935 = vmatprep.subr.bf16.mxu0 0
      %936 = vmatpush1.bf16.msra.mxu0 0
      %937 = vmatprep.subr.bf16.mxu0 0
      %938 = vmatpush1.bf16.msra.mxu0 0
      %939 = vmatprep.subr.bf16.mxu0 0
      %940 = vmatpush1.bf16.msra.mxu0 0
      %941 = vmatprep.subr.bf16.mxu0 0
      %942 = vmatpush1.bf16.msra.mxu0 0
      %943 = vmatprep.subr.bf16.mxu0 0
      %944 = vmatpush1.bf16.msra.mxu0 0
      %945 = vmatprep.subr.bf16.mxu0 0
      %946 = vmatpush1.bf16.msra.mxu0 0
      %947 = vmatprep.subr.bf16.mxu0 0
      %948 = vmatpush1.bf16.msra.mxu0 0
      %949 = vmatprep.subr.bf16.mxu0 0
      %950 = vmatpush1.bf16.msra.mxu0 0
      %951 = vmatprep.subr.bf16.mxu0 0
      %952 = vmatpush1.bf16.msra.mxu0 0
      %953 = vmatprep.subr.bf16.mxu0 0
      %954 = vmatpush1.bf16.msra.mxu0 0
      %955 = vmatprep.mubr.bf16.mxu0 0
      %956 = vmatmul.mubr.bf16.gmra.mrb[0].mxu0 %v917
      %v957 = vpop.f32.mrb[0].mxu0
      %v958 = vadd.f32 0.0, %v957
      %v959 = vpop.f32.mrb[0].mxu0
      %v960 = vpop.f32.mrb[0].mxu0
      %v961 = vpop.f32.mrb[0].mxu0
      %962 = vdwg.mxu0
      %v964 = vlaneseq
      %v965 = vshrl.u32 %v964, 7
      %v966 = vsub.s32 0, %v965
      %v967 = vrot.slane %v740, %v966
      %v969 = vadd.f32 %v967, %v958
      %970 = vrot.lane.b32.xlu0 %v735, 120
      %v971 = vpop.permute.xlu0 %970
      %972 = vrot.lane.b32.xlu0 %v735, 88
      %v973 = vpop.permute.xlu0 %972
      %v974 = vsel %vm744, %v971, 0
      %v976 = vsel %vm744, %v973, 0
      %978 = vmatprep.subr.mxu0 0.0
      %979 = vmatpush1.xpose.msra.mxu0 %v976
      %980 = vmatprep.subr.mxu0 0.0
      %981 = vmatpush1.xpose.msra.mxu0 0.0
      %982 = vmatprep.subr.mxu0 0.0
      %983 = vmatpush1.xpose.msra.mxu0 0.0
      %984 = vmatprep.subr.mxu0 0.0
      %985 = vmatpush1.xpose.msra.mxu0 0.0
      %986 = vmatprep.subr.mxu0 0.0
      %987 = vmatpush1.xpose.msra.mxu0 0.0
      %988 = vmatprep.subr.mxu0 0.0
      %989 = vmatpush1.xpose.msra.mxu0 0.0
      %990 = vmatprep.subr.mxu0 0.0
      %991 = vmatpush1.xpose.msra.mxu0 0.0
      %992 = vmatprep.subr.mxu0 0.0
      %993 = vmatpush1.xpose.msra.mxu0 0.0
      %994 = vmatprep.subr.mxu0 0.0
      %995 = vmatpush1.xpose.msra.mxu0 0.0
      %996 = vmatprep.subr.mxu0 0.0
      %997 = vmatpush1.xpose.msra.mxu0 0.0
      %998 = vmatprep.subr.mxu0 0.0
      %999 = vmatpush1.xpose.msra.mxu0 0.0
      %1000 = vmatprep.subr.mxu0 0.0
      %1001 = vmatpush1.xpose.msra.mxu0 0.0
      %1002 = vmatprep.subr.mxu0 0.0
      %1003 = vmatpush1.xpose.msra.mxu0 0.0
      %1004 = vmatprep.subr.mxu0 0.0
      %1005 = vmatpush1.xpose.msra.mxu0 0.0
      %1006 = vmatprep.subr.mxu0 0.0
      %1007 = vmatpush1.xpose.msra.mxu0 0.0
      %1008 = vmatprep.subr.mxu0 0.0
      %1009 = vmatpush1.xpose.msra.mxu0 0.0
      %1010 = vmatprep.subr.mxu0 0.0
      %1011 = vmatpush1.xpose.msra.mxu0 0.0
      %1012 = vmatprep.subr.mxu0 0.0
      %1013 = vmatpush1.xpose.msra.mxu0 0.0
      %1014 = vmatprep.subr.mxu0 0.0
      %1015 = vmatpush1.xpose.msra.mxu0 0.0
      %1016 = vmatprep.subr.mxu0 0.0
      %1017 = vmatpush1.xpose.msra.mxu0 0.0
      %1018 = vmatprep.subr.mxu0 0.0
      %1019 = vmatpush1.xpose.msra.mxu0 0.0
      %1020 = vmatprep.subr.mxu0 0.0
      %1021 = vmatpush1.xpose.msra.mxu0 0.0
      %1022 = vmatprep.subr.mxu0 0.0
      %1023 = vmatpush1.xpose.msra.mxu0 0.0
      %1024 = vmatprep.subr.mxu0 0.0
      %1025 = vmatpush1.xpose.msra.mxu0 0.0
      %1026 = vmatprep.subr.mxu0 0.0
      %1027 = vmatpush1.xpose.msra.mxu0 0.0
      %1028 = vmatprep.subr.mxu0 0.0
      %1029 = vmatpush1.xpose.msra.mxu0 0.0
      %1030 = vmatprep.subr.mxu0 0.0
      %1031 = vmatpush1.xpose.msra.mxu0 0.0
      %1032 = vmatprep.subr.mxu0 0.0
      %1033 = vmatpush1.xpose.msra.mxu0 0.0
      %1034 = vmatprep.subr.mxu0 0.0
      %1035 = vmatpush1.xpose.msra.mxu0 0.0
      %1036 = vmatprep.subr.mxu0 0.0
      %1037 = vmatpush1.xpose.msra.mxu0 0.0
      %1038 = vmatprep.subr.mxu0 0.0
      %1039 = vmatpush1.xpose.msra.mxu0 0.0
      %1040 = vmatprep.subr.mxu0 0.0
      %1041 = vmatpush1.xpose.msra.mxu0 0.0
      %1042 = vmatprep.mubr.f32.mxu0 0.0
      %1043 = vmatmul.mubr.f32.gmra.mrb[0].mxu0 %v974
      %v1044 = vpop.f32.mrb[0].mxu0
      %v1045 = vadd.f32 0.0, %v1044
      %v1046 = vpop.f32.mrb[0].mxu0
      %1047 = vdwg.mxu0
      %v1048 = vmul.f32 %v1045, 0.35355338
      %v1049 = vadd.f32 %v1048, %v824
      %v1050 = vsel %vm744, %v1049, -inf
      %1051 = vmax.xlane.f32.xlu0 %v1050
      %v1052 = vpop.xlane.xlu0 %1051
      %v1053 = vsub.f32 %v1049, %v1052
      %v1054 = vmul.f32 %v1053, 1.442695
      %v1055 = vpow.pop %v1054
      %v1056 = vsel %vm744, %v1055, 0.0
      %1057 = vadd.xlane.f32.xlu0 %v1056
      %v1058 = vpop.xlane.xlu0 %1057
      %v1059 = vrcp.pop %v1058
      %v1060 = vmul.f32 %v1055, %v1059
      %1061 = vrot.lane.b32.xlu0 %v735, 56
      %v1062 = vpop.permute.xlu0 %1061
      %v1065 = vsel %vm744, %v1060, 0
      %1067 = vmatprep.subr.mxu0 0.0
      %1068 = vmatpush1.msra.mxu0 %v1062
      %1069 = vmatprep.subr.mxu0 0.0
      %1070 = vmatpush1.msra.mxu0 0.0
      %1071 = vmatprep.subr.mxu0 0.0
      %1072 = vmatpush1.msra.mxu0 0.0
      %1073 = vmatprep.subr.mxu0 0.0
      %1074 = vmatpush1.msra.mxu0 0.0
      %1075 = vmatprep.subr.mxu0 0.0
      %1076 = vmatpush1.msra.mxu0 0.0
      %1077 = vmatprep.subr.mxu0 0.0
      %1078 = vmatpush1.msra.mxu0 0.0
      %1079 = vmatprep.subr.mxu0 0.0
      %1080 = vmatpush1.msra.mxu0 0.0
      %1081 = vmatprep.subr.mxu0 0.0
      %1082 = vmatpush1.msra.mxu0 0.0
      %1083 = vmatprep.subr.mxu0 0.0
      %1084 = vmatpush1.msra.mxu0 0.0
      %1085 = vmatprep.subr.mxu0 0.0
      %1086 = vmatpush1.msra.mxu0 0.0
      %1087 = vmatprep.subr.mxu0 0.0
      %1088 = vmatpush1.msra.mxu0 0.0
      %1089 = vmatprep.subr.mxu0 0.0
      %1090 = vmatpush1.msra.mxu0 0.0
      %1091 = vmatprep.subr.mxu0 0.0
      %1092 = vmatpush1.msra.mxu0 0.0
      %1093 = vmatprep.subr.mxu0 0.0
      %1094 = vmatpush1.msra.mxu0 0.0
      %1095 = vmatprep.subr.mxu0 0.0
      %1096 = vmatpush1.msra.mxu0 0.0
      %1097 = vmatprep.subr.mxu0 0.0
      %1098 = vmatpush1.msra.mxu0 0.0
      %1099 = vmatprep.subr.mxu0 0.0
      %1100 = vmatpush1.msra.mxu0 0.0
      %1101 = vmatprep.subr.mxu0 0.0
      %1102 = vmatpush1.msra.mxu0 0.0
      %1103 = vmatprep.subr.mxu0 0.0
      %1104 = vmatpush1.msra.mxu0 0.0
      %1105 = vmatprep.subr.mxu0 0.0
      %1106 = vmatpush1.msra.mxu0 0.0
      %1107 = vmatprep.subr.mxu0 0.0
      %1108 = vmatpush1.msra.mxu0 0.0
      %1109 = vmatprep.subr.mxu0 0.0
      %1110 = vmatpush1.msra.mxu0 0.0
      %1111 = vmatprep.subr.mxu0 0.0
      %1112 = vmatpush1.msra.mxu0 0.0
      %1113 = vmatprep.subr.mxu0 0.0
      %1114 = vmatpush1.msra.mxu0 0.0
      %1115 = vmatprep.subr.mxu0 0.0
      %1116 = vmatpush1.msra.mxu0 0.0
      %1117 = vmatprep.subr.mxu0 0.0
      %1118 = vmatpush1.msra.mxu0 0.0
      %1119 = vmatprep.subr.mxu0 0.0
      %1120 = vmatpush1.msra.mxu0 0.0
      %1121 = vmatprep.subr.mxu0 0.0
      %1122 = vmatpush1.msra.mxu0 0.0
      %1123 = vmatprep.subr.mxu0 0.0
      %1124 = vmatpush1.msra.mxu0 0.0
      %1125 = vmatprep.subr.mxu0 0.0
      %1126 = vmatpush1.msra.mxu0 0.0
      %1127 = vmatprep.subr.mxu0 0.0
      %1128 = vmatpush1.msra.mxu0 0.0
      %1129 = vmatprep.subr.mxu0 0.0
      %1130 = vmatpush1.msra.mxu0 0.0
      %1131 = vmatprep.mubr.f32.mxu0 0.0
      %1132 = vmatmul.mubr.f32.gmra.mrb[0].mxu0 %v1065
      %v1133 = vpop.f32.mrb[0].mxu0
      %v1134 = vadd.f32 0.0, %v1133
      %v1135 = vpop.f32.mrb[0].mxu0
      %1136 = vdwg.mxu0
      %s1137 = scalar_lea.vmem %s6, 4
      %v1138 = vld [vmem:[%s1137] sm:$0xf]
      %v1139 = vpack.c.bf16 %v1134, %v1134
      %v1141 = vsel %vm744, %v1139, 0
      %v1144 = vsel %vm919, %v1138, 0
      %1146 = vmatprep.subr.bf16.mxu0 0
      %1147 = vmatpush1.bf16.msra.mxu0 %v1144
      %1148 = vmatprep.subr.bf16.mxu0 0
      %1149 = vmatpush1.bf16.msra.mxu0 0
      %1150 = vmatprep.subr.bf16.mxu0 0
      %1151 = vmatpush1.bf16.msra.mxu0 0
      %1152 = vmatprep.subr.bf16.mxu0 0
      %1153 = vmatpush1.bf16.msra.mxu0 0
      %1154 = vmatprep.subr.bf16.mxu0 0
      %1155 = vmatpush1.bf16.msra.mxu0 0
      %1156 = vmatprep.subr.bf16.mxu0 0
      %1157 = vmatpush1.bf16.msra.mxu0 0
      %1158 = vmatprep.subr.bf16.mxu0 0
      %1159 = vmatpush1.bf16.msra.mxu0 0
      %1160 = vmatprep.subr.bf16.mxu0 0
      %1161 = vmatpush1.bf16.msra.mxu0 0
      %1162 = vmatprep.subr.bf16.mxu0 0
      %1163 = vmatpush1.bf16.msra.mxu0 0
      %1164 = vmatprep.subr.bf16.mxu0 0
      %1165 = vmatpush1.bf16.msra.mxu0 0
      %1166 = vmatprep.subr.bf16.mxu0 0
      %1167 = vmatpush1.bf16.msra.mxu0 0
      %1168 = vmatprep.subr.bf16.mxu0 0
      %1169 = vmatpush1.bf16.msra.mxu0 0
      %1170 = vmatprep.subr.bf16.mxu0 0
      %1171 = vmatpush1.bf16.msra.mxu0 0
      %1172 = vmatprep.subr.bf16.mxu0 0
      %1173 = vmatpush1.bf16.msra.mxu0 0
      %1174 = vmatprep.subr.bf16.mxu0 0
      %1175 = vmatpush1.bf16.msra.mxu0 0
      %1176 = vmatprep.subr.bf16.mxu0 0
      %1177 = vmatpush1.bf16.msra.mxu0 0
      %1178 = vmatprep.mubr.bf16.mxu0 0
      %1179 = vmatmul.mubr.bf16.gmra.mrb[0].mxu0 %v1141
      %v1180 = vpop.f32.mrb[0].mxu0
      %v1181 = vadd.f32 0.0, %v1180
      %v1182 = vpop.f32.mrb[0].mxu0
      %v1183 = vpop.f32.mrb[0].mxu0
      %v1184 = vpop.f32.mrb[0].mxu0
      %1185 = vdwg.mxu0
      %v1186 = vadd.f32 %v969, %v1181
      %1187 = vrot.lane.b32.xlu0 %v735, 112
      %v1188 = vpop.permute.xlu0 %1187
      %1189 = vrot.lane.b32.xlu0 %v735, 80
      %v1190 = vpop.permute.xlu0 %1189
      %v1191 = vsel %vm744, %v1188, 0
      %v1193 = vsel %vm744, %v1190, 0
      %1195 = vmatprep.subr.mxu0 0.0
      %1196 = vmatpush1.xpose.msra.mxu0 %v1193
      %1197 = vmatprep.subr.mxu0 0.0
      %1198 = vmatpush1.xpose.msra.mxu0 0.0
      %1199 = vmatprep.subr.mxu0 0.0
      %1200 = vmatpush1.xpose.msra.mxu0 0.0
      %1201 = vmatprep.subr.mxu0 0.0
      %1202 = vmatpush1.xpose.msra.mxu0 0.0
      %1203 = vmatprep.subr.mxu0 0.0
      %1204 = vmatpush1.xpose.msra.mxu0 0.0
      %1205 = vmatprep.subr.mxu0 0.0
      %1206 = vmatpush1.xpose.msra.mxu0 0.0
      %1207 = vmatprep.subr.mxu0 0.0
      %1208 = vmatpush1.xpose.msra.mxu0 0.0
      %1209 = vmatprep.subr.mxu0 0.0
      %1210 = vmatpush1.xpose.msra.mxu0 0.0
      %1211 = vmatprep.subr.mxu0 0.0
      %1212 = vmatpush1.xpose.msra.mxu0 0.0
      %1213 = vmatprep.subr.mxu0 0.0
      %1214 = vmatpush1.xpose.msra.mxu0 0.0
      %1215 = vmatprep.subr.mxu0 0.0
      %1216 = vmatpush1.xpose.msra.mxu0 0.0
      %1217 = vmatprep.subr.mxu0 0.0
      %1218 = vmatpush1.xpose.msra.mxu0 0.0
      %1219 = vmatprep.subr.mxu0 0.0
      %1220 = vmatpush1.xpose.msra.mxu0 0.0
      %1221 = vmatprep.subr.mxu0 0.0
      %1222 = vmatpush1.xpose.msra.mxu0 0.0
      %1223 = vmatprep.subr.mxu0 0.0
      %1224 = vmatpush1.xpose.msra.mxu0 0.0
      %1225 = vmatprep.subr.mxu0 0.0
      %1226 = vmatpush1.xpose.msra.mxu0 0.0
      %1227 = vmatprep.subr.mxu0 0.0
      %1228 = vmatpush1.xpose.msra.mxu0 0.0
      %1229 = vmatprep.subr.mxu0 0.0
      %1230 = vmatpush1.xpose.msra.mxu0 0.0
      %1231 = vmatprep.subr.mxu0 0.0
      %1232 = vmatpush1.xpose.msra.mxu0 0.0
      %1233 = vmatprep.subr.mxu0 0.0
      %1234 = vmatpush1.xpose.msra.mxu0 0.0
      %1235 = vmatprep.subr.mxu0 0.0
      %1236 = vmatpush1.xpose.msra.mxu0 0.0
      %1237 = vmatprep.subr.mxu0 0.0
      %1238 = vmatpush1.xpose.msra.mxu0 0.0
      %1239 = vmatprep.subr.mxu0 0.0
      %1240 = vmatpush1.xpose.msra.mxu0 0.0
      %1241 = vmatprep.subr.mxu0 0.0
      %1242 = vmatpush1.xpose.msra.mxu0 0.0
      %1243 = vmatprep.subr.mxu0 0.0
      %1244 = vmatpush1.xpose.msra.mxu0 0.0
      %1245 = vmatprep.subr.mxu0 0.0
      %1246 = vmatpush1.xpose.msra.mxu0 0.0
      %1247 = vmatprep.subr.mxu0 0.0
      %1248 = vmatpush1.xpose.msra.mxu0 0.0
      %1249 = vmatprep.subr.mxu0 0.0
      %1250 = vmatpush1.xpose.msra.mxu0 0.0
      %1251 = vmatprep.subr.mxu0 0.0
      %1252 = vmatpush1.xpose.msra.mxu0 0.0
      %1253 = vmatprep.subr.mxu0 0.0
      %1254 = vmatpush1.xpose.msra.mxu0 0.0
      %1255 = vmatprep.subr.mxu0 0.0
      %1256 = vmatpush1.xpose.msra.mxu0 0.0
      %1257 = vmatprep.subr.mxu0 0.0
      %1258 = vmatpush1.xpose.msra.mxu0 0.0
      %1259 = vmatprep.mubr.f32.mxu0 0.0
      %1260 = vmatmul.mubr.f32.gmra.mrb[0].mxu0 %v1191
      %v1261 = vpop.f32.mrb[0].mxu0
      %v1262 = vadd.f32 0.0, %v1261
      %v1263 = vpop.f32.mrb[0].mxu0
      %1264 = vdwg.mxu0
      %v1265 = vmul.f32 %v1262, 0.35355338
      %v1266 = vadd.f32 %v1265, %v824
      %v1267 = vsel %vm744, %v1266, -inf
      %1268 = vmax.xlane.f32.xlu0 %v1267
      %v1269 = vpop.xlane.xlu0 %1268
      %v1270 = vsub.f32 %v1266, %v1269
      %v1271 = vmul.f32 %v1270, 1.442695
      %v1272 = vpow.pop %v1271
      %v1273 = vsel %vm744, %v1272, 0.0
      %1274 = vadd.xlane.f32.xlu0 %v1273
      %v1275 = vpop.xlane.xlu0 %1274
      %v1276 = vrcp.pop %v1275
      %v1277 = vmul.f32 %v1272, %v1276
      %1278 = vrot.lane.b32.xlu0 %v735, 48
      %v1279 = vpop.permute.xlu0 %1278
      %v1282 = vsel %vm744, %v1277, 0
      %1284 = vmatprep.subr.mxu0 0.0
      %1285 = vmatpush1.msra.mxu0 %v1279
      %1286 = vmatprep.subr.mxu0 0.0
      %1287 = vmatpush1.msra.mxu0 0.0
      %1288 = vmatprep.subr.mxu0 0.0
      %1289 = vmatpush1.msra.mxu0 0.0
      %1290 = vmatprep.subr.mxu0 0.0
      %1291 = vmatpush1.msra.mxu0 0.0
      %1292 = vmatprep.subr.mxu0 0.0
      %1293 = vmatpush1.msra.mxu0 0.0
      %1294 = vmatprep.subr.mxu0 0.0
      %1295 = vmatpush1.msra.mxu0 0.0
      %1296 = vmatprep.subr.mxu0 0.0
      %1297 = vmatpush1.msra.mxu0 0.0
      %1298 = vmatprep.subr.mxu0 0.0
      %1299 = vmatpush1.msra.mxu0 0.0
      %1300 = vmatprep.subr.mxu0 0.0
      %1301 = vmatpush1.msra.mxu0 0.0
      %1302 = vmatprep.subr.mxu0 0.0
      %1303 = vmatpush1.msra.mxu0 0.0
      %1304 = vmatprep.subr.mxu0 0.0
      %1305 = vmatpush1.msra.mxu0 0.0
      %1306 = vmatprep.subr.mxu0 0.0
      %1307 = vmatpush1.msra.mxu0 0.0
      %1308 = vmatprep.subr.mxu0 0.0
      %1309 = vmatpush1.msra.mxu0 0.0
      %1310 = vmatprep.subr.mxu0 0.0
      %1311 = vmatpush1.msra.mxu0 0.0
      %1312 = vmatprep.subr.mxu0 0.0
      %1313 = vmatpush1.msra.mxu0 0.0
      %1314 = vmatprep.subr.mxu0 0.0
      %1315 = vmatpush1.msra.mxu0 0.0
      %1316 = vmatprep.subr.mxu0 0.0
      %1317 = vmatpush1.msra.mxu0 0.0
      %1318 = vmatprep.subr.mxu0 0.0
      %1319 = vmatpush1.msra.mxu0 0.0
      %1320 = vmatprep.subr.mxu0 0.0
      %1321 = vmatpush1.msra.mxu0 0.0
      %1322 = vmatprep.subr.mxu0 0.0
      %1323 = vmatpush1.msra.mxu0 0.0
      %1324 = vmatprep.subr.mxu0 0.0
      %1325 = vmatpush1.msra.mxu0 0.0
      %1326 = vmatprep.subr.mxu0 0.0
      %1327 = vmatpush1.msra.mxu0 0.0
      %1328 = vmatprep.subr.mxu0 0.0
      %1329 = vmatpush1.msra.mxu0 0.0
      %1330 = vmatprep.subr.mxu0 0.0
      %1331 = vmatpush1.msra.mxu0 0.0
      %1332 = vmatprep.subr.mxu0 0.0
      %1333 = vmatpush1.msra.mxu0 0.0
      %1334 = vmatprep.subr.mxu0 0.0
      %1335 = vmatpush1.msra.mxu0 0.0
      %1336 = vmatprep.subr.mxu0 0.0
      %1337 = vmatpush1.msra.mxu0 0.0
      %1338 = vmatprep.subr.mxu0 0.0
      %1339 = vmatpush1.msra.mxu0 0.0
      %1340 = vmatprep.subr.mxu0 0.0
      %1341 = vmatpush1.msra.mxu0 0.0
      %1342 = vmatprep.subr.mxu0 0.0
      %1343 = vmatpush1.msra.mxu0 0.0
      %1344 = vmatprep.subr.mxu0 0.0
      %1345 = vmatpush1.msra.mxu0 0.0
      %1346 = vmatprep.subr.mxu0 0.0
      %1347 = vmatpush1.msra.mxu0 0.0
      %1348 = vmatprep.mubr.f32.mxu0 0.0
      %1349 = vmatmul.mubr.f32.gmra.mrb[0].mxu0 %v1282
      %v1350 = vpop.f32.mrb[0].mxu0
      %v1351 = vadd.f32 0.0, %v1350
      %v1352 = vpop.f32.mrb[0].mxu0
      %1353 = vdwg.mxu0
      %s1354 = scalar_lea.vmem %s6, 8
      %v1355 = vld [vmem:[%s1354] sm:$0xf]
      %v1356 = vpack.c.bf16 %v1351, %v1351
      %v1358 = vsel %vm744, %v1356, 0
      %v1361 = vsel %vm919, %v1355, 0
      %1363 = vmatprep.subr.bf16.mxu0 0
      %1364 = vmatpush1.bf16.msra.mxu0 %v1361
      %1365 = vmatprep.subr.bf16.mxu0 0
      %1366 = vmatpush1.bf16.msra.mxu0 0
      %1367 = vmatprep.subr.bf16.mxu0 0
      %1368 = vmatpush1.bf16.msra.mxu0 0
      %1369 = vmatprep.subr.bf16.mxu0 0
      %1370 = vmatpush1.bf16.msra.mxu0 0
      %1371 = vmatprep.subr.bf16.mxu0 0
      %1372 = vmatpush1.bf16.msra.mxu0 0
      %1373 = vmatprep.subr.bf16.mxu0 0
      %1374 = vmatpush1.bf16.msra.mxu0 0
      %1375 = vmatprep.subr.bf16.mxu0 0
      %1376 = vmatpush1.bf16.msra.mxu0 0
      %1377 = vmatprep.subr.bf16.mxu0 0
      %1378 = vmatpush1.bf16.msra.mxu0 0
      %1379 = vmatprep.subr.bf16.mxu0 0
      %1380 = vmatpush1.bf16.msra.mxu0 0
      %1381 = vmatprep.subr.bf16.mxu0 0
      %1382 = vmatpush1.bf16.msra.mxu0 0
      %1383 = vmatprep.subr.bf16.mxu0 0
      %1384 = vmatpush1.bf16.msra.mxu0 0
      %1385 = vmatprep.subr.bf16.mxu0 0
      %1386 = vmatpush1.bf16.msra.mxu0 0
      %1387 = vmatprep.subr.bf16.mxu0 0
      %1388 = vmatpush1.bf16.msra.mxu0 0
      %1389 = vmatprep.subr.bf16.mxu0 0
      %1390 = vmatpush1.bf16.msra.mxu0 0
      %1391 = vmatprep.subr.bf16.mxu0 0
      %1392 = vmatpush1.bf16.msra.mxu0 0
      %1393 = vmatprep.subr.bf16.mxu0 0
      %1394 = vmatpush1.bf16.msra.mxu0 0
      %1395 = vmatprep.mubr.bf16.mxu0 0
      %1396 = vmatmul.mubr.bf16.gmra.mrb[0].mxu0 %v1358
      %v1397 = vpop.f32.mrb[0].mxu0
      %v1398 = vadd.f32 0.0, %v1397
      %v1399 = vpop.f32.mrb[0].mxu0
      %v1400 = vpop.f32.mrb[0].mxu0
      %v1401 = vpop.f32.mrb[0].mxu0
      %1402 = vdwg.mxu0
      %v1403 = vadd.f32 %v1186, %v1398
      %1404 = vrot.lane.b32.xlu0 %v735, 104
      %v1405 = vpop.permute.xlu0 %1404
      %1406 = vrot.lane.b32.xlu0 %v735, 72
      %v1407 = vpop.permute.xlu0 %1406
      %v1408 = vsel %vm744, %v1405, 0
      %v1410 = vsel %vm744, %v1407, 0
      %1412 = vmatprep.subr.mxu0 0.0
      %1413 = vmatpush1.xpose.msra.mxu0 %v1410
      %1414 = vmatprep.subr.mxu0 0.0
      %1415 = vmatpush1.xpose.msra.mxu0 0.0
      %1416 = vmatprep.subr.mxu0 0.0
      %1417 = vmatpush1.xpose.msra.mxu0 0.0
      %1418 = vmatprep.subr.mxu0 0.0
      %1419 = vmatpush1.xpose.msra.mxu0 0.0
      %1420 = vmatprep.subr.mxu0 0.0
      %1421 = vmatpush1.xpose.msra.mxu0 0.0
      %1422 = vmatprep.subr.mxu0 0.0
      %1423 = vmatpush1.xpose.msra.mxu0 0.0
      %1424 = vmatprep.subr.mxu0 0.0
      %1425 = vmatpush1.xpose.msra.mxu0 0.0
      %1426 = vmatprep.subr.mxu0 0.0
      %1427 = vmatpush1.xpose.msra.mxu0 0.0
      %1428 = vmatprep.subr.mxu0 0.0
      %1429 = vmatpush1.xpose.msra.mxu0 0.0
      %1430 = vmatprep.subr.mxu0 0.0
      %1431 = vmatpush1.xpose.msra.mxu0 0.0
      %1432 = vmatprep.subr.mxu0 0.0
      %1433 = vmatpush1.xpose.msra.mxu0 0.0
      %1434 = vmatprep.subr.mxu0 0.0
      %1435 = vmatpush1.xpose.msra.mxu0 0.0
      %1436 = vmatprep.subr.mxu0 0.0
      %1437 = vmatpush1.xpose.msra.mxu0 0.0
      %1438 = vmatprep.subr.mxu0 0.0
      %1439 = vmatpush1.xpose.msra.mxu0 0.0
      %1440 = vmatprep.subr.mxu0 0.0
      %1441 = vmatpush1.xpose.msra.mxu0 0.0
      %1442 = vmatprep.subr.mxu0 0.0
      %1443 = vmatpush1.xpose.msra.mxu0 0.0
      %1444 = vmatprep.subr.mxu0 0.0
      %1445 = vmatpush1.xpose.msra.mxu0 0.0
      %1446 = vmatprep.subr.mxu0 0.0
      %1447 = vmatpush1.xpose.msra.mxu0 0.0
      %1448 = vmatprep.subr.mxu0 0.0
      %1449 = vmatpush1.xpose.msra.mxu0 0.0
      %1450 = vmatprep.subr.mxu0 0.0
      %1451 = vmatpush1.xpose.msra.mxu0 0.0
      %1452 = vmatprep.subr.mxu0 0.0
      %1453 = vmatpush1.xpose.msra.mxu0 0.0
      %1454 = vmatprep.subr.mxu0 0.0
      %1455 = vmatpush1.xpose.msra.mxu0 0.0
      %1456 = vmatprep.subr.mxu0 0.0
      %1457 = vmatpush1.xpose.msra.mxu0 0.0
      %1458 = vmatprep.subr.mxu0 0.0
      %1459 = vmatpush1.xpose.msra.mxu0 0.0
      %1460 = vmatprep.subr.mxu0 0.0
      %1461 = vmatpush1.xpose.msra.mxu0 0.0
      %1462 = vmatprep.subr.mxu0 0.0
      %1463 = vmatpush1.xpose.msra.mxu0 0.0
      %1464 = vmatprep.subr.mxu0 0.0
      %1465 = vmatpush1.xpose.msra.mxu0 0.0
      %1466 = vmatprep.subr.mxu0 0.0
      %1467 = vmatpush1.xpose.msra.mxu0 0.0
      %1468 = vmatprep.subr.mxu0 0.0
      %1469 = vmatpush1.xpose.msra.mxu0 0.0
      %1470 = vmatprep.subr.mxu0 0.0
      %1471 = vmatpush1.xpose.msra.mxu0 0.0
      %1472 = vmatprep.subr.mxu0 0.0
      %1473 = vmatpush1.xpose.msra.mxu0 0.0
      %1474 = vmatprep.subr.mxu0 0.0
      %1475 = vmatpush1.xpose.msra.mxu0 0.0
      %1476 = vmatprep.mubr.f32.mxu0 0.0
      %1477 = vmatmul.mubr.f32.gmra.mrb[0].mxu0 %v1408
      %v1478 = vpop.f32.mrb[0].mxu0
      %v1479 = vadd.f32 0.0, %v1478
      %v1480 = vpop.f32.mrb[0].mxu0
      %1481 = vdwg.mxu0
      %v1482 = vmul.f32 %v1479, 0.35355338
      %v1483 = vadd.f32 %v1482, %v824
      %v1484 = vsel %vm744, %v1483, -inf
      %1485 = vmax.xlane.f32.xlu0 %v1484
      %v1486 = vpop.xlane.xlu0 %1485
      %v1487 = vsub.f32 %v1483, %v1486
      %v1488 = vmul.f32 %v1487, 1.442695
      %v1489 = vpow.pop %v1488
      %v1490 = vsel %vm744, %v1489, 0.0
      %1491 = vadd.xlane.f32.xlu0 %v1490
      %v1492 = vpop.xlane.xlu0 %1491
      %v1493 = vrcp.pop %v1492
      %v1494 = vmul.f32 %v1489, %v1493
      %1495 = vrot.lane.b32.xlu0 %v735, 40
      %v1496 = vpop.permute.xlu0 %1495
      %v1499 = vsel %vm744, %v1494, 0
      %1501 = vmatprep.subr.mxu0 0.0
      %1502 = vmatpush1.msra.mxu0 %v1496
      %1503 = vmatprep.subr.mxu0 0.0
      %1504 = vmatpush1.msra.mxu0 0.0
      %1505 = vmatprep.subr.mxu0 0.0
      %1506 = vmatpush1.msra.mxu0 0.0
      %1507 = vmatprep.subr.mxu0 0.0
      %1508 = vmatpush1.msra.mxu0 0.0
      %1509 = vmatprep.subr.mxu0 0.0
      %1510 = vmatpush1.msra.mxu0 0.0
      %1511 = vmatprep.subr.mxu0 0.0
      %1512 = vmatpush1.msra.mxu0 0.0
      %1513 = vmatprep.subr.mxu0 0.0
      %1514 = vmatpush1.msra.mxu0 0.0
      %1515 = vmatprep.subr.mxu0 0.0
      %1516 = vmatpush1.msra.mxu0 0.0
      %1517 = vmatprep.subr.mxu0 0.0
      %1518 = vmatpush1.msra.mxu0 0.0
      %1519 = vmatprep.subr.mxu0 0.0
      %1520 = vmatpush1.msra.mxu0 0.0
      %1521 = vmatprep.subr.mxu0 0.0
      %1522 = vmatpush1.msra.mxu0 0.0
      %1523 = vmatprep.subr.mxu0 0.0
      %1524 = vmatpush1.msra.mxu0 0.0
      %1525 = vmatprep.subr.mxu0 0.0
      %1526 = vmatpush1.msra.mxu0 0.0
      %1527 = vmatprep.subr.mxu0 0.0
      %1528 = vmatpush1.msra.mxu0 0.0
      %1529 = vmatprep.subr.mxu0 0.0
      %1530 = vmatpush1.msra.mxu0 0.0
      %1531 = vmatprep.subr.mxu0 0.0
      %1532 = vmatpush1.msra.mxu0 0.0
      %1533 = vmatprep.subr.mxu0 0.0
      %1534 = vmatpush1.msra.mxu0 0.0
      %1535 = vmatprep.subr.mxu0 0.0
      %1536 = vmatpush1.msra.mxu0 0.0
      %1537 = vmatprep.subr.mxu0 0.0
      %1538 = vmatpush1.msra.mxu0 0.0
      %1539 = vmatprep.subr.mxu0 0.0
      %1540 = vmatpush1.msra.mxu0 0.0
      %1541 = vmatprep.subr.mxu0 0.0
      %1542 = vmatpush1.msra.mxu0 0.0
      %1543 = vmatprep.subr.mxu0 0.0
      %1544 = vmatpush1.msra.mxu0 0.0
      %1545 = vmatprep.subr.mxu0 0.0
      %1546 = vmatpush1.msra.mxu0 0.0
      %1547 = vmatprep.subr.mxu0 0.0
      %1548 = vmatpush1.msra.mxu0 0.0
      %1549 = vmatprep.subr.mxu0 0.0
      %1550 = vmatpush1.msra.mxu0 0.0
      %1551 = vmatprep.subr.mxu0 0.0
      %1552 = vmatpush1.msra.mxu0 0.0
      %1553 = vmatprep.subr.mxu0 0.0
      %1554 = vmatpush1.msra.mxu0 0.0
      %1555 = vmatprep.subr.mxu0 0.0
      %1556 = vmatpush1.msra.mxu0 0.0
      %1557 = vmatprep.subr.mxu0 0.0
      %1558 = vmatpush1.msra.mxu0 0.0
      %1559 = vmatprep.subr.mxu0 0.0
      %1560 = vmatpush1.msra.mxu0 0.0
      %1561 = vmatprep.subr.mxu0 0.0
      %1562 = vmatpush1.msra.mxu0 0.0
      %1563 = vmatprep.subr.mxu0 0.0
      %1564 = vmatpush1.msra.mxu0 0.0
      %1565 = vmatprep.mubr.f32.mxu0 0.0
      %1566 = vmatmul.mubr.f32.gmra.mrb[0].mxu0 %v1499
      %v1567 = vpop.f32.mrb[0].mxu0
      %v1568 = vadd.f32 0.0, %v1567
      %v1569 = vpop.f32.mrb[0].mxu0
      %1570 = vdwg.mxu0
      %s1571 = scalar_lea.vmem %s6, 12
      %v1572 = vld [vmem:[%s1571] sm:$0xf]
      %v1573 = vpack.c.bf16 %v1568, %v1568
      %v1575 = vsel %vm744, %v1573, 0
      %v1578 = vsel %vm919, %v1572, 0
      %1580 = vmatprep.subr.bf16.mxu0 0
      %1581 = vmatpush1.bf16.msra.mxu0 %v1578
      %1582 = vmatprep.subr.bf16.mxu0 0
      %1583 = vmatpush1.bf16.msra.mxu0 0
      %1584 = vmatprep.subr.bf16.mxu0 0
      %1585 = vmatpush1.bf16.msra.mxu0 0
      %1586 = vmatprep.subr.bf16.mxu0 0
      %1587 = vmatpush1.bf16.msra.mxu0 0
      %1588 = vmatprep.subr.bf16.mxu0 0
      %1589 = vmatpush1.bf16.msra.mxu0 0
      %1590 = vmatprep.subr.bf16.mxu0 0
      %1591 = vmatpush1.bf16.msra.mxu0 0
      %1592 = vmatprep.subr.bf16.mxu0 0
      %1593 = vmatpush1.bf16.msra.mxu0 0
      %1594 = vmatprep.subr.bf16.mxu0 0
      %1595 = vmatpush1.bf16.msra.mxu0 0
      %1596 = vmatprep.subr.bf16.mxu0 0
      %1597 = vmatpush1.bf16.msra.mxu0 0
      %1598 = vmatprep.subr.bf16.mxu0 0
      %1599 = vmatpush1.bf16.msra.mxu0 0
      %1600 = vmatprep.subr.bf16.mxu0 0
      %1601 = vmatpush1.bf16.msra.mxu0 0
      %1602 = vmatprep.subr.bf16.mxu0 0
      %1603 = vmatpush1.bf16.msra.mxu0 0
      %1604 = vmatprep.subr.bf16.mxu0 0
      %1605 = vmatpush1.bf16.msra.mxu0 0
      %1606 = vmatprep.subr.bf16.mxu0 0
      %1607 = vmatpush1.bf16.msra.mxu0 0
      %1608 = vmatprep.subr.bf16.mxu0 0
      %1609 = vmatpush1.bf16.msra.mxu0 0
      %1610 = vmatprep.subr.bf16.mxu0 0
      %1611 = vmatpush1.bf16.msra.mxu0 0
      %1612 = vmatprep.mubr.bf16.mxu0 0
      %1613 = vmatmul.mubr.bf16.gmra.mrb[0].mxu0 %v1575
      %v1614 = vpop.f32.mrb[0].mxu0
      %v1615 = vadd.f32 0.0, %v1614
      %v1616 = vpop.f32.mrb[0].mxu0
      %v1617 = vpop.f32.mrb[0].mxu0
      %v1618 = vpop.f32.mrb[0].mxu0
      %1619 = vdwg.mxu0
      %v1620 = vadd.f32 %v1403, %v1615
      %v1621 = vadd.f32 %v1620, %v672
      %v1622 = vld [vmem:[%s8] sm:$0x1]
      %v1623 = vld [vmem:[%s9] sm:$0x1]
      %v1624 = vsel %vm644, %v1621, 0.0
      %1625 = vadd.xlane.f32.xlu0 %v1624
      %v1626 = vpop.xlane.xlu0 %1625
      %v1627 = vmul.f32 %v1626, %v648
      %v1628 = vsub.f32 %v1621, %v1627
      %v1629 = vmul.f32 %v1628, %v1628
      %v1630 = vsel %vm644, %v1629, 0.0
      %1631 = vadd.xlane.f32.xlu0 %v1630
      %v1632 = vpop.xlane.xlu0 %1631
      %v1633 = vmul.f32 %v1632, %v648
      %v1634 = vadd.f32 %v1633, 1e-12
      %v1635 = vrsqrt.pop %v1634
      %v1636 = vmul.f32 %v1628, %v1635
      %v1638 = vlaneseq
      %v1639 = vshrl.u32 %v1638, 7
      %v1640 = vsub.s32 0, %v1639
      %v1641 = vrot.slane %v1622, %v1640
      %v1643 = vmul.f32 %v1636, %v1641
      %v1645 = vlaneseq
      %v1646 = vshrl.u32 %v1645, 7
      %v1647 = vsub.s32 0, %v1646
      %v1648 = vrot.slane %v1623, %v1647
      %v1650 = vadd.f32 %v1643, %v1648
      %v1651 = vld [vmem:[%s10] sm:$0xf]
      %v1652 = vld [vmem:[%s10 + $0x4] sm:$0xf]
      %v1653 = vld [vmem:[%s10 + $0x8] sm:$0xf]
      %v1654 = vld [vmem:[%s10 + $0xc] sm:$0xf]
      %v1655 = vpack.c.bf16 %v1650, %v1650
      %v1656 = vld [vmem:[%s11] sm:$0x1]
      %v1658 = vlaneseq
      %v1659 = vshrl.u32 %v1658, 7
      %v1660 = vsub.s32 0, %v1659
      %v1661 = vrot.slane %v1656, %v1660
      %v1667 = vunpack.c.l.b16 %v1651
      %v1668 = vunpack.c.l.b16 %v1652
      %v1669 = vunpack.c.l.b16 %v1653
      %v1670 = vunpack.c.l.b16 %v1654
      %v1671 = vpack.c.b16 %v1668, %v1667
      %v1672 = vpack.c.b16 %v1670, %v1669
      %v1676 = vsel %vm644, %v1655, 0
      %1678 = vmatprep.subr.bf16.mxu0 0
      %1679 = vmatpush1.bf16.msra.mxu0 %v1671
      %1680 = vmatprep.subr.bf16.mxu0 0
      %1681 = vmatpush1.bf16.msra.mxu0 %v1672
      %1682 = vmatprep.subr.bf16.mxu0 0
      %1683 = vmatpush1.bf16.msra.mxu0 0
      %1684 = vmatprep.subr.bf16.mxu0 0
      %1685 = vmatpush1.bf16.msra.mxu0 0
      %1686 = vmatprep.subr.bf16.mxu0 0
      %1687 = vmatpush1.bf16.msra.mxu0 0
      %1688 = vmatprep.subr.bf16.mxu0 0
      %1689 = vmatpush1.bf16.msra.mxu0 0
      %1690 = vmatprep.subr.bf16.mxu0 0
      %1691 = vmatpush1.bf16.msra.mxu0 0
      %1692 = vmatprep.subr.bf16.mxu0 0
      %1693 = vmatpush1.bf16.msra.mxu0 0
      %1694 = vmatprep.subr.bf16.mxu0 0
      %1695 = vmatpush1.bf16.msra.mxu0 0
      %1696 = vmatprep.subr.bf16.mxu0 0
      %1697 = vmatpush1.bf16.msra.mxu0 0
      %1698 = vmatprep.subr.bf16.mxu0 0
      %1699 = vmatpush1.bf16.msra.mxu0 0
      %1700 = vmatprep.subr.bf16.mxu0 0
      %1701 = vmatpush1.bf16.msra.mxu0 0
      %1702 = vmatprep.subr.bf16.mxu0 0
      %1703 = vmatpush1.bf16.msra.mxu0 0
      %1704 = vmatprep.subr.bf16.mxu0 0
      %1705 = vmatpush1.bf16.msra.mxu0 0
      %1706 = vmatprep.subr.bf16.mxu0 0
      %1707 = vmatpush1.bf16.msra.mxu0 0
      %1708 = vmatprep.subr.bf16.mxu0 0
      %1709 = vmatpush1.bf16.msra.mxu0 0
      %1710 = vmatprep.mubr.bf16.mxu0 0
      %1711 = vmatmul.mubr.bf16.gmra.mrb[0].mxu0 %v1676
      %v1712 = vpop.f32.mrb[0].mxu0
      %v1713 = vadd.f32 %v1661, %v1712
      %v1714 = vpop.f32.mrb[0].mxu0
      %v1715 = vpop.f32.mrb[0].mxu0
      %v1716 = vpop.f32.mrb[0].mxu0
      %1717 = vdwg.mxu0
      %v1718 = vmul.f32 %v1713, %v1713
      %v1719 = vmul.f32 %v1713, %v1718
      %v1720 = vmul.f32 %v1719, 0.044715
      %v1721 = vadd.f32 %v1713, %v1720
      %v1722 = vmul.f32 %v1721, 0.7978846
      %v1723 = vtanh.pop %v1722
      %v1724 = vadd.f32 %v1723, 1.0
      %v1725 = vmul.f32 %v1724, 0.5
      %v1726 = vmul.f32 %v1713, %v1725
      %v1727 = vld [vmem:[%s12] sm:$0xf]
      %v1728 = vld [vmem:[%s12 + $0x4] sm:$0xf]
      %v1729 = vld [vmem:[%s12 + $0x8] sm:$0xf]
      %v1730 = vld [vmem:[%s12 + $0xc] sm:$0xf]
      %v1731 = vld [vmem:[%s12 + $0x10] sm:$0xf]
      %v1732 = vld [vmem:[%s12 + $0x14] sm:$0xf]
      %v1733 = vld [vmem:[%s12 + $0x18] sm:$0xf]
      %v1734 = vld [vmem:[%s12 + $0x1c] sm:$0xf]
      %v1735 = vpack.c.bf16 %v1726, %v1726
      %v1736 = vld [vmem:[%s13] sm:$0x1]
      %v1738 = vlaneseq
      %v1739 = vshrl.u32 %v1738, 7
      %v1740 = vsub.s32 0, %v1739
      %v1741 = vrot.slane %v1736, %v1740
      %v1751 = vunpack.c.l.b16 %v1727
      %v1752 = vunpack.c.l.b16 %v1728
      %v1753 = vunpack.c.l.b16 %v1729
      %v1754 = vunpack.c.l.b16 %v1730
      %v1755 = vunpack.c.l.b16 %v1731
      %v1756 = vunpack.c.l.b16 %v1732
      %v1757 = vunpack.c.l.b16 %v1733
      %v1758 = vunpack.c.l.b16 %v1734
      %v1759 = vpack.c.b16 %v1752, %v1751
      %v1760 = vpack.c.b16 %v1754, %v1753
      %v1761 = vpack.c.b16 %v1756, %v1755
      %v1762 = vpack.c.b16 %v1758, %v1757
      %vm1767 = vcmask 523264
      %v1769 = vsel %vm1767, %v1735, 0
      %1771 = vmatprep.subr.bf16.mxu0 0
      %1772 = vmatpush1.bf16.msra.mxu0 %v1759
      %1773 = vmatprep.subr.bf16.mxu0 0
      %1774 = vmatpush1.bf16.msra.mxu0 %v1760
      %1775 = vmatprep.subr.bf16.mxu0 0
      %1776 = vmatpush1.bf16.msra.mxu0 %v1761
      %1777 = vmatprep.subr.bf16.mxu0 0
      %1778 = vmatpush1.bf16.msra.mxu0 %v1762
      %1779 = vmatprep.subr.bf16.mxu0 0
      %1780 = vmatpush1.bf16.msra.mxu0 0
      %1781 = vmatprep.subr.bf16.mxu0 0
      %1782 = vmatpush1.bf16.msra.mxu0 0
      %1783 = vmatprep.subr.bf16.mxu0 0
      %1784 = vmatpush1.bf16.msra.mxu0 0
      %1785 = vmatprep.subr.bf16.mxu0 0
      %1786 = vmatpush1.bf16.msra.mxu0 0
      %1787 = vmatprep.subr.bf16.mxu0 0
      %1788 = vmatpush1.bf16.msra.mxu0 0
      %1789 = vmatprep.subr.bf16.mxu0 0
      %1790 = vmatpush1.bf16.msra.mxu0 0
      %1791 = vmatprep.subr.bf16.mxu0 0
      %1792 = vmatpush1.bf16.msra.mxu0 0
      %1793 = vmatprep.subr.bf16.mxu0 0
      %1794 = vmatpush1.bf16.msra.mxu0 0
      %1795 = vmatprep.subr.bf16.mxu0 0
      %1796 = vmatpush1.bf16.msra.mxu0 0
      %1797 = vmatprep.subr.bf16.mxu0 0
      %1798 = vmatpush1.bf16.msra.mxu0 0
      %1799 = vmatprep.subr.bf16.mxu0 0
      %1800 = vmatpush1.bf16.msra.mxu0 0
      %1801 = vmatprep.subr.bf16.mxu0 0
      %1802 = vmatpush1.bf16.msra.mxu0 0
      %1803 = vmatprep.mubr.bf16.mxu0 0
      %1804 = vmatmul.mubr.bf16.gmra.mrb[0].mxu0 %v1769
      %v1805 = vpop.f32.mrb[0].mxu0
      %v1806 = vadd.f32 %v1741, %v1805
      %v1807 = vpop.f32.mrb[0].mxu0
      %v1808 = vpop.f32.mrb[0].mxu0
      %v1809 = vpop.f32.mrb[0].mxu0
      %1810 = vdwg.mxu0
      %v1811 = vadd.f32 %v1806, %v1650
      %v1812 = vld [vmem:[%s14] sm:$0x1]
      %v1813 = vld [vmem:[%s15] sm:$0x1]
      %v1814 = vsel %vm644, %v1811, 0.0
      %1815 = vadd.xlane.f32.xlu0 %v1814
      %v1816 = vpop.xlane.xlu0 %1815
      %v1817 = vmul.f32 %v1816, %v648
      %v1818 = vsub.f32 %v1811, %v1817
      %v1819 = vmul.f32 %v1818, %v1818
      %v1820 = vsel %vm644, %v1819, 0.0
      %1821 = vadd.xlane.f32.xlu0 %v1820
      %v1822 = vpop.xlane.xlu0 %1821
      %v1823 = vmul.f32 %v1822, %v648
      %v1824 = vadd.f32 %v1823, 1e-12
      %v1825 = vrsqrt.pop %v1824
      %v1826 = vmul.f32 %v1818, %v1825
      %v1828 = vlaneseq
      %v1829 = vshrl.u32 %v1828, 7
      %v1830 = vsub.s32 0, %v1829
      %v1831 = vrot.slane %v1812, %v1830
      %v1833 = vmul.f32 %v1826, %v1831
      %v1835 = vlaneseq
      %v1836 = vshrl.u32 %v1835, 7
      %v1837 = vsub.s32 0, %v1836
      %v1838 = vrot.slane %v1813, %v1837
      %v1840 = vadd.f32 %v1833, %v1838
      %s1841 = scalar_lea.vmem %s4, 16
      %v1842 = vld [vmem:[%s1841] sm:$0xf]
      %v1843 = vld [vmem:[%s1841 + $0x4] sm:$0xf]
      %v1844 = vld [vmem:[%s1841 + $0x8] sm:$0xf]
      %v1845 = vld [vmem:[%s1841 + $0xc] sm:$0xf]
      %v1846 = vpack.c.bf16 %v1840, %v1840
      %s1847 = scalar_lea.vmem %s5, 1
      %v1848 = vld [vmem:[%s1847] sm:$0x1]
      %v1850 = vlaneseq
      %v1851 = vshrl.u32 %v1850, 7
      %v1852 = vsub.s32 0, %v1851
      %v1853 = vrot.slane %v1848, %v1852
      %v1859 = vunpack.c.l.b16 %v1842
      %v1860 = vunpack.c.l.b16 %v1843
      %v1861 = vunpack.c.l.b16 %v1844
      %v1862 = vunpack.c.l.b16 %v1845
      %v1863 = vpack.c.b16 %v1860, %v1859
      %v1864 = vpack.c.b16 %v1862, %v1861
      %v1868 = vsel %vm644, %v1846, 0
      %1870 = vmatprep.subr.bf16.mxu0 0
      %1871 = vmatpush1.bf16.msra.mxu0 %v1863
      %1872 = vmatprep.subr.bf16.mxu0 0
      %1873 = vmatpush1.bf16.msra.mxu0 %v1864
      %1874 = vmatprep.subr.bf16.mxu0 0
      %1875 = vmatpush1.bf16.msra.mxu0 0
      %1876 = vmatprep.subr.bf16.mxu0 0
      %1877 = vmatpush1.bf16.msra.mxu0 0
      %1878 = vmatprep.subr.bf16.mxu0 0
      %1879 = vmatpush1.bf16.msra.mxu0 0
      %1880 = vmatprep.subr.bf16.mxu0 0
      %1881 = vmatpush1.bf16.msra.mxu0 0
      %1882 = vmatprep.subr.bf16.mxu0 0
      %1883 = vmatpush1.bf16.msra.mxu0 0
      %1884 = vmatprep.subr.bf16.mxu0 0
      %1885 = vmatpush1.bf16.msra.mxu0 0
      %1886 = vmatprep.subr.bf16.mxu0 0
      %1887 = vmatpush1.bf16.msra.mxu0 0
      %1888 = vmatprep.subr.bf16.mxu0 0
      %1889 = vmatpush1.bf16.msra.mxu0 0
      %1890 = vmatprep.subr.bf16.mxu0 0
      %1891 = vmatpush1.bf16.msra.mxu0 0
      %1892 = vmatprep.subr.bf16.mxu0 0
      %1893 = vmatpush1.bf16.msra.mxu0 0
      %1894 = vmatprep.subr.bf16.mxu0 0
      %1895 = vmatpush1.bf16.msra.mxu0 0
      %1896 = vmatprep.subr.bf16.mxu0 0
      %1897 = vmatpush1.bf16.msra.mxu0 0
      %1898 = vmatprep.subr.bf16.mxu0 0
      %1899 = vmatpush1.bf16.msra.mxu0 0
      %1900 = vmatprep.subr.bf16.mxu0 0
      %1901 = vmatpush1.bf16.msra.mxu0 0
      %1902 = vmatprep.mubr.bf16.mxu0 0
      %1903 = vmatmul.mubr.bf16.gmra.mrb[0].mxu0 %v1868
      %v1904 = vpop.f32.mrb[0].mxu0
      %v1905 = vadd.f32 %v1853, %v1904
      %v1906 = vpop.f32.mrb[0].mxu0
      %v1907 = vpop.f32.mrb[0].mxu0
      %v1908 = vpop.f32.mrb[0].mxu0
      %1909 = vdwg.mxu0
      %s1910 = scalar_lea.vmem %s7, 1
      %v1911 = vld [vmem:[%s1910] sm:$0x1]
      %1913 = vrot.lane.b32.xlu0 %v1905, 96
      %v1914 = vpop.permute.xlu0 %1913
      %v1915 = vsel %vm744, %v1905, 0
      %v1917 = vsel %vm744, %v1914, 0
      %1919 = vmatprep.subr.mxu0 0.0
      %1920 = vmatpush1.xpose.msra.mxu0 %v1917
      %1921 = vmatprep.subr.mxu0 0.0
      %1922 = vmatpush1.xpose.msra.mxu0 0.0
      %1923 = vmatprep.subr.mxu0 0.0
      %1924 = vmatpush1.xpose.msra.mxu0 0.0
      %1925 = vmatprep.subr.mxu0 0.0
      %1926 = vmatpush1.xpose.msra.mxu0 0.0
      %1927 = vmatprep.subr.mxu0 0.0
      %1928 = vmatpush1.xpose.msra.mxu0 0.0
      %1929 = vmatprep.subr.mxu0 0.0
      %1930 = vmatpush1.xpose.msra.mxu0 0.0
      %1931 = vmatprep.subr.mxu0 0.0
      %1932 = vmatpush1.xpose.msra.mxu0 0.0
      %1933 = vmatprep.subr.mxu0 0.0
      %1934 = vmatpush1.xpose.msra.mxu0 0.0
      %1935 = vmatprep.subr.mxu0 0.0
      %1936 = vmatpush1.xpose.msra.mxu0 0.0
      %1937 = vmatprep.subr.mxu0 0.0
      %1938 = vmatpush1.xpose.msra.mxu0 0.0
      %1939 = vmatprep.subr.mxu0 0.0
      %1940 = vmatpush1.xpose.msra.mxu0 0.0
      %1941 = vmatprep.subr.mxu0 0.0
      %1942 = vmatpush1.xpose.msra.mxu0 0.0
      %1943 = vmatprep.subr.mxu0 0.0
      %1944 = vmatpush1.xpose.msra.mxu0 0.0
      %1945 = vmatprep.subr.mxu0 0.0
      %1946 = vmatpush1.xpose.msra.mxu0 0.0
      %1947 = vmatprep.subr.mxu0 0.0
      %1948 = vmatpush1.xpose.msra.mxu0 0.0
      %1949 = vmatprep.subr.mxu0 0.0
      %1950 = vmatpush1.xpose.msra.mxu0 0.0
      %1951 = vmatprep.subr.mxu0 0.0
      %1952 = vmatpush1.xpose.msra.mxu0 0.0
      %1953 = vmatprep.subr.mxu0 0.0
      %1954 = vmatpush1.xpose.msra.mxu0 0.0
      %1955 = vmatprep.subr.mxu0 0.0
      %1956 = vmatpush1.xpose.msra.mxu0 0.0
      %1957 = vmatprep.subr.mxu0 0.0
      %1958 = vmatpush1.xpose.msra.mxu0 0.0
      %1959 = vmatprep.subr.mxu0 0.0
      %1960 = vmatpush1.xpose.msra.mxu0 0.0
      %1961 = vmatprep.subr.mxu0 0.0
      %1962 = vmatpush1.xpose.msra.mxu0 0.0
      %1963 = vmatprep.subr.mxu0 0.0
      %1964 = vmatpush1.xpose.msra.mxu0 0.0
      %1965 = vmatprep.subr.mxu0 0.0
      %1966 = vmatpush1.xpose.msra.mxu0 0.0
      %1967 = vmatprep.subr.mxu0 0.0
      %1968 = vmatpush1.xpose.msra.mxu0 0.0
      %1969 = vmatprep.subr.mxu0 0.0
      %1970 = vmatpush1.xpose.msra.mxu0 0.0
      %1971 = vmatprep.subr.mxu0 0.0
      %1972 = vmatpush1.xpose.msra.mxu0 0.0
      %1973 = vmatprep.subr.mxu0 0.0
      %1974 = vmatpush1.xpose.msra.mxu0 0.0
      %1975 = vmatprep.subr.mxu0 0.0
      %1976 = vmatpush1.xpose.msra.mxu0 0.0
      %1977 = vmatprep.subr.mxu0 0.0
      %1978 = vmatpush1.xpose.msra.mxu0 0.0
      %1979 = vmatprep.subr.mxu0 0.0
      %1980 = vmatpush1.xpose.msra.mxu0 0.0
      %1981 = vmatprep.subr.mxu0 0.0
      %1982 = vmatpush1.xpose.msra.mxu0 0.0
      %1983 = vmatprep.mubr.f32.mxu0 0.0
      %1984 = vmatmul.mubr.f32.gmra.mrb[0].mxu0 %v1915
      %v1985 = vpop.f32.mrb[0].mxu0
      %v1986 = vadd.f32 0.0, %v1985
      %v1987 = vpop.f32.mrb[0].mxu0
      %1988 = vdwg.mxu0
      %v1989 = vmul.f32 %v1986, 0.35355338
      %v1990 = vadd.f32 %v1989, %v824
      %v1991 = vsel %vm744, %v1990, -inf
      %1992 = vmax.xlane.f32.xlu0 %v1991
      %v1993 = vpop.xlane.xlu0 %1992
      %v1994 = vsub.f32 %v1990, %v1993
      %v1995 = vmul.f32 %v1994, 1.442695
      %v1996 = vpow.pop %v1995
      %v1997 = vsel %vm744, %v1996, 0.0
      %1998 = vadd.xlane.f32.xlu0 %v1997
      %v1999 = vpop.xlane.xlu0 %1998
      %v2000 = vrcp.pop %v1999
      %v2001 = vmul.f32 %v1996, %v2000
      %2002 = vrot.lane.b32.xlu0 %v1905, 64
      %v2003 = vpop.permute.xlu0 %2002
      %v2006 = vsel %vm744, %v2001, 0
      %2008 = vmatprep.subr.mxu0 0.0
      %2009 = vmatpush1.msra.mxu0 %v2003
      %2010 = vmatprep.subr.mxu0 0.0
      %2011 = vmatpush1.msra.mxu0 0.0
      %2012 = vmatprep.subr.mxu0 0.0
      %2013 = vmatpush1.msra.mxu0 0.0
      %2014 = vmatprep.subr.mxu0 0.0
      %2015 = vmatpush1.msra.mxu0 0.0
      %2016 = vmatprep.subr.mxu0 0.0
      %2017 = vmatpush1.msra.mxu0 0.0
      %2018 = vmatprep.subr.mxu0 0.0
      %2019 = vmatpush1.msra.mxu0 0.0
      %2020 = vmatprep.subr.mxu0 0.0
      %2021 = vmatpush1.msra.mxu0 0.0
      %2022 = vmatprep.subr.mxu0 0.0
      %2023 = vmatpush1.msra.mxu0 0.0
      %2024 = vmatprep.subr.mxu0 0.0
      %2025 = vmatpush1.msra.mxu0 0.0
      %2026 = vmatprep.subr.mxu0 0.0
      %2027 = vmatpush1.msra.mxu0 0.0
      %2028 = vmatprep.subr.mxu0 0.0
      %2029 = vmatpush1.msra.mxu0 0.0
      %2030 = vmatprep.subr.mxu0 0.0
      %2031 = vmatpush1.msra.mxu0 0.0
      %2032 = vmatprep.subr.mxu0 0.0
      %2033 = vmatpush1.msra.mxu0 0.0
      %2034 = vmatprep.subr.mxu0 0.0
      %2035 = vmatpush1.msra.mxu0 0.0
      %2036 = vmatprep.subr.mxu0 0.0
      %2037 = vmatpush1.msra.mxu0 0.0
      %2038 = vmatprep.subr.mxu0 0.0
      %2039 = vmatpush1.msra.mxu0 0.0
      %2040 = vmatprep.subr.mxu0 0.0
      %2041 = vmatpush1.msra.mxu0 0.0
      %2042 = vmatprep.subr.mxu0 0.0
      %2043 = vmatpush1.msra.mxu0 0.0
      %2044 = vmatprep.subr.mxu0 0.0
      %2045 = vmatpush1.msra.mxu0 0.0
      %2046 = vmatprep.subr.mxu0 0.0
      %2047 = vmatpush1.msra.mxu0 0.0
      %2048 = vmatprep.subr.mxu0 0.0
      %2049 = vmatpush1.msra.mxu0 0.0
      %2050 = vmatprep.subr.mxu0 0.0
      %2051 = vmatpush1.msra.mxu0 0.0
      %2052 = vmatprep.subr.mxu0 0.0
      %2053 = vmatpush1.msra.mxu0 0.0
      %2054 = vmatprep.subr.mxu0 0.0
      %2055 = vmatpush1.msra.mxu0 0.0
      %2056 = vmatprep.subr.mxu0 0.0
      %2057 = vmatpush1.msra.mxu0 0.0
      %2058 = vmatprep.subr.mxu0 0.0
      %2059 = vmatpush1.msra.mxu0 0.0
      %2060 = vmatprep.subr.mxu0 0.0
      %2061 = vmatpush1.msra.mxu0 0.0
      %2062 = vmatprep.subr.mxu0 0.0
      %2063 = vmatpush1.msra.mxu0 0.0
      %2064 = vmatprep.subr.mxu0 0.0
      %2065 = vmatpush1.msra.mxu0 0.0
      %2066 = vmatprep.subr.mxu0 0.0
      %2067 = vmatpush1.msra.mxu0 0.0
      %2068 = vmatprep.subr.mxu0 0.0
      %2069 = vmatpush1.msra.mxu0 0.0
      %2070 = vmatprep.subr.mxu0 0.0
      %2071 = vmatpush1.msra.mxu0 0.0
      %2072 = vmatprep.mubr.f32.mxu0 0.0
      %2073 = vmatmul.mubr.f32.gmra.mrb[0].mxu0 %v2006
      %v2074 = vpop.f32.mrb[0].mxu0
      %v2075 = vadd.f32 0.0, %v2074
      %v2076 = vpop.f32.mrb[0].mxu0
      %2077 = vdwg.mxu0
      %s2078 = scalar_lea.vmem %s6, 16
      %v2079 = vld [vmem:[%s2078] sm:$0xf]
      %v2080 = vpack.c.bf16 %v2075, %v2075
      %v2082 = vsel %vm744, %v2080, 0
      %v2085 = vsel %vm919, %v2079, 0
      %2087 = vmatprep.subr.bf16.mxu0 0
      %2088 = vmatpush1.bf16.msra.mxu0 %v2085
      %2089 = vmatprep.subr.bf16.mxu0 0
      %2090 = vmatpush1.bf16.msra.mxu0 0
      %2091 = vmatprep.subr.bf16.mxu0 0
      %2092 = vmatpush1.bf16.msra.mxu0 0
      %2093 = vmatprep.subr.bf16.mxu0 0
      %2094 = vmatpush1.bf16.msra.mxu0 0
      %2095 = vmatprep.subr.bf16.mxu0 0
      %2096 = vmatpush1.bf16.msra.mxu0 0
      %2097 = vmatprep.subr.bf16.mxu0 0
      %2098 = vmatpush1.bf16.msra.mxu0 0
      %2099 = vmatprep.subr.bf16.mxu0 0
      %2100 = vmatpush1.bf16.msra.mxu0 0
      %2101 = vmatprep.subr.bf16.mxu0 0
      %2102 = vmatpush1.bf16.msra.mxu0 0
      %2103 = vmatprep.subr.bf16.mxu0 0
      %2104 = vmatpush1.bf16.msra.mxu0 0
      %2105 = vmatprep.subr.bf16.mxu0 0
      %2106 = vmatpush1.bf16.msra.mxu0 0
      %2107 = vmatprep.subr.bf16.mxu0 0
      %2108 = vmatpush1.bf16.msra.mxu0 0
      %2109 = vmatprep.subr.bf16.mxu0 0
      %2110 = vmatpush1.bf16.msra.mxu0 0
      %2111 = vmatprep.subr.bf16.mxu0 0
      %2112 = vmatpush1.bf16.msra.mxu0 0
      %2113 = vmatprep.subr.bf16.mxu0 0
      %2114 = vmatpush1.bf16.msra.mxu0 0
      %2115 = vmatprep.subr.bf16.mxu0 0
      %2116 = vmatpush1.bf16.msra.mxu0 0
      %2117 = vmatprep.subr.bf16.mxu0 0
      %2118 = vmatpush1.bf16.msra.mxu0 0
      %2119 = vmatprep.mubr.bf16.mxu0 0
      %2120 = vmatmul.mubr.bf16.gmra.mrb[0].mxu0 %v2082
      %v2121 = vpop.f32.mrb[0].mxu0
      %v2122 = vadd.f32 0.0, %v2121
      %v2123 = vpop.f32.mrb[0].mxu0
      %v2124 = vpop.f32.mrb[0].mxu0
      %v2125 = vpop.f32.mrb[0].mxu0
      %2126 = vdwg.mxu0
      %v2128 = vlaneseq
      %v2129 = vshrl.u32 %v2128, 7
      %v2130 = vsub.s32 0, %v2129
      %v2131 = vrot.slane %v1911, %v2130
      %v2133 = vadd.f32 %v2131, %v2122
      %2134 = vrot.lane.b32.xlu0 %v1905, 120
      %v2135 = vpop.permute.xlu0 %2134
      %2136 = vrot.lane.b32.xlu0 %v1905, 88
      %v2137 = vpop.permute.xlu0 %2136
      %v2138 = vsel %vm744, %v2135, 0
      %v2140 = vsel %vm744, %v2137, 0
      %2142 = vmatprep.subr.mxu0 0.0
      %2143 = vmatpush1.xpose.msra.mxu0 %v2140
      %2144 = vmatprep.subr.mxu0 0.0
      %2145 = vmatpush1.xpose.msra.mxu0 0.0
      %2146 = vmatprep.subr.mxu0 0.0
      %2147 = vmatpush1.xpose.msra.mxu0 0.0
      %2148 = vmatprep.subr.mxu0 0.0
      %2149 = vmatpush1.xpose.msra.mxu0 0.0
      %2150 = vmatprep.subr.mxu0 0.0
      %2151 = vmatpush1.xpose.msra.mxu0 0.0
      %2152 = vmatprep.subr.mxu0 0.0
      %2153 = vmatpush1.xpose.msra.mxu0 0.0
      %2154 = vmatprep.subr.mxu0 0.0
      %2155 = vmatpush1.xpose.msra.mxu0 0.0
      %2156 = vmatprep.subr.mxu0 0.0
      %2157 = vmatpush1.xpose.msra.mxu0 0.0
      %2158 = vmatprep.subr.mxu0 0.0
      %2159 = vmatpush1.xpose.msra.mxu0 0.0
      %2160 = vmatprep.subr.mxu0 0.0
      %2161 = vmatpush1.xpose.msra.mxu0 0.0
      %2162 = vmatprep.subr.mxu0 0.0
      %2163 = vmatpush1.xpose.msra.mxu0 0.0
      %2164 = vmatprep.subr.mxu0 0.0
      %2165 = vmatpush1.xpose.msra.mxu0 0.0
      %2166 = vmatprep.subr.mxu0 0.0
      %2167 = vmatpush1.xpose.msra.mxu0 0.0
      %2168 = vmatprep.subr.mxu0 0.0
      %2169 = vmatpush1.xpose.msra.mxu0 0.0
      %2170 = vmatprep.subr.mxu0 0.0
      %2171 = vmatpush1.xpose.msra.mxu0 0.0
      %2172 = vmatprep.subr.mxu0 0.0
      %2173 = vmatpush1.xpose.msra.mxu0 0.0
      %2174 = vmatprep.subr.mxu0 0.0
      %2175 = vmatpush1.xpose.msra.mxu0 0.0
      %2176 = vmatprep.subr.mxu0 0.0
      %2177 = vmatpush1.xpose.msra.mxu0 0.0
      %2178 = vmatprep.subr.mxu0 0.0
      %2179 = vmatpush1.xpose.msra.mxu0 0.0
      %2180 = vmatprep.subr.mxu0 0.0
      %2181 = vmatpush1.xpose.msra.mxu0 0.0
      %2182 = vmatprep.subr.mxu0 0.0
      %2183 = vmatpush1.xpose.msra.mxu0 0.0
      %2184 = vmatprep.subr.mxu0 0.0
      %2185 = vmatpush1.xpose.msra.mxu0 0.0
      %2186 = vmatprep.subr.mxu0 0.0
      %2187 = vmatpush1.xpose.msra.mxu0 0.0
      %2188 = vmatprep.subr.mxu0 0.0
      %2189 = vmatpush1.xpose.msra.mxu0 0.0
      %2190 = vmatprep.subr.mxu0 0.0
      %2191 = vmatpush1.xpose.msra.mxu0 0.0
      %2192 = vmatprep.subr.mxu0 0.0
      %2193 = vmatpush1.xpose.msra.mxu0 0.0
      %2194 = vmatprep.subr.mxu0 0.0
      %2195 = vmatpush1.xpose.msra.mxu0 0.0
      %2196 = vmatprep.subr.mxu0 0.0
      %2197 = vmatpush1.xpose.msra.mxu0 0.0
      %2198 = vmatprep.subr.mxu0 0.0
      %2199 = vmatpush1.xpose.msra.mxu0 0.0
      %2200 = vmatprep.subr.mxu0 0.0
      %2201 = vmatpush1.xpose.msra.mxu0 0.0
      %2202 = vmatprep.subr.mxu0 0.0
      %2203 = vmatpush1.xpose.msra.mxu0 0.0
      %2204 = vmatprep.subr.mxu0 0.0
      %2205 = vmatpush1.xpose.msra.mxu0 0.0
      %2206 = vmatprep.mubr.f32.mxu0 0.0
      %2207 = vmatmul.mubr.f32.gmra.mrb[0].mxu0 %v2138
      %v2208 = vpop.f32.mrb[0].mxu0
      %v2209 = vadd.f32 0.0, %v2208
      %v2210 = vpop.f32.mrb[0].mxu0
      %2211 = vdwg.mxu0
      %v2212 = vmul.f32 %v2209, 0.35355338
      %v2213 = vadd.f32 %v2212, %v824
      %v2214 = vsel %vm744, %v2213, -inf
      %2215 = vmax.xlane.f32.xlu0 %v2214
      %v2216 = vpop.xlane.xlu0 %2215
      %v2217 = vsub.f32 %v2213, %v2216
      %v2218 = vmul.f32 %v2217, 1.442695
      %v2219 = vpow.pop %v2218
      %v2220 = vsel %vm744, %v2219, 0.0
      %2221 = vadd.xlane.f32.xlu0 %v2220
      %v2222 = vpop.xlane.xlu0 %2221
      %v2223 = vrcp.pop %v2222
      %v2224 = vmul.f32 %v2219, %v2223
      %2225 = vrot.lane.b32.xlu0 %v1905, 56
      %v2226 = vpop.permute.xlu0 %2225
      %v2229 = vsel %vm744, %v2224, 0
      %2231 = vmatprep.subr.mxu0 0.0
      %2232 = vmatpush1.msra.mxu0 %v2226
      %2233 = vmatprep.subr.mxu0 0.0
      %2234 = vmatpush1.msra.mxu0 0.0
      %2235 = vmatprep.subr.mxu0 0.0
      %2236 = vmatpush1.msra.mxu0 0.0
      %2237 = vmatprep.subr.mxu0 0.0
      %2238 = vmatpush1.msra.mxu0 0.0
      %2239 = vmatprep.subr.mxu0 0.0
      %2240 = vmatpush1.msra.mxu0 0.0
      %2241 = vmatprep.subr.mxu0 0.0
      %2242 = vmatpush1.msra.mxu0 0.0
      %2243 = vmatprep.subr.mxu0 0.0
      %2244 = vmatpush1.msra.mxu0 0.0
      %2245 = vmatprep.subr.mxu0 0.0
      %2246 = vmatpush1.msra.mxu0 0.0
      %2247 = vmatprep.subr.mxu0 0.0
      %2248 = vmatpush1.msra.mxu0 0.0
      %2249 = vmatprep.subr.mxu0 0.0
      %2250 = vmatpush1.msra.mxu0 0.0
      %2251 = vmatprep.subr.mxu0 0.0
      %2252 = vmatpush1.msra.mxu0 0.0
      %2253 = vmatprep.subr.mxu0 0.0
      %2254 = vmatpush1.msra.mxu0 0.0
      %2255 = vmatprep.subr.mxu0 0.0
      %2256 = vmatpush1.msra.mxu0 0.0
      %2257 = vmatprep.subr.mxu0 0.0
      %2258 = vmatpush1.msra.mxu0 0.0
      %2259 = vmatprep.subr.mxu0 0.0
      %2260 = vmatpush1.msra.mxu0 0.0
      %2261 = vmatprep.subr.mxu0 0.0
      %2262 = vmatpush1.msra.mxu0 0.0
      %2263 = vmatprep.subr.mxu0 0.0
      %2264 = vmatpush1.msra.mxu0 0.0
      %2265 = vmatprep.subr.mxu0 0.0
      %2266 = vmatpush1.msra.mxu0 0.0
      %2267 = vmatprep.subr.mxu0 0.0
      %2268 = vmatpush1.msra.mxu0 0.0
      %2269 = vmatprep.subr.mxu0 0.0
      %2270 = vmatpush1.msra.mxu0 0.0
      %2271 = vmatprep.subr.mxu0 0.0
      %2272 = vmatpush1.msra.mxu0 0.0
      %2273 = vmatprep.subr.mxu0 0.0
      %2274 = vmatpush1.msra.mxu0 0.0
      %2275 = vmatprep.subr.mxu0 0.0
      %2276 = vmatpush1.msra.mxu0 0.0
      %2277 = vmatprep.subr.mxu0 0.0
      %2278 = vmatpush1.msra.mxu0 0.0
      %2279 = vmatprep.subr.mxu0 0.0
      %2280 = vmatpush1.msra.mxu0 0.0
      %2281 = vmatprep.subr.mxu0 0.0
      %2282 = vmatpush1.msra.mxu0 0.0
      %2283 = vmatprep.subr.mxu0 0.0
      %2284 = vmatpush1.msra.mxu0 0.0
      %2285 = vmatprep.subr.mxu0 0.0
      %2286 = vmatpush1.msra.mxu0 0.0
      %2287 = vmatprep.subr.mxu0 0.0
      %2288 = vmatpush1.msra.mxu0 0.0
      %2289 = vmatprep.subr.mxu0 0.0
      %2290 = vmatpush1.msra.mxu0 0.0
      %2291 = vmatprep.subr.mxu0 0.0
      %2292 = vmatpush1.msra.mxu0 0.0
      %2293 = vmatprep.subr.mxu0 0.0
      %2294 = vmatpush1.msra.mxu0 0.0
      %2295 = vmatprep.mubr.f32.mxu0 0.0
      %2296 = vmatmul.mubr.f32.gmra.mrb[0].mxu0 %v2229
      %v2297 = vpop.f32.mrb[0].mxu0
      %v2298 = vadd.f32 0.0, %v2297
      %v2299 = vpop.f32.mrb[0].mxu0
      %2300 = vdwg.mxu0
      %s2301 = scalar_lea.vmem %s6, 20
      %v2302 = vld [vmem:[%s2301] sm:$0xf]
      %v2303 = vpack.c.bf16 %v2298, %v2298
      %v2305 = vsel %vm744, %v2303, 0
      %v2308 = vsel %vm919, %v2302, 0
      %2310 = vmatprep.subr.bf16.mxu0 0
      %2311 = vmatpush1.bf16.msra.mxu0 %v2308
      %2312 = vmatprep.subr.bf16.mxu0 0
      %2313 = vmatpush1.bf16.msra.mxu0 0
      %2314 = vmatprep.subr.bf16.mxu0 0
      %2315 = vmatpush1.bf16.msra.mxu0 0
      %2316 = vmatprep.subr.bf16.mxu0 0
      %2317 = vmatpush1.bf16.msra.mxu0 0
      %2318 = vmatprep.subr.bf16.mxu0 0
      %2319 = vmatpush1.bf16.msra.mxu0 0
      %2320 = vmatprep.subr.bf16.mxu0 0
      %2321 = vmatpush1.bf16.msra.mxu0 0
      %2322 = vmatprep.subr.bf16.mxu0 0
      %2323 = vmatpush1.bf16.msra.mxu0 0
      %2324 = vmatprep.subr.bf16.mxu0 0
      %2325 = vmatpush1.bf16.msra.mxu0 0
      %2326 = vmatprep.subr.bf16.mxu0 0
      %2327 = vmatpush1.bf16.msra.mxu0 0
      %2328 = vmatprep.subr.bf16.mxu0 0
      %2329 = vmatpush1.bf16.msra.mxu0 0
      %2330 = vmatprep.subr.bf16.mxu0 0
      %2331 = vmatpush1.bf16.msra.mxu0 0
      %2332 = vmatprep.subr.bf16.mxu0 0
      %2333 = vmatpush1.bf16.msra.mxu0 0
      %2334 = vmatprep.subr.bf16.mxu0 0
      %2335 = vmatpush1.bf16.msra.mxu0 0
      %2336 = vmatprep.subr.bf16.mxu0 0
      %2337 = vmatpush1.bf16.msra.mxu0 0
      %2338 = vmatprep.subr.bf16.mxu0 0
      %2339 = vmatpush1.bf16.msra.mxu0 0
      %2340 = vmatprep.subr.bf16.mxu0 0
      %2341 = vmatpush1.bf16.msra.mxu0 0
      %2342 = vmatprep.mubr.bf16.mxu0 0
      %2343 = vmatmul.mubr.bf16.gmra.mrb[0].mxu0 %v2305
      %v2344 = vpop.f32.mrb[0].mxu0
      %v2345 = vadd.f32 0.0, %v2344
      %v2346 = vpop.f32.mrb[0].mxu0
      %v2347 = vpop.f32.mrb[0].mxu0
      %v2348 = vpop.f32.mrb[0].mxu0
      %2349 = vdwg.mxu0
      %v2350 = vadd.f32 %v2133, %v2345
      %2351 = vrot.lane.b32.xlu0 %v1905, 112
      %v2352 = vpop.permute.xlu0 %2351
      %2353 = vrot.lane.b32.xlu0 %v1905, 80
      %v2354 = vpop.permute.xlu0 %2353
      %v2355 = vsel %vm744, %v2352, 0
      %v2357 = vsel %vm744, %v2354, 0
      %2359 = vmatprep.subr.mxu0 0.0
      %2360 = vmatpush1.xpose.msra.mxu0 %v2357
      %2361 = vmatprep.subr.mxu0 0.0
      %2362 = vmatpush1.xpose.msra.mxu0 0.0
      %2363 = vmatprep.subr.mxu0 0.0
      %2364 = vmatpush1.xpose.msra.mxu0 0.0
      %2365 = vmatprep.subr.mxu0 0.0
      %2366 = vmatpush1.xpose.msra.mxu0 0.0
      %2367 = vmatprep.subr.mxu0 0.0
      %2368 = vmatpush1.xpose.msra.mxu0 0.0
      %2369 = vmatprep.subr.mxu0 0.0
      %2370 = vmatpush1.xpose.msra.mxu0 0.0
      %2371 = vmatprep.subr.mxu0 0.0
      %2372 = vmatpush1.xpose.msra.mxu0 0.0
      %2373 = vmatprep.subr.mxu0 0.0
      %2374 = vmatpush1.xpose.msra.mxu0 0.0
      %2375 = vmatprep.subr.mxu0 0.0
      %2376 = vmatpush1.xpose.msra.mxu0 0.0
      %2377 = vmatprep.subr.mxu0 0.0
      %2378 = vmatpush1.xpose.msra.mxu0 0.0
      %2379 = vmatprep.subr.mxu0 0.0
      %2380 = vmatpush1.xpose.msra.mxu0 0.0
      %2381 = vmatprep.subr.mxu0 0.0
      %2382 = vmatpush1.xpose.msra.mxu0 0.0
      %2383 = vmatprep.subr.mxu0 0.0
      %2384 = vmatpush1.xpose.msra.mxu0 0.0
      %2385 = vmatprep.subr.mxu0 0.0
      %2386 = vmatpush1.xpose.msra.mxu0 0.0
      %2387 = vmatprep.subr.mxu0 0.0
      %2388 = vmatpush1.xpose.msra.mxu0 0.0
      %2389 = vmatprep.subr.mxu0 0.0
      %2390 = vmatpush1.xpose.msra.mxu0 0.0
      %2391 = vmatprep.subr.mxu0 0.0
      %2392 = vmatpush1.xpose.msra.mxu0 0.0
      %2393 = vmatprep.subr.mxu0 0.0
      %2394 = vmatpush1.xpose.msra.mxu0 0.0
      %2395 = vmatprep.subr.mxu0 0.0
      %2396 = vmatpush1.xpose.msra.mxu0 0.0
      %2397 = vmatprep.subr.mxu0 0.0
      %2398 = vmatpush1.xpose.msra.mxu0 0.0
      %2399 = vmatprep.subr.mxu0 0.0
      %2400 = vmatpush1.xpose.msra.mxu0 0.0
      %2401 = vmatprep.subr.mxu0 0.0
      %2402 = vmatpush1.xpose.msra.mxu0 0.0
      %2403 = vmatprep.subr.mxu0 0.0
      %2404 = vmatpush1.xpose.msra.mxu0 0.0
      %2405 = vmatprep.subr.mxu0 0.0
      %2406 = vmatpush1.xpose.msra.mxu0 0.0
      %2407 = vmatprep.subr.mxu0 0.0
      %2408 = vmatpush1.xpose.msra.mxu0 0.0
      %2409 = vmatprep.subr.mxu0 0.0
      %2410 = vmatpush1.xpose.msra.mxu0 0.0
      %2411 = vmatprep.subr.mxu0 0.0
      %2412 = vmatpush1.xpose.msra.mxu0 0.0
      %2413 = vmatprep.subr.mxu0 0.0
      %2414 = vmatpush1.xpose.msra.mxu0 0.0
      %2415 = vmatprep.subr.mxu0 0.0
      %2416 = vmatpush1.xpose.msra.mxu0 0.0
      %2417 = vmatprep.subr.mxu0 0.0
      %2418 = vmatpush1.xpose.msra.mxu0 0.0
      %2419 = vmatprep.subr.mxu0 0.0
      %2420 = vmatpush1.xpose.msra.mxu0 0.0
      %2421 = vmatprep.subr.mxu0 0.0
      %2422 = vmatpush1.xpose.msra.mxu0 0.0
      %2423 = vmatprep.mubr.f32.mxu0 0.0
      %2424 = vmatmul.mubr.f32.gmra.mrb[0].mxu0 %v2355
      %v2425 = vpop.f32.mrb[0].mxu0
      %v2426 = vadd.f32 0.0, %v2425
      %v2427 = vpop.f32.mrb[0].mxu0
      %2428 = vdwg.mxu0
      %v2429 = vmul.f32 %v2426, 0.35355338
      %v2430 = vadd.f32 %v2429, %v824
      %v2431 = vsel %vm744, %v2430, -inf
      %2432 = vmax.xlane.f32.xlu0 %v2431
      %v2433 = vpop.xlane.xlu0 %2432
      %v2434 = vsub.f32 %v2430, %v2433
      %v2435 = vmul.f32 %v2434, 1.442695
      %v2436 = vpow.pop %v2435
      %v2437 = vsel %vm744, %v2436, 0.0
      %2438 = vadd.xlane.f32.xlu0 %v2437
      %v2439 = vpop.xlane.xlu0 %2438
      %v2440 = vrcp.pop %v2439
      %v2441 = vmul.f32 %v2436, %v2440
      %2442 = vrot.lane.b32.xlu0 %v1905, 48
      %v2443 = vpop.permute.xlu0 %2442
      %v2446 = vsel %vm744, %v2441, 0
      %2448 = vmatprep.subr.mxu0 0.0
      %2449 = vmatpush1.msra.mxu0 %v2443
      %2450 = vmatprep.subr.mxu0 0.0
      %2451 = vmatpush1.msra.mxu0 0.0
      %2452 = vmatprep.subr.mxu0 0.0
      %2453 = vmatpush1.msra.mxu0 0.0
      %2454 = vmatprep.subr.mxu0 0.0
      %2455 = vmatpush1.msra.mxu0 0.0
      %2456 = vmatprep.subr.mxu0 0.0
      %2457 = vmatpush1.msra.mxu0 0.0
      %2458 = vmatprep.subr.mxu0 0.0
      %2459 = vmatpush1.msra.mxu0 0.0
      %2460 = vmatprep.subr.mxu0 0.0
      %2461 = vmatpush1.msra.mxu0 0.0
      %2462 = vmatprep.subr.mxu0 0.0
      %2463 = vmatpush1.msra.mxu0 0.0
      %2464 = vmatprep.subr.mxu0 0.0
      %2465 = vmatpush1.msra.mxu0 0.0
      %2466 = vmatprep.subr.mxu0 0.0
      %2467 = vmatpush1.msra.mxu0 0.0
      %2468 = vmatprep.subr.mxu0 0.0
      %2469 = vmatpush1.msra.mxu0 0.0
      %2470 = vmatprep.subr.mxu0 0.0
      %2471 = vmatpush1.msra.mxu0 0.0
      %2472 = vmatprep.subr.mxu0 0.0
      %2473 = vmatpush1.msra.mxu0 0.0
      %2474 = vmatprep.subr.mxu0 0.0
      %2475 = vmatpush1.msra.mxu0 0.0
      %2476 = vmatprep.subr.mxu0 0.0
      %2477 = vmatpush1.msra.mxu0 0.0
      %2478 = vmatprep.subr.mxu0 0.0
      %2479 = vmatpush1.msra.mxu0 0.0
      %2480 = vmatprep.subr.mxu0 0.0
      %2481 = vmatpush1.msra.mxu0 0.0
      %2482 = vmatprep.subr.mxu0 0.0
      %2483 = vmatpush1.msra.mxu0 0.0
      %2484 = vmatprep.subr.mxu0 0.0
      %2485 = vmatpush1.msra.mxu0 0.0
      %2486 = vmatprep.subr.mxu0 0.0
      %2487 = vmatpush1.msra.mxu0 0.0
      %2488 = vmatprep.subr.mxu0 0.0
      %2489 = vmatpush1.msra.mxu0 0.0
      %2490 = vmatprep.subr.mxu0 0.0
      %2491 = vmatpush1.msra.mxu0 0.0
      %2492 = vmatprep.subr.mxu0 0.0
      %2493 = vmatpush1.msra.mxu0 0.0
      %2494 = vmatprep.subr.mxu0 0.0
      %2495 = vmatpush1.msra.mxu0 0.0
      %2496 = vmatprep.subr.mxu0 0.0
      %2497 = vmatpush1.msra.mxu0 0.0
      %2498 = vmatprep.subr.mxu0 0.0
      %2499 = vmatpush1.msra.mxu0 0.0
      %2500 = vmatprep.subr.mxu0 0.0
      %2501 = vmatpush1.msra.mxu0 0.0
      %2502 = vmatprep.subr.mxu0 0.0
      %2503 = vmatpush1.msra.mxu0 0.0
      %2504 = vmatprep.subr.mxu0 0.0
      %2505 = vmatpush1.msra.mxu0 0.0
      %2506 = vmatprep.subr.mxu0 0.0
      %2507 = vmatpush1.msra.mxu0 0.0
      %2508 = vmatprep.subr.mxu0 0.0
      %2509 = vmatpush1.msra.mxu0 0.0
      %2510 = vmatprep.subr.mxu0 0.0
      %2511 = vmatpush1.msra.mxu0 0.0
      %2512 = vmatprep.mubr.f32.mxu0 0.0
      %2513 = vmatmul.mubr.f32.gmra.mrb[0].mxu0 %v2446
      %v2514 = vpop.f32.mrb[0].mxu0
      %v2515 = vadd.f32 0.0, %v2514
      %v2516 = vpop.f32.mrb[0].mxu0
      %2517 = vdwg.mxu0
      %s2518 = scalar_lea.vmem %s6, 24
      %v2519 = vld [vmem:[%s2518] sm:$0xf]
      %v2520 = vpack.c.bf16 %v2515, %v2515
      %v2522 = vsel %vm744, %v2520, 0
      %v2525 = vsel %vm919, %v2519, 0
      %2527 = vmatprep.subr.bf16.mxu0 0
      %2528 = vmatpush1.bf16.msra.mxu0 %v2525
      %2529 = vmatprep.subr.bf16.mxu0 0
      %2530 = vmatpush1.bf16.msra.mxu0 0
      %2531 = vmatprep.subr.bf16.mxu0 0
      %2532 = vmatpush1.bf16.msra.mxu0 0
      %2533 = vmatprep.subr.bf16.mxu0 0
      %2534 = vmatpush1.bf16.msra.mxu0 0
      %2535 = vmatprep.subr.bf16.mxu0 0
      %2536 = vmatpush1.bf16.msra.mxu0 0
      %2537 = vmatprep.subr.bf16.mxu0 0
      %2538 = vmatpush1.bf16.msra.mxu0 0
      %2539 = vmatprep.subr.bf16.mxu0 0
      %2540 = vmatpush1.bf16.msra.mxu0 0
      %2541 = vmatprep.subr.bf16.mxu0 0
      %2542 = vmatpush1.bf16.msra.mxu0 0
      %2543 = vmatprep.subr.bf16.mxu0 0
      %2544 = vmatpush1.bf16.msra.mxu0 0
      %2545 = vmatprep.subr.bf16.mxu0 0
      %2546 = vmatpush1.bf16.msra.mxu0 0
      %2547 = vmatprep.subr.bf16.mxu0 0
      %2548 = vmatpush1.bf16.msra.mxu0 0
      %2549 = vmatprep.subr.bf16.mxu0 0
      %2550 = vmatpush1.bf16.msra.mxu0 0
      %2551 = vmatprep.subr.bf16.mxu0 0
      %2552 = vmatpush1.bf16.msra.mxu0 0
      %2553 = vmatprep.subr.bf16.mxu0 0
      %2554 = vmatpush1.bf16.msra.mxu0 0
      %2555 = vmatprep.subr.bf16.mxu0 0
      %2556 = vmatpush1.bf16.msra.mxu0 0
      %2557 = vmatprep.subr.bf16.mxu0 0
      %2558 = vmatpush1.bf16.msra.mxu0 0
      %2559 = vmatprep.mubr.bf16.mxu0 0
      %2560 = vmatmul.mubr.bf16.gmra.mrb[0].mxu0 %v2522
      %v2561 = vpop.f32.mrb[0].mxu0
      %v2562 = vadd.f32 0.0, %v2561
      %v2563 = vpop.f32.mrb[0].mxu0
      %v2564 = vpop.f32.mrb[0].mxu0
      %v2565 = vpop.f32.mrb[0].mxu0
      %2566 = vdwg.mxu0
      %v2567 = vadd.f32 %v2350, %v2562
      %2568 = vrot.lane.b32.xlu0 %v1905, 104
      %v2569 = vpop.permute.xlu0 %2568
      %2570 = vrot.lane.b32.xlu0 %v1905, 72
      %v2571 = vpop.permute.xlu0 %2570
      %v2572 = vsel %vm744, %v2569, 0
      %v2574 = vsel %vm744, %v2571, 0
      %2576 = vmatprep.subr.mxu0 0.0
      %2577 = vmatpush1.xpose.msra.mxu0 %v2574
      %2578 = vmatprep.subr.mxu0 0.0
      %2579 = vmatpush1.xpose.msra.mxu0 0.0
      %2580 = vmatprep.subr.mxu0 0.0
      %2581 = vmatpush1.xpose.msra.mxu0 0.0
      %2582 = vmatprep.subr.mxu0 0.0
      %2583 = vmatpush1.xpose.msra.mxu0 0.0
      %2584 = vmatprep.subr.mxu0 0.0
      %2585 = vmatpush1.xpose.msra.mxu0 0.0
      %2586 = vmatprep.subr.mxu0 0.0
      %2587 = vmatpush1.xpose.msra.mxu0 0.0
      %2588 = vmatprep.subr.mxu0 0.0
      %2589 = vmatpush1.xpose.msra.mxu0 0.0
      %2590 = vmatprep.subr.mxu0 0.0
      %2591 = vmatpush1.xpose.msra.mxu0 0.0
      %2592 = vmatprep.subr.mxu0 0.0
      %2593 = vmatpush1.xpose.msra.mxu0 0.0
      %2594 = vmatprep.subr.mxu0 0.0
      %2595 = vmatpush1.xpose.msra.mxu0 0.0
      %2596 = vmatprep.subr.mxu0 0.0
      %2597 = vmatpush1.xpose.msra.mxu0 0.0
      %2598 = vmatprep.subr.mxu0 0.0
      %2599 = vmatpush1.xpose.msra.mxu0 0.0
      %2600 = vmatprep.subr.mxu0 0.0
      %2601 = vmatpush1.xpose.msra.mxu0 0.0
      %2602 = vmatprep.subr.mxu0 0.0
      %2603 = vmatpush1.xpose.msra.mxu0 0.0
      %2604 = vmatprep.subr.mxu0 0.0
      %2605 = vmatpush1.xpose.msra.mxu0 0.0
      %2606 = vmatprep.subr.mxu0 0.0
      %2607 = vmatpush1.xpose.msra.mxu0 0.0
      %2608 = vmatprep.subr.mxu0 0.0
      %2609 = vmatpush1.xpose.msra.mxu0 0.0
      %2610 = vmatprep.subr.mxu0 0.0
      %2611 = vmatpush1.xpose.msra.mxu0 0.0
      %2612 = vmatprep.subr.mxu0 0.0
      %2613 = vmatpush1.xpose.msra.mxu0 0.0
      %2614 = vmatprep.subr.mxu0 0.0
      %2615 = vmatpush1.xpose.msra.mxu0 0.0
      %2616 = vmatprep.subr.mxu0 0.0
      %2617 = vmatpush1.xpose.msra.mxu0 0.0
      %2618 = vmatprep.subr.mxu0 0.0
      %2619 = vmatpush1.xpose.msra.mxu0 0.0
      %2620 = vmatprep.subr.mxu0 0.0
      %2621 = vmatpush1.xpose.msra.mxu0 0.0
      %2622 = vmatprep.subr.mxu0 0.0
      %2623 = vmatpush1.xpose.msra.mxu0 0.0
      %2624 = vmatprep.subr.mxu0 0.0
      %2625 = vmatpush1.xpose.msra.mxu0 0.0
      %2626 = vmatprep.subr.mxu0 0.0
      %2627 = vmatpush1.xpose.msra.mxu0 0.0
      %2628 = vmatprep.subr.mxu0 0.0
      %2629 = vmatpush1.xpose.msra.mxu0 0.0
      %2630 = vmatprep.subr.mxu0 0.0
      %2631 = vmatpush1.xpose.msra.mxu0 0.0
      %2632 = vmatprep.subr.mxu0 0.0
      %2633 = vmatpush1.xpose.msra.mxu0 0.0
      %2634 = vmatprep.subr.mxu0 0.0
      %2635 = vmatpush1.xpose.msra.mxu0 0.0
      %2636 = vmatprep.subr.mxu0 0.0
      %2637 = vmatpush1.xpose.msra.mxu0 0.0
      %2638 = vmatprep.subr.mxu0 0.0
      %2639 = vmatpush1.xpose.msra.mxu0 0.0
      %2640 = vmatprep.mubr.f32.mxu0 0.0
      %2641 = vmatmul.mubr.f32.gmra.mrb[0].mxu0 %v2572
      %v2642 = vpop.f32.mrb[0].mxu0
      %v2643 = vadd.f32 0.0, %v2642
      %v2644 = vpop.f32.mrb[0].mxu0
      %2645 = vdwg.mxu0
      %v2646 = vmul.f32 %v2643, 0.35355338
      %v2647 = vadd.f32 %v2646, %v824
      %v2648 = vsel %vm744, %v2647, -inf
      %2649 = vmax.xlane.f32.xlu0 %v2648
      %v2650 = vpop.xlane.xlu0 %2649
      %v2651 = vsub.f32 %v2647, %v2650
      %v2652 = vmul.f32 %v2651, 1.442695
      %v2653 = vpow.pop %v2652
      %v2654 = vsel %vm744, %v2653, 0.0
      %2655 = vadd.xlane.f32.xlu0 %v2654
      %v2656 = vpop.xlane.xlu0 %2655
      %v2657 = vrcp.pop %v2656
      %v2658 = vmul.f32 %v2653, %v2657
      %2659 = vrot.lane.b32.xlu0 %v1905, 40
      %v2660 = vpop.permute.xlu0 %2659
      %v2663 = vsel %vm744, %v2658, 0
      %2665 = vmatprep.subr.mxu0 0.0
      %2666 = vmatpush1.msra.mxu0 %v2660
      %2667 = vmatprep.subr.mxu0 0.0
      %2668 = vmatpush1.msra.mxu0 0.0
      %2669 = vmatprep.subr.mxu0 0.0
      %2670 = vmatpush1.msra.mxu0 0.0
      %2671 = vmatprep.subr.mxu0 0.0
      %2672 = vmatpush1.msra.mxu0 0.0
      %2673 = vmatprep.subr.mxu0 0.0
      %2674 = vmatpush1.msra.mxu0 0.0
      %2675 = vmatprep.subr.mxu0 0.0
      %2676 = vmatpush1.msra.mxu0 0.0
      %2677 = vmatprep.subr.mxu0 0.0
      %2678 = vmatpush1.msra.mxu0 0.0
      %2679 = vmatprep.subr.mxu0 0.0
      %2680 = vmatpush1.msra.mxu0 0.0
      %2681 = vmatprep.subr.mxu0 0.0
      %2682 = vmatpush1.msra.mxu0 0.0
      %2683 = vmatprep.subr.mxu0 0.0
      %2684 = vmatpush1.msra.mxu0 0.0
      %2685 = vmatprep.subr.mxu0 0.0
      %2686 = vmatpush1.msra.mxu0 0.0
      %2687 = vmatprep.subr.mxu0 0.0
      %2688 = vmatpush1.msra.mxu0 0.0
      %2689 = vmatprep.subr.mxu0 0.0
      %2690 = vmatpush1.msra.mxu0 0.0
      %2691 = vmatprep.subr.mxu0 0.0
      %2692 = vmatpush1.msra.mxu0 0.0
      %2693 = vmatprep.subr.mxu0 0.0
      %2694 = vmatpush1.msra.mxu0 0.0
      %2695 = vmatprep.subr.mxu0 0.0
      %2696 = vmatpush1.msra.mxu0 0.0
      %2697 = vmatprep.subr.mxu0 0.0
      %2698 = vmatpush1.msra.mxu0 0.0
      %2699 = vmatprep.subr.mxu0 0.0
      %2700 = vmatpush1.msra.mxu0 0.0
      %2701 = vmatprep.subr.mxu0 0.0
      %2702 = vmatpush1.msra.mxu0 0.0
      %2703 = vmatprep.subr.mxu0 0.0
      %2704 = vmatpush1.msra.mxu0 0.0
      %2705 = vmatprep.subr.mxu0 0.0
      %2706 = vmatpush1.msra.mxu0 0.0
      %2707 = vmatprep.subr.mxu0 0.0
      %2708 = vmatpush1.msra.mxu0 0.0
      %2709 = vmatprep.subr.mxu0 0.0
      %2710 = vmatpush1.msra.mxu0 0.0
      %2711 = vmatprep.subr.mxu0 0.0
      %2712 = vmatpush1.msra.mxu0 0.0
      %2713 = vmatprep.subr.mxu0 0.0
      %2714 = vmatpush1.msra.mxu0 0.0
      %2715 = vmatprep.subr.mxu0 0.0
      %2716 = vmatpush1.msra.mxu0 0.0
      %2717 = vmatprep.subr.mxu0 0.0
      %2718 = vmatpush1.msra.mxu0 0.0
      %2719 = vmatprep.subr.mxu0 0.0
      %2720 = vmatpush1.msra.mxu0 0.0
      %2721 = vmatprep.subr.mxu0 0.0
      %2722 = vmatpush1.msra.mxu0 0.0
      %2723 = vmatprep.subr.mxu0 0.0
      %2724 = vmatpush1.msra.mxu0 0.0
      %2725 = vmatprep.subr.mxu0 0.0
      %2726 = vmatpush1.msra.mxu0 0.0
      %2727 = vmatprep.subr.mxu0 0.0
      %2728 = vmatpush1.msra.mxu0 0.0
      %2729 = vmatprep.mubr.f32.mxu0 0.0
      %2730 = vmatmul.mubr.f32.gmra.mrb[0].mxu0 %v2663
      %v2731 = vpop.f32.mrb[0].mxu0
      %v2732 = vadd.f32 0.0, %v2731
      %v2733 = vpop.f32.mrb[0].mxu0
      %2734 = vdwg.mxu0
      %s2735 = scalar_lea.vmem %s6, 28
      %v2736 = vld [vmem:[%s2735] sm:$0xf]
      %v2737 = vpack.c.bf16 %v2732, %v2732
      %v2739 = vsel %vm744, %v2737, 0
      %v2742 = vsel %vm919, %v2736, 0
      %2744 = vmatprep.subr.bf16.mxu0 0
      %2745 = vmatpush1.bf16.msra.mxu0 %v2742
      %2746 = vmatprep.subr.bf16.mxu0 0
      %2747 = vmatpush1.bf16.msra.mxu0 0
      %2748 = vmatprep.subr.bf16.mxu0 0
      %2749 = vmatpush1.bf16.msra.mxu0 0
      %2750 = vmatprep.subr.bf16.mxu0 0
      %2751 = vmatpush1.bf16.msra.mxu0 0
      %2752 = vmatprep.subr.bf16.mxu0 0
      %2753 = vmatpush1.bf16.msra.mxu0 0
      %2754 = vmatprep.subr.bf16.mxu0 0
      %2755 = vmatpush1.bf16.msra.mxu0 0
      %2756 = vmatprep.subr.bf16.mxu0 0
      %2757 = vmatpush1.bf16.msra.mxu0 0
      %2758 = vmatprep.subr.bf16.mxu0 0
      %2759 = vmatpush1.bf16.msra.mxu0 0
      %2760 = vmatprep.subr.bf16.mxu0 0
      %2761 = vmatpush1.bf16.msra.mxu0 0
      %2762 = vmatprep.subr.bf16.mxu0 0
      %2763 = vmatpush1.bf16.msra.mxu0 0
      %2764 = vmatprep.subr.bf16.mxu0 0
      %2765 = vmatpush1.bf16.msra.mxu0 0
      %2766 = vmatprep.subr.bf16.mxu0 0
      %2767 = vmatpush1.bf16.msra.mxu0 0
      %2768 = vmatprep.subr.bf16.mxu0 0
      %2769 = vmatpush1.bf16.msra.mxu0 0
      %2770 = vmatprep.subr.bf16.mxu0 0
      %2771 = vmatpush1.bf16.msra.mxu0 0
      %2772 = vmatprep.subr.bf16.mxu0 0
      %2773 = vmatpush1.bf16.msra.mxu0 0
      %2774 = vmatprep.subr.bf16.mxu0 0
      %2775 = vmatpush1.bf16.msra.mxu0 0
      %2776 = vmatprep.mubr.bf16.mxu0 0
      %2777 = vmatmul.mubr.bf16.gmra.mrb[0].mxu0 %v2739
      %v2778 = vpop.f32.mrb[0].mxu0
      %v2779 = vadd.f32 0.0, %v2778
      %v2780 = vpop.f32.mrb[0].mxu0
      %v2781 = vpop.f32.mrb[0].mxu0
      %v2782 = vpop.f32.mrb[0].mxu0
      %2783 = vdwg.mxu0
      %v2784 = vadd.f32 %v2567, %v2779
      %v2785 = vadd.f32 %v2784, %v1840
      %s2786 = scalar_lea.vmem %s8, 1
      %v2787 = vld [vmem:[%s2786] sm:$0x1]
      %s2788 = scalar_lea.vmem %s9, 1
      %v2789 = vld [vmem:[%s2788] sm:$0x1]
      %v2790 = vsel %vm644, %v2785, 0.0
      %2791 = vadd.xlane.f32.xlu0 %v2790
      %v2792 = vpop.xlane.xlu0 %2791
      %v2793 = vmul.f32 %v2792, %v648
      %v2794 = vsub.f32 %v2785, %v2793
      %v2795 = vmul.f32 %v2794, %v2794
      %v2796 = vsel %vm644, %v2795, 0.0
      %2797 = vadd.xlane.f32.xlu0 %v2796
      %v2798 = vpop.xlane.xlu0 %2797
      %v2799 = vmul.f32 %v2798, %v648
      %v2800 = vadd.f32 %v2799, 1e-12
      %v2801 = vrsqrt.pop %v2800
      %v2802 = vmul.f32 %v2794, %v2801
      %v2804 = vlaneseq
      %v2805 = vshrl.u32 %v2804, 7
      %v2806 = vsub.s32 0, %v2805
      %v2807 = vrot.slane %v2787, %v2806
      %v2809 = vmul.f32 %v2802, %v2807
      %v2811 = vlaneseq
      %v2812 = vshrl.u32 %v2811, 7
      %v2813 = vsub.s32 0, %v2812
      %v2814 = vrot.slane %v2789, %v2813
      %v2816 = vadd.f32 %v2809, %v2814
      %s2817 = scalar_lea.vmem %s10, 16
      %v2818 = vld [vmem:[%s2817] sm:$0xf]
      %v2819 = vld [vmem:[%s2817 + $0x4] sm:$0xf]
      %v2820 = vld [vmem:[%s2817 + $0x8] sm:$0xf]
      %v2821 = vld [vmem:[%s2817 + $0xc] sm:$0xf]
      %v2822 = vpack.c.bf16 %v2816, %v2816
      %s2823 = scalar_lea.vmem %s11, 1
      %v2824 = vld [vmem:[%s2823] sm:$0x1]
      %v2826 = vlaneseq
      %v2827 = vshrl.u32 %v2826, 7
      %v2828 = vsub.s32 0, %v2827
      %v2829 = vrot.slane %v2824, %v2828
      %v2835 = vunpack.c.l.b16 %v2818
      %v2836 = vunpack.c.l.b16 %v2819
      %v2837 = vunpack.c.l.b16 %v2820
      %v2838 = vunpack.c.l.b16 %v2821
      %v2839 = vpack.c.b16 %v2836, %v2835
      %v2840 = vpack.c.b16 %v2838, %v2837
      %v2844 = vsel %vm644, %v2822, 0
      %2846 = vmatprep.subr.bf16.mxu0 0
      %2847 = vmatpush1.bf16.msra.mxu0 %v2839
      %2848 = vmatprep.subr.bf16.mxu0 0
      %2849 = vmatpush1.bf16.msra.mxu0 %v2840
      %2850 = vmatprep.subr.bf16.mxu0 0
      %2851 = vmatpush1.bf16.msra.mxu0 0
      %2852 = vmatprep.subr.bf16.mxu0 0
      %2853 = vmatpush1.bf16.msra.mxu0 0
      %2854 = vmatprep.subr.bf16.mxu0 0
      %2855 = vmatpush1.bf16.msra.mxu0 0
      %2856 = vmatprep.subr.bf16.mxu0 0
      %2857 = vmatpush1.bf16.msra.mxu0 0
      %2858 = vmatprep.subr.bf16.mxu0 0
      %2859 = vmatpush1.bf16.msra.mxu0 0
      %2860 = vmatprep.subr.bf16.mxu0 0
      %2861 = vmatpush1.bf16.msra.mxu0 0
      %2862 = vmatprep.subr.bf16.mxu0 0
      %2863 = vmatpush1.bf16.msra.mxu0 0
      %2864 = vmatprep.subr.bf16.mxu0 0
      %2865 = vmatpush1.bf16.msra.mxu0 0
      %2866 = vmatprep.subr.bf16.mxu0 0
      %2867 = vmatpush1.bf16.msra.mxu0 0
      %2868 = vmatprep.subr.bf16.mxu0 0
      %2869 = vmatpush1.bf16.msra.mxu0 0
      %2870 = vmatprep.subr.bf16.mxu0 0
      %2871 = vmatpush1.bf16.msra.mxu0 0
      %2872 = vmatprep.subr.bf16.mxu0 0
      %2873 = vmatpush1.bf16.msra.mxu0 0
      %2874 = vmatprep.subr.bf16.mxu0 0
      %2875 = vmatpush1.bf16.msra.mxu0 0
      %2876 = vmatprep.subr.bf16.mxu0 0
      %2877 = vmatpush1.bf16.msra.mxu0 0
      %2878 = vmatprep.mubr.bf16.mxu0 0
      %2879 = vmatmul.mubr.bf16.gmra.mrb[0].mxu0 %v2844
      %v2880 = vpop.f32.mrb[0].mxu0
      %v2881 = vadd.f32 %v2829, %v2880
      %v2882 = vpop.f32.mrb[0].mxu0
      %v2883 = vpop.f32.mrb[0].mxu0
      %v2884 = vpop.f32.mrb[0].mxu0
      %2885 = vdwg.mxu0
      %v2886 = vmul.f32 %v2881, %v2881
      %v2887 = vmul.f32 %v2881, %v2886
      %v2888 = vmul.f32 %v2887, 0.044715
      %v2889 = vadd.f32 %v2881, %v2888
      %v2890 = vmul.f32 %v2889, 0.7978846
      %v2891 = vtanh.pop %v2890
      %v2892 = vadd.f32 %v2891, 1.0
      %v2893 = vmul.f32 %v2892, 0.5
      %v2894 = vmul.f32 %v2881, %v2893
      %s2895 = scalar_lea.vmem %s12, 32
      %v2896 = vld [vmem:[%s2895] sm:$0xf]
      %v2897 = vld [vmem:[%s2895 + $0x4] sm:$0xf]
      %v2898 = vld [vmem:[%s2895 + $0x8] sm:$0xf]
      %v2899 = vld [vmem:[%s2895 + $0xc] sm:$0xf]
      %v2900 = vld [vmem:[%s2895 + $0x10] sm:$0xf]
      %v2901 = vld [vmem:[%s2895 + $0x14] sm:$0xf]
      %v2902 = vld [vmem:[%s2895 + $0x18] sm:$0xf]
      %v2903 = vld [vmem:[%s2895 + $0x1c] sm:$0xf]
      %v2904 = vpack.c.bf16 %v2894, %v2894
      %s2905 = scalar_lea.vmem %s13, 1
      %v2906 = vld [vmem:[%s2905] sm:$0x1]
      %v2908 = vlaneseq
      %v2909 = vshrl.u32 %v2908, 7
      %v2910 = vsub.s32 0, %v2909
      %v2911 = vrot.slane %v2906, %v2910
      %v2921 = vunpack.c.l.b16 %v2896
      %v2922 = vunpack.c.l.b16 %v2897
      %v2923 = vunpack.c.l.b16 %v2898
      %v2924 = vunpack.c.l.b16 %v2899
      %v2925 = vunpack.c.l.b16 %v2900
      %v2926 = vunpack.c.l.b16 %v2901
      %v2927 = vunpack.c.l.b16 %v2902
      %v2928 = vunpack.c.l.b16 %v2903
      %v2929 = vpack.c.b16 %v2922, %v2921
      %v2930 = vpack.c.b16 %v2924, %v2923
      %v2931 = vpack.c.b16 %v2926, %v2925
      %v2932 = vpack.c.b16 %v2928, %v2927
      %v2938 = vsel %vm1767, %v2904, 0
      %2940 = vmatprep.subr.bf16.mxu0 0
      %2941 = vmatpush1.bf16.msra.mxu0 %v2929
      %2942 = vmatprep.subr.bf16.mxu0 0
      %2943 = vmatpush1.bf16.msra.mxu0 %v2930
      %2944 = vmatprep.subr.bf16.mxu0 0
      %2945 = vmatpush1.bf16.msra.mxu0 %v2931
      %2946 = vmatprep.subr.bf16.mxu0 0
      %2947 = vmatpush1.bf16.msra.mxu0 %v2932
      %2948 = vmatprep.subr.bf16.mxu0 0
      %2949 = vmatpush1.bf16.msra.mxu0 0
      %2950 = vmatprep.subr.bf16.mxu0 0
      %2951 = vmatpush1.bf16.msra.mxu0 0
      %2952 = vmatprep.subr.bf16.mxu0 0
      %2953 = vmatpush1.bf16.msra.mxu0 0
      %2954 = vmatprep.subr.bf16.mxu0 0
      %2955 = vmatpush1.bf16.msra.mxu0 0
      %2956 = vmatprep.subr.bf16.mxu0 0
      %2957 = vmatpush1.bf16.msra.mxu0 0
      %2958 = vmatprep.subr.bf16.mxu0 0
      %2959 = vmatpush1.bf16.msra.mxu0 0
      %2960 = vmatprep.subr.bf16.mxu0 0
      %2961 = vmatpush1.bf16.msra.mxu0 0
      %2962 = vmatprep.subr.bf16.mxu0 0
      %2963 = vmatpush1.bf16.msra.mxu0 0
      %2964 = vmatprep.subr.bf16.mxu0 0
      %2965 = vmatpush1.bf16.msra.mxu0 0
      %2966 = vmatprep.subr.bf16.mxu0 0
      %2967 = vmatpush1.bf16.msra.mxu0 0
      %2968 = vmatprep.subr.bf16.mxu0 0
      %2969 = vmatpush1.bf16.msra.mxu0 0
      %2970 = vmatprep.subr.bf16.mxu0 0
      %2971 = vmatpush1.bf16.msra.mxu0 0
      %2972 = vmatprep.mubr.bf16.mxu0 0
      %2973 = vmatmul.mubr.bf16.gmra.mrb[0].mxu0 %v2938
      %v2974 = vpop.f32.mrb[0].mxu0
      %v2975 = vadd.f32 %v2911, %v2974
      %v2976 = vpop.f32.mrb[0].mxu0
      %v2977 = vpop.f32.mrb[0].mxu0
      %v2978 = vpop.f32.mrb[0].mxu0
      %2979 = vdwg.mxu0
      %v2980 = vadd.f32 %v2975, %v2816
      %s2981 = scalar_lea.vmem %s14, 1
      %v2982 = vld [vmem:[%s2981] sm:$0x1]
      %s2983 = scalar_lea.vmem %s15, 1
      %v2984 = vld [vmem:[%s2983] sm:$0x1]
      %v2985 = vsel %vm644, %v2980, 0.0
      %2986 = vadd.xlane.f32.xlu0 %v2985
      %v2987 = vpop.xlane.xlu0 %2986
      %v2988 = vmul.f32 %v2987, %v648
      %v2989 = vsub.f32 %v2980, %v2988
      %v2990 = vmul.f32 %v2989, %v2989
      %v2991 = vsel %vm644, %v2990, 0.0
      %2992 = vadd.xlane.f32.xlu0 %v2991
      %v2993 = vpop.xlane.xlu0 %2992
      %v2994 = vmul.f32 %v2993, %v648
      %v2995 = vadd.f32 %v2994, 1e-12
      %v2996 = vrsqrt.pop %v2995
      %v2997 = vmul.f32 %v2989, %v2996
      %v2999 = vlaneseq
      %v3000 = vshrl.u32 %v2999, 7
      %v3001 = vsub.s32 0, %v3000
      %v3002 = vrot.slane %v2982, %v3001
      %v3004 = vmul.f32 %v2997, %v3002
      %v3006 = vlaneseq
      %v3007 = vshrl.u32 %v3006, 7
      %v3008 = vsub.s32 0, %v3007
      %v3009 = vrot.slane %v2984, %v3008
      %v3011 = vadd.f32 %v3004, %v3009
      %v3012 = vld [vmem:[%s16] sm:$0xf]
      %v3013 = vld [vmem:[%s16 + $0x4] sm:$0xf]
      %v3014 = vld [vmem:[%s16 + $0x8] sm:$0xf]
      %v3015 = vld [vmem:[%s16 + $0xc] sm:$0xf]
      %v3016 = vpack.c.bf16 %v3011, %v3011
      %v3017 = vld [vmem:[%s17] sm:$0x1]
      %v3019 = vlaneseq
      %v3020 = vshrl.u32 %v3019, 7
      %v3021 = vsub.s32 0, %v3020
      %v3022 = vrot.slane %v3017, %v3021
      %v3028 = vunpack.c.l.b16 %v3012
      %v3029 = vunpack.c.l.b16 %v3013
      %v3030 = vunpack.c.l.b16 %v3014
      %v3031 = vunpack.c.l.b16 %v3015
      %v3032 = vpack.c.b16 %v3029, %v3028
      %v3033 = vpack.c.b16 %v3031, %v3030
      %v3037 = vsel %vm644, %v3016, 0
      %3039 = vmatprep.subr.bf16.mxu0 0
      %3040 = vmatpush1.bf16.msra.mxu0 %v3032
      %3041 = vmatprep.subr.bf16.mxu0 0
      %3042 = vmatpush1.bf16.msra.mxu0 %v3033
      %3043 = vmatprep.subr.bf16.mxu0 0
      %3044 = vmatpush1.bf16.msra.mxu0 0
      %3045 = vmatprep.subr.bf16.mxu0 0
      %3046 = vmatpush1.bf16.msra.mxu0 0
      %3047 = vmatprep.subr.bf16.mxu0 0
      %3048 = vmatpush1.bf16.msra.mxu0 0
      %3049 = vmatprep.subr.bf16.mxu0 0
      %3050 = vmatpush1.bf16.msra.mxu0 0
      %3051 = vmatprep.subr.bf16.mxu0 0
      %3052 = vmatpush1.bf16.msra.mxu0 0
      %3053 = vmatprep.subr.bf16.mxu0 0
      %3054 = vmatpush1.bf16.msra.mxu0 0
      %3055 = vmatprep.subr.bf16.mxu0 0
      %3056 = vmatpush1.bf16.msra.mxu0 0
      %3057 = vmatprep.subr.bf16.mxu0 0
      %3058 = vmatpush1.bf16.msra.mxu0 0
      %3059 = vmatprep.subr.bf16.mxu0 0
      %3060 = vmatpush1.bf16.msra.mxu0 0
      %3061 = vmatprep.subr.bf16.mxu0 0
      %3062 = vmatpush1.bf16.msra.mxu0 0
      %3063 = vmatprep.subr.bf16.mxu0 0
      %3064 = vmatpush1.bf16.msra.mxu0 0
      %3065 = vmatprep.subr.bf16.mxu0 0
      %3066 = vmatpush1.bf16.msra.mxu0 0
      %3067 = vmatprep.subr.bf16.mxu0 0
      %3068 = vmatpush1.bf16.msra.mxu0 0
      %3069 = vmatprep.subr.bf16.mxu0 0
      %3070 = vmatpush1.bf16.msra.mxu0 0
      %3071 = vmatprep.mubr.bf16.mxu0 0
      %3072 = vmatmul.mubr.bf16.gmra.mrb[0].mxu0 %v3037
      %v3073 = vpop.f32.mrb[0].mxu0
      %v3074 = vadd.f32 %v3022, %v3073
      %v3075 = vpop.f32.mrb[0].mxu0
      %v3076 = vpop.f32.mrb[0].mxu0
      %v3077 = vpop.f32.mrb[0].mxu0
      %3078 = vdwg.mxu0
      %v3079 = vtanh.pop %v3074
      %v3080 = vld [vmem:[%s18] sm:$0xf]
      %v3081 = vld [vmem:[%s18 + $0x4] sm:$0xf]
      %v3082 = vld [vmem:[%s18 + $0x8] sm:$0xf]
      %v3083 = vld [vmem:[%s18 + $0xc] sm:$0xf]
      %v3084 = vpack.c.bf16 %v3079, %v3079
      %v3085 = vld [vmem:[%s19] sm:$0x1]
      %v3087 = vlaneseq
      %v3088 = vshrl.u32 %v3087, 7
      %v3089 = vsub.s32 0, %v3088
      %v3090 = vrot.slane %v3085, %v3089
      %v3096 = vunpack.c.l.b16 %v3080
      %v3097 = vunpack.c.l.b16 %v3081
      %v3098 = vunpack.c.l.b16 %v3082
      %v3099 = vunpack.c.l.b16 %v3083
      %v3100 = vpack.c.b16 %v3097, %v3096
      %v3101 = vpack.c.b16 %v3099, %v3098
      %v3105 = vsel %vm644, %v3084, 0
      %3107 = vmatprep.subr.bf16.mxu0 0
      %3108 = vmatpush1.bf16.msra.mxu0 %v3100
      %3109 = vmatprep.subr.bf16.mxu0 0
      %3110 = vmatpush1.bf16.msra.mxu0 %v3101
      %3111 = vmatprep.subr.bf16.mxu0 0
      %3112 = vmatpush1.bf16.msra.mxu0 0
      %3113 = vmatprep.subr.bf16.mxu0 0
      %3114 = vmatpush1.bf16.msra.mxu0 0
      %3115 = vmatprep.subr.bf16.mxu0 0
      %3116 = vmatpush1.bf16.msra.mxu0 0
      %3117 = vmatprep.subr.bf16.mxu0 0
      %3118 = vmatpush1.bf16.msra.mxu0 0
      %3119 = vmatprep.subr.bf16.mxu0 0
      %3120 = vmatpush1.bf16.msra.mxu0 0
      %3121 = vmatprep.subr.bf16.mxu0 0
      %3122 = vmatpush1.bf16.msra.mxu0 0
      %3123 = vmatprep.subr.bf16.mxu0 0
      %3124 = vmatpush1.bf16.msra.mxu0 0
      %3125 = vmatprep.subr.bf16.mxu0 0
      %3126 = vmatpush1.bf16.msra.mxu0 0
      %3127 = vmatprep.subr.bf16.mxu0 0
      %3128 = vmatpush1.bf16.msra.mxu0 0
      %3129 = vmatprep.subr.bf16.mxu0 0
      %3130 = vmatpush1.bf16.msra.mxu0 0
      %3131 = vmatprep.subr.bf16.mxu0 0
      %3132 = vmatpush1.bf16.msra.mxu0 0
      %3133 = vmatprep.subr.bf16.mxu0 0
      %3134 = vmatpush1.bf16.msra.mxu0 0
      %3135 = vmatprep.subr.bf16.mxu0 0
      %3136 = vmatpush1.bf16.msra.mxu0 0
      %3137 = vmatprep.subr.bf16.mxu0 0
      %3138 = vmatpush1.bf16.msra.mxu0 0
      %3139 = vmatprep.mubr.bf16.mxu0 0
      %3140 = vmatmul.mubr.bf16.gmra.mrb[0].mxu0 %v3105
      %v3141 = vpop.f32.mrb[0].mxu0
      %v3142 = vadd.f32 %v3090, %v3141
      %v3143 = vpop.f32.mrb[0].mxu0
      %v3144 = vpop.f32.mrb[0].mxu0
      %v3145 = vpop.f32.mrb[0].mxu0
      %3146 = vdwg.mxu0
      %3147 = vst [vmem:[%s638] sm:$0xff] %v3142
      %p3148 = scmp.lt.s32.totalorder %s31, 1
      %s3149 = scalar_select %p3148, %s31, 1
      %s3150 = smul.addr %s3149, 8
      %s3151 = scalar_lea.vmem %s20, %s3150
      // Predicated region
      $region101: #{model_forward.1} parent=99 // pred_check
        %p3152 = pneg %p479
      $region102: #{model_forward.1} parent=99 // pred_check_branch
        %3154 = sbr.rel (%p3152) target = $region104
      $region103: #{model_forward.1} parent=99 // pred_region
        _
      $region104: #{model_forward.1} parent=99 // pred_fallthru
        _
    $region100: #{model_forward.1} parent=5 // pred_fallthru
      _
    %p3155 = scmp.le.s32.totalorder 2, %s26
    // Predicated region
    $region105: #{model_forward.1} parent=5 // pred_check
      %p3156 = pneg %p3155
    $region106: #{model_forward.1} parent=5 // pred_check_branch
      %3158 = sbr.rel (%p3156) target = $region108
    $region107: #{model_forward.1} parent=5 // pred_region
      %s3159 = ssub.s32 %s26, 2
      // Predicated region
      $region109: #{model_forward.1} parent=107 // pred_check
        %p3160 = pneg %p485
      $region110: #{model_forward.1} parent=107 // pred_check_branch
        %3162 = sbr.rel (%p3160) target = $region112
      $region111: #{model_forward.1} parent=107 // pred_region
        %p3163 = scmp.lt.s32.totalorder %s32, 1
        %s3164 = scalar_select %p3163, %s32, 1
        %s3165 = smul.addr %s3164, 8
        %s3166 = scalar_lea.vmem %s20, %s3165
      $region112: #{model_forward.1} parent=107 // pred_fallthru
        _
    $region108: #{model_forward.1} parent=5 // pred_fallthru
      _
  $region6: #{model_forward.1} parent=0 // loop_footer
    %s30 = sadd.s32 1, %s26
  $region7: #{model_forward.1} parent=0 // loop_footer_branch
    %25 = sbr.rel target = $region3
  $region8: #{model_forward.1} parent=0 // loop_exit
    _

</llo_original>
